<compile_context>
chip_gen: v5e
topology: v5e:2x2
jax: 0.10.0
libtpu: 0.0.40
codegen_flags: <defaults>
</compile_context>

<pallas_src>
import functools

import jax
import jax.numpy as jnp
from jax.experimental import pallas as pl
from jax.experimental.pallas import tpu as pltpu

LANES = 128  # all inter-layer activations are kept 128-channel (lane dense)


def _round_up(x, m):
    return (x + m - 1) // m * m


# ----------------------------- fused kernel --------------------------------

def _net_kernel(x_ref, w1_ref, b1_ref, w2_ref, b2_ref, w3_ref, b3_ref,
                wf_ref, bf_ref, o_ref,
                y1_ref, acc2_ref, v2_ref, y2_ref, acc3_ref, *,
                q1, ws1, m2e, lv2, ws2, p2h, p2w, m3e, p3h, p3w):
    """Whole Net forward for one image (grid iterates over the batch).

    x_ref  : (1, 4*q1, K1p) bf16  conv1 im2col rows in pool-quadrant order
    w1_ref : (K1p, 128)     bf16  conv1 weight (K folded, OC padded to 128)
    w2_ref : (3, 384, 128)  bf16  conv2 per-KH-tap weights (KW,IC folded)
    w3_ref : (1152, 128)    bf16  conv3 weight (all 9 taps folded)
    wf_ref : (128, O)       bf16  fc1 weight (transposed)
    b*_ref : (1, ...)       f32   biases
    o_ref  : (1, 1, O)      f32
    scratch: y1 (q1,128) bf16, acc2 (m2e,128) f32, v2 (lv2,128) f32,
             y2 (p2h*ws2,128) bf16, acc3 (m3e,128) f32
    """
    f32 = jnp.float32

    # ---------------- conv1 + 2x2 maxpool + bias + ReLU -------------------
    # x rows are grouped into 4 pooling-quadrant blocks of q1 rows each, so
    # the max-pool is an elementwise max of four quadrant matmuls (single
    # K=128 dot per quadrant, accumulation stays in registers / MRB).
    w1 = w1_ref[...]
    pooled1 = jnp.dot(x_ref[0, 0:q1, :], w1, preferred_element_type=f32)
    for q in range(1, 4):
        pooled1 = jnp.maximum(
            pooled1,
            jnp.dot(x_ref[0, q * q1:(q + 1) * q1, :], w1,
                    preferred_element_type=f32))
    # bias commutes with max; ReLU after.  y1 rows: a*ws1 + b (ws1 8-aligned).
    y1_ref[...] = jnp.maximum(pooled1 + b1_ref[...], 0.0).astype(y1_ref.dtype)

    # ---------------- conv2 (KW folded into K; 3 KH taps) -----------------
    acc2 = None
    for dh in range(3):
        base = dh * ws1
        lhs = jnp.concatenate(
            [y1_ref[base + dw:base + dw + m2e, :] for dw in range(3)],
            axis=-1)                                     # (m2e, 384) bf16
        d = jnp.dot(lhs, w2_ref[dh], preferred_element_type=f32)
        acc2 = d if acc2 is None else acc2 + d           # register/MRB accum
    acc2_ref[...] = acc2                                 # single store

    # 2x2 maxpool: two whole-tensor shifted maxima + stride-2 row selection.
    hmax = jnp.maximum(acc2_ref[0:m2e - 1, :], acc2_ref[1:m2e, :])
    v2_ref[...] = jnp.maximum(hmax[0:lv2, :], hmax[ws1:ws1 + lv2, :])
    y2_ref[...] = jnp.zeros_like(y2_ref)                 # deterministic pad
    b2 = b2_ref[...]
    for a in range(p2h):
        sel = v2_ref[pl.ds(2 * a * ws1, p2w, stride=2), :]
        y2_ref[a * ws2:a * ws2 + p2w, :] = (
            jnp.maximum(sel + b2, 0.0).astype(y2_ref.dtype))

    # ---------------- conv3 (all 9 taps folded -> one matmul) -------------
    lhs3 = jnp.concatenate(
        [y2_ref[dh * ws2 + dw:dh * ws2 + dw + m3e, :]
         for dh in range(3) for dw in range(3)], axis=-1)  # (m3e, 1152)
    acc3_ref[...] = (
        jnp.dot(lhs3, w3_ref[...], preferred_element_type=f32) + b3_ref[...])

    # ------------- 2x2 maxpool + ReLU + global avg pool + fc1 -------------
    gap = None
    for a in range(p3h):
        for b in range(p3w):
            r = 2 * a * ws2 + 2 * b
            m = jnp.maximum(
                jnp.maximum(acc3_ref[r:r + 1, :], acc3_ref[r + 1:r + 2, :]),
                jnp.maximum(acc3_ref[r + ws2:r + ws2 + 1, :],
                            acc3_ref[r + ws2 + 1:r + ws2 + 2, :]))
            m = jnp.maximum(m, 0.0)                      # ReLU per pooled val
            gap = m if gap is None else gap + m
    gap = gap * (1.0 / float(p3h * p3w))                 # (1, 128) f32
    out = jnp.dot(gap.astype(wf_ref.dtype), wf_ref[...],
                  preferred_element_type=f32) + bf_ref[...]
    o_ref[0, :, :] = out


# ------------------------------ JAX wrapper --------------------------------

def net_forward(params, x_nchw):
    n, cin, hh, ww = x_nchw.shape
    w1, b1 = params["conv1"]
    w2, b2 = params["conv2"]
    w3, b3 = params["conv3"]
    wf, bfc = params["fc1"]
    oc1 = w1.shape[0]
    kh1, kw1 = w1.shape[2], w1.shape[3]

    # geometry (all static)
    oh1, ow1 = hh - kh1 + 1, ww - kw1 + 1
    assert oh1 > 0 and ow1 > 0 and oh1 % 2 == 0 and ow1 % 2 == 0
    p1h, p1w = oh1 // 2, ow1 // 2
    oh2, ow2 = p1h - 2, p1w - 2
    assert oh2 > 0 and ow2 > 0 and oh2 % 2 == 0 and ow2 % 2 == 0
    p2h, p2w = oh2 // 2, ow2 // 2
    oh3, ow3 = p2h - 2, p2w - 2
    assert oh3 > 0 and ow3 > 0 and oh3 % 2 == 0 and ow3 % 2 == 0
    p3h, p3w = oh3 // 2, ow3 // 2

    ws1 = _round_up(p1w, 8)        # y1 row stride (sublane aligned)
    ws2 = _round_up(p2w, 8)        # y2 row stride
    q1 = p1h * ws1                 # rows per conv1 pooling quadrant == rows of y1
    q2 = p2h * ws2                 # rows of y2
    m2e = (oh2 - 1) * ws1 + ow2    # conv2 "extended" output rows
    lv2 = m2e - 1 - ws1            # rows of conv2's 2x2-max map
    m3e = (oh3 - 1) * ws2 + ow3    # conv3 "extended" output rows

    k1 = kh1 * kw1 * cin
    k1p = _round_up(k1, LANES)
    dim_out = wf.shape[0]

    # --- conv1 LHS: full 5x5 im2col, pool-quadrant row layout (XLA glue) ----
    x_nhwc = jnp.transpose(x_nchw, (0, 2, 3, 1)).astype(jnp.float32)
    patches = jnp.concatenate(
        [x_nhwc[:, i:i + oh1, j:j + ow1, :]
         for i in range(kh1) for j in range(kw1)], axis=-1)  # (N,oh1,ow1,k1)
    patches = jnp.pad(patches, ((0, 0), (0, 0), (0, 0), (0, k1p - k1)))
    patches = patches.reshape(n, p1h, 2, p1w, 2, k1p)        # (N,a,dh,b,dw,K)
    patches = jnp.transpose(patches, (0, 2, 4, 1, 3, 5))     # (N,dh,dw,a,b,K)
    patches = jnp.pad(
        patches, ((0, 0), (0, 0), (0, 0), (0, 0), (0, ws1 - p1w), (0, 0)))
    x_lhs = patches.reshape(n, 4 * q1, k1p).astype(jnp.bfloat16)

    # --- weights in MXU matmul form (bf16), biases f32 ---
    w1m = jnp.transpose(w1, (2, 3, 1, 0)).reshape(k1, oc1)   # (25*C, 64)
    w1m = jnp.pad(w1m, ((0, k1p - k1), (0, LANES - oc1))).astype(jnp.bfloat16)
    b1p = jnp.pad(b1, (0, LANES - oc1)).reshape(1, LANES).astype(jnp.float32)

    w2t = jnp.transpose(w2, (2, 3, 1, 0))                    # (3,3,64,128)
    w2t = jnp.pad(w2t, ((0, 0), (0, 0), (0, LANES - w2.shape[1]), (0, 0)))
    w2t = w2t.reshape(3, 3 * LANES, LANES).astype(jnp.bfloat16)
    b2p = b2.reshape(1, LANES).astype(jnp.float32)

    w3t = jnp.transpose(w3, (2, 3, 1, 0)).reshape(9 * LANES, LANES)
    w3t = w3t.astype(jnp.bfloat16)
    b3p = b3.reshape(1, LANES).astype(jnp.float32)

    wfm = jnp.transpose(wf).astype(jnp.bfloat16)             # (128, dim_out)
    bfp = bfc.reshape(1, dim_out).astype(jnp.float32)

    kernel = functools.partial(
        _net_kernel, q1=q1, ws1=ws1, m2e=m2e, lv2=lv2, ws2=ws2,
        p2h=p2h, p2w=p2w, m3e=m3e, p3h=p3h, p3w=p3w)

    out = pl.pallas_call(
        kernel,
        out_shape=jax.ShapeDtypeStruct((n, 1, dim_out), jnp.float32),
        grid=(n,),
        in_specs=[
            pl.BlockSpec((1, 4 * q1, k1p), lambda i: (i, 0, 0)),   # im2col
            pl.BlockSpec((k1p, LANES), lambda i: (0, 0)),          # w1
            pl.BlockSpec((1, LANES), lambda i: (0, 0)),            # b1
            pl.BlockSpec((3, 3 * LANES, LANES), lambda i: (0, 0, 0)),  # w2
            pl.BlockSpec((1, LANES), lambda i: (0, 0)),            # b2
            pl.BlockSpec((9 * LANES, LANES), lambda i: (0, 0)),    # w3
            pl.BlockSpec((1, LANES), lambda i: (0, 0)),            # b3
            pl.BlockSpec((LANES, dim_out), lambda i: (0, 0)),      # fc weight
            pl.BlockSpec((1, dim_out), lambda i: (0, 0)),          # fc bias
        ],
        out_specs=pl.BlockSpec((1, 1, dim_out), lambda i: (i, 0, 0)),
        scratch_shapes=[
            pltpu.VMEM((q1, LANES), jnp.bfloat16),    # y1 (pooled conv1)
            pltpu.VMEM((m2e, LANES), jnp.float32),    # conv2 pre-pool output
            pltpu.VMEM((lv2, LANES), jnp.float32),    # 2x2-max of conv2
            pltpu.VMEM((q2, LANES), jnp.bfloat16),    # y2 (pooled conv2)
            pltpu.VMEM((m3e, LANES), jnp.float32),    # conv3 output
        ],
        compiler_params=pltpu.CompilerParams(
            dimension_semantics=("parallel",)),       # v7x: batch over 2 TCs
    )(x_lhs, w1m, b1p, w2t, b2p, w3t, b3p, wfm, bfp)

    return out.reshape(n, dim_out)


# ------------------------------ parameters ---------------------------------

def init_params(key, dim_input, dim_output):
    ks = jax.random.split(key, 8)

    def conv_init(k1, k2, oc, ic, kh, kw):
        fan_in = ic * kh * kw
        bound = 1.0 / float(fan_in) ** 0.5
        w = jax.random.uniform(k1, (oc, ic, kh, kw), jnp.float32, -bound, bound)
        b = jax.random.uniform(k2, (oc,), jnp.float32, -bound, bound)
        return w, b

    def lin_init(k1, k2, out_f, in_f):
        bound = 1.0 / float(in_f) ** 0.5
        w = jax.random.uniform(k1, (out_f, in_f), jnp.float32, -bound, bound)
        b = jax.random.uniform(k2, (out_f,), jnp.float32, -bound, bound)
        return w, b

    return {
        "conv1": conv_init(ks[0], ks[1], 64, dim_input, 5, 5),
        "conv2": conv_init(ks[2], ks[3], 128, 64, 3, 3),
        "conv3": conv_init(ks[4], ks[5], 128, 128, 3, 3),
        "fc1": lin_init(ks[6], ks[7], dim_output, 128),
    }


# --------------------------- pure-JAX reference ----------------------------

def reference_forward(params, x_nchw):
    x = x_nchw.astype(jnp.float32)

    def conv(x, w, b):
        y = jax.lax.conv_general_dilated(
            x, w, window_strides=(1, 1), padding="VALID",
            dimension_numbers=("NCHW", "OIHW", "NCHW"))
        return y + b[None, :, None, None]

    def pool_relu(x):
        y = jax.lax.reduce_window(
            x, -jnp.inf, jax.lax.max, (1, 1, 2, 2), (1, 1, 2, 2), "VALID")
        return jnp.maximum(y, 0.0)

    x = pool_relu(conv(x, *params["conv1"]))
    x = pool_relu(conv(x, *params["conv2"]))
    x = pool_relu(conv(x, *params["conv3"]))
    x = jnp.mean(x, axis=(2, 3))
    wf, bf = params["fc1"]
    return x @ wf.T + bf


# --------------------------------- main ------------------------------------

if __name__ == "__main__":
    dim_input, dim_output = 4, 10
    key = jax.random.PRNGKey(0)
    pkey, xkey = jax.random.split(key)
    params = init_params(pkey, dim_input, dim_output)

    # Spatial must be >= 30 for this net (3 valid convs + 3 pools); use 32.
    x = jax.random.normal(xkey, (2, dim_input, 32, 32), jnp.float32)  # NCHW

    fwd = jax.jit(net_forward)
    out = jax.block_until_ready(fwd(params, x))
    assert out.shape == (2, dim_output), out.shape

    ref = jax.block_until_ready(jax.jit(reference_forward)(params, x))
    # bf16 MXU inputs with f32 accumulation -> ~1% relative error budget.
    assert jnp.allclose(out, ref, atol=2e-2, rtol=2e-2), (out, ref)

    print("KERNEL_OK")
</pallas_src>

<mosaic_0001>
module attributes {stable_mosaic.version = 11 : i64} {
  func.func @_net_kernel(%arg0: i32, %arg1: memref<1x896x128xbf16, #tpu.memory_space<vmem>>, %arg2: memref<128x128xbf16, #tpu.memory_space<vmem>>, %arg3: memref<1x128xf32, #tpu.memory_space<vmem>>, %arg4: memref<3x384x128xbf16, #tpu.memory_space<vmem>>, %arg5: memref<1x128xf32, #tpu.memory_space<vmem>>, %arg6: memref<1152x128xbf16, #tpu.memory_space<vmem>>, %arg7: memref<1x128xf32, #tpu.memory_space<vmem>>, %arg8: memref<128x10xbf16, #tpu.memory_space<vmem>>, %arg9: memref<1x10xf32, #tpu.memory_space<vmem>>, %arg10: memref<1x1x10xf32, #tpu.memory_space<vmem>>, %arg11: memref<224x128xbf16, #tpu.memory_space<vmem>>, %arg12: memref<188x128xf32, #tpu.memory_space<vmem>>, %arg13: memref<171x128xf32, #tpu.memory_space<vmem>>, %arg14: memref<48x128xbf16, #tpu.memory_space<vmem>>, %arg15: memref<28x128xf32, #tpu.memory_space<vmem>>) attributes {dimension_semantics = [#tpu.dimension_semantics<parallel>], iteration_bounds = array<i64: 2>, scalar_prefetch = 0 : i64, scratch_operands = 5 : i64, tpu.core_type = #tpu.core_type<tc>, window_params = [{transform_indices = @transform_0, window_bounds = array<i64: 1, 896, 128>}, {pipeline_mode = #tpu.pipeline_mode<synchronous>, transform_indices = @transform_1, window_bounds = array<i64: 128, 128>}, {pipeline_mode = #tpu.pipeline_mode<synchronous>, transform_indices = @transform_2, window_bounds = array<i64: 1, 128>}, {pipeline_mode = #tpu.pipeline_mode<synchronous>, transform_indices = @transform_3, window_bounds = array<i64: 3, 384, 128>}, {pipeline_mode = #tpu.pipeline_mode<synchronous>, transform_indices = @transform_4, window_bounds = array<i64: 1, 128>}, {pipeline_mode = #tpu.pipeline_mode<synchronous>, transform_indices = @transform_5, window_bounds = array<i64: 1152, 128>}, {pipeline_mode = #tpu.pipeline_mode<synchronous>, transform_indices = @transform_6, window_bounds = array<i64: 1, 128>}, {pipeline_mode = #tpu.pipeline_mode<synchronous>, transform_indices = @transform_7, window_bounds = array<i64: 128, 10>}, {pipeline_mode = #tpu.pipeline_mode<synchronous>, transform_indices = @transform_8, window_bounds = array<i64: 1, 10>}, {transform_indices = @transform_9, window_bounds = array<i64: 1, 1, 10>}]} {
    %c0 = arith.constant 0 : index
    %c0_0 = arith.constant 0 : index
    %0 = vector.load %arg2[%c0, %c0_0] : memref<128x128xbf16, #tpu.memory_space<vmem>>, vector<128x128xbf16>
    %c0_1 = arith.constant 0 : index
    %c0_2 = arith.constant 0 : index
    %c0_3 = arith.constant 0 : index
    %1 = vector.load %arg1[%c0_1, %c0_2, %c0_3] : memref<1x896x128xbf16, #tpu.memory_space<vmem>>, vector<1x224x128xbf16>
    %2 = vector.shape_cast %1 : vector<1x224x128xbf16> to vector<224x128xbf16>
    %cst = arith.constant dense<0.000000e+00> : vector<224x128xf32>
    %3 = tpu.matmul %2, %0, %cst {dimension_numbers = #tpu.dot_dimension_numbers<[1], [0], [0], [1], [0, 0, 1, 1], [], []>} : vector<224x128xbf16>, vector<128x128xbf16>, vector<224x128xf32> -> vector<224x128xf32>
    %c0_4 = arith.constant 0 : index
    %c224 = arith.constant 224 : index
    %c0_5 = arith.constant 0 : index
    %4 = vector.load %arg1[%c0_4, %c224, %c0_5] : memref<1x896x128xbf16, #tpu.memory_space<vmem>>, vector<1x224x128xbf16>
    %5 = vector.shape_cast %4 : vector<1x224x128xbf16> to vector<224x128xbf16>
    %cst_6 = arith.constant dense<0.000000e+00> : vector<224x128xf32>
    %6 = tpu.matmul %5, %0, %cst_6 {dimension_numbers = #tpu.dot_dimension_numbers<[1], [0], [0], [1], [0, 0, 1, 1], [], []>} : vector<224x128xbf16>, vector<128x128xbf16>, vector<224x128xf32> -> vector<224x128xf32>
    %7 = arith.maximumf %3, %6 : vector<224x128xf32>
    %c0_7 = arith.constant 0 : index
    %c448 = arith.constant 448 : index
    %c0_8 = arith.constant 0 : index
    %8 = vector.load %arg1[%c0_7, %c448, %c0_8] : memref<1x896x128xbf16, #tpu.memory_space<vmem>>, vector<1x224x128xbf16>
    %9 = vector.shape_cast %8 : vector<1x224x128xbf16> to vector<224x128xbf16>
    %cst_9 = arith.constant dense<0.000000e+00> : vector<224x128xf32>
    %10 = tpu.matmul %9, %0, %cst_9 {dimension_numbers = #tpu.dot_dimension_numbers<[1], [0], [0], [1], [0, 0, 1, 1], [], []>} : vector<224x128xbf16>, vector<128x128xbf16>, vector<224x128xf32> -> vector<224x128xf32>
    %11 = arith.maximumf %7, %10 : vector<224x128xf32>
    %c0_10 = arith.constant 0 : index
    %c672 = arith.constant 672 : index
    %c0_11 = arith.constant 0 : index
    %12 = vector.load %arg1[%c0_10, %c672, %c0_11] : memref<1x896x128xbf16, #tpu.memory_space<vmem>>, vector<1x224x128xbf16>
    %13 = vector.shape_cast %12 : vector<1x224x128xbf16> to vector<224x128xbf16>
    %cst_12 = arith.constant dense<0.000000e+00> : vector<224x128xf32>
    %14 = tpu.matmul %13, %0, %cst_12 {dimension_numbers = #tpu.dot_dimension_numbers<[1], [0], [0], [1], [0, 0, 1, 1], [], []>} : vector<224x128xbf16>, vector<128x128xbf16>, vector<224x128xf32> -> vector<224x128xf32>
    %15 = arith.maximumf %11, %14 : vector<224x128xf32>
    %c0_13 = arith.constant 0 : index
    %c0_14 = arith.constant 0 : index
    %16 = vector.load %arg3[%c0_13, %c0_14] : memref<1x128xf32, #tpu.memory_space<vmem>>, vector<1x128xf32>
    %17 = vector.broadcast %16 : vector<1x128xf32> to vector<224x128xf32>
    %18 = arith.addf %15, %17 : vector<224x128xf32>
    %cst_15 = arith.constant 0.000000e+00 : f32
    %19 = vector.broadcast %cst_15 : f32 to vector<224x128xf32>
    %20 = arith.maximumf %18, %19 : vector<224x128xf32>
    %21 = arith.truncf %20 : vector<224x128xf32> to vector<224x128xbf16>
    %c0_16 = arith.constant 0 : index
    %c0_17 = arith.constant 0 : index
    %22 = vector.load %arg11[%c0_16, %c0_17] : memref<224x128xbf16, #tpu.memory_space<vmem>>, vector<224x128xbf16>
    tpu.vector_store %arg11[%c0_16, %c0_17], %21 {strides = array<i32>} : memref<224x128xbf16, #tpu.memory_space<vmem>>, vector<224x128xbf16>,
    %c0_18 = arith.constant 0 : index
    %c0_19 = arith.constant 0 : index
    %23 = vector.load %arg11[%c0_18, %c0_19] : memref<224x128xbf16, #tpu.memory_space<vmem>>, vector<188x128xbf16>
    %c1 = arith.constant 1 : index
    %c0_20 = arith.constant 0 : index
    %24 = vector.load %arg11[%c1, %c0_20] : memref<224x128xbf16, #tpu.memory_space<vmem>>, vector<188x128xbf16>
    %c2 = arith.constant 2 : index
    %c0_21 = arith.constant 0 : index
    %25 = vector.load %arg11[%c2, %c0_21] : memref<224x128xbf16, #tpu.memory_space<vmem>>, vector<188x128xbf16>
    %26 = tpu.concatenate %23, %24, %25 in 1 : vector<188x128xbf16>, vector<188x128xbf16>, vector<188x128xbf16> -> vector<188x384xbf16>
    %c0_22 = arith.constant 0 : index
    %c0_23 = arith.constant 0 : index
    %c0_24 = arith.constant 0 : index
    %27 = vector.load %arg4[%c0_22, %c0_23, %c0_24] : memref<3x384x128xbf16, #tpu.memory_space<vmem>>, vector<1x384x128xbf16>
    %28 = vector.shape_cast %27 : vector<1x384x128xbf16> to vector<384x128xbf16>
    %cst_25 = arith.constant dense<0.000000e+00> : vector<188x128xf32>
    %29 = tpu.matmul %26, %28, %cst_25 {dimension_numbers = #tpu.dot_dimension_numbers<[1], [0], [0], [1], [0, 0, 1, 1], [], []>} : vector<188x384xbf16>, vector<384x128xbf16>, vector<188x128xf32> -> vector<188x128xf32>
    %c16 = arith.constant 16 : index
    %c0_26 = arith.constant 0 : index
    %30 = vector.load %arg11[%c16, %c0_26] : memref<224x128xbf16, #tpu.memory_space<vmem>>, vector<188x128xbf16>
    %c17 = arith.constant 17 : index
    %c0_27 = arith.constant 0 : index
    %31 = vector.load %arg11[%c17, %c0_27] : memref<224x128xbf16, #tpu.memory_space<vmem>>, vector<188x128xbf16>
    %c18 = arith.constant 18 : index
    %c0_28 = arith.constant 0 : index
    %32 = vector.load %arg11[%c18, %c0_28] : memref<224x128xbf16, #tpu.memory_space<vmem>>, vector<188x128xbf16>
    %33 = tpu.concatenate %30, %31, %32 in 1 : vector<188x128xbf16>, vector<188x128xbf16>, vector<188x128xbf16> -> vector<188x384xbf16>
    %c1_29 = arith.constant 1 : index
    %c0_30 = arith.constant 0 : index
    %c0_31 = arith.constant 0 : index
    %34 = vector.load %arg4[%c1_29, %c0_30, %c0_31] : memref<3x384x128xbf16, #tpu.memory_space<vmem>>, vector<1x384x128xbf16>
    %35 = vector.shape_cast %34 : vector<1x384x128xbf16> to vector<384x128xbf16>
    %cst_32 = arith.constant dense<0.000000e+00> : vector<188x128xf32>
    %36 = tpu.matmul %33, %35, %cst_32 {dimension_numbers = #tpu.dot_dimension_numbers<[1], [0], [0], [1], [0, 0, 1, 1], [], []>} : vector<188x384xbf16>, vector<384x128xbf16>, vector<188x128xf32> -> vector<188x128xf32>
    %37 = arith.addf %29, %36 : vector<188x128xf32>
    %c32 = arith.constant 32 : index
    %c0_33 = arith.constant 0 : index
    %38 = vector.load %arg11[%c32, %c0_33] : memref<224x128xbf16, #tpu.memory_space<vmem>>, vector<188x128xbf16>
    %c33 = arith.constant 33 : index
    %c0_34 = arith.constant 0 : index
    %39 = vector.load %arg11[%c33, %c0_34] : memref<224x128xbf16, #tpu.memory_space<vmem>>, vector<188x128xbf16>
    %c34 = arith.constant 34 : index
    %c0_35 = arith.constant 0 : index
    %40 = vector.load %arg11[%c34, %c0_35] : memref<224x128xbf16, #tpu.memory_space<vmem>>, vector<188x128xbf16>
    %41 = tpu.concatenate %38, %39, %40 in 1 : vector<188x128xbf16>, vector<188x128xbf16>, vector<188x128xbf16> -> vector<188x384xbf16>
    %c2_36 = arith.constant 2 : index
    %c0_37 = arith.constant 0 : index
    %c0_38 = arith.constant 0 : index
    %42 = vector.load %arg4[%c2_36, %c0_37, %c0_38] : memref<3x384x128xbf16, #tpu.memory_space<vmem>>, vector<1x384x128xbf16>
    %43 = vector.shape_cast %42 : vector<1x384x128xbf16> to vector<384x128xbf16>
    %cst_39 = arith.constant dense<0.000000e+00> : vector<188x128xf32>
    %44 = tpu.matmul %41, %43, %cst_39 {dimension_numbers = #tpu.dot_dimension_numbers<[1], [0], [0], [1], [0, 0, 1, 1], [], []>} : vector<188x384xbf16>, vector<384x128xbf16>, vector<188x128xf32> -> vector<188x128xf32>
    %45 = arith.addf %37, %44 : vector<188x128xf32>
    %c0_40 = arith.constant 0 : index
    %c0_41 = arith.constant 0 : index
    %46 = vector.load %arg12[%c0_40, %c0_41] : memref<188x128xf32, #tpu.memory_space<vmem>>, vector<188x128xf32>
    tpu.vector_store %arg12[%c0_40, %c0_41], %45 {strides = array<i32>} : memref<188x128xf32, #tpu.memory_space<vmem>>, vector<188x128xf32>,
    %c0_42 = arith.constant 0 : index
    %c0_43 = arith.constant 0 : index
    %47 = vector.load %arg12[%c0_42, %c0_43] : memref<188x128xf32, #tpu.memory_space<vmem>>, vector<187x128xf32>
    %c1_44 = arith.constant 1 : index
    %c0_45 = arith.constant 0 : index
    %48 = vector.load %arg12[%c1_44, %c0_45] : memref<188x128xf32, #tpu.memory_space<vmem>>, vector<187x128xf32>
    %49 = arith.maximumf %47, %48 : vector<187x128xf32>
    %50 = vector.extract_strided_slice %49 {offsets = [0, 0], sizes = [171, 128], strides = [1, 1]} : vector<187x128xf32> to vector<171x128xf32>
    %51 = vector.extract_strided_slice %49 {offsets = [16, 0], sizes = [171, 128], strides = [1, 1]} : vector<187x128xf32> to vector<171x128xf32>
    %52 = arith.maximumf %50, %51 : vector<171x128xf32>
    %c0_46 = arith.constant 0 : index
    %c0_47 = arith.constant 0 : index
    %53 = vector.load %arg13[%c0_46, %c0_47] : memref<171x128xf32, #tpu.memory_space<vmem>>, vector<171x128xf32>
    tpu.vector_store %arg13[%c0_46, %c0_47], %52 {strides = array<i32>} : memref<171x128xf32, #tpu.memory_space<vmem>>, vector<171x128xf32>,
    %cst_48 = arith.constant 0.000000e+00 : bf16
    %54 = vector.broadcast %cst_48 : bf16 to vector<48x128xbf16>
    %c0_49 = arith.constant 0 : index
    %c0_50 = arith.constant 0 : index
    %55 = vector.load %arg14[%c0_49, %c0_50] : memref<48x128xbf16, #tpu.memory_space<vmem>>, vector<48x128xbf16>
    tpu.vector_store %arg14[%c0_49, %c0_50], %54 {strides = array<i32>} : memref<48x128xbf16, #tpu.memory_space<vmem>>, vector<48x128xbf16>,
    %c0_51 = arith.constant 0 : index
    %c0_52 = arith.constant 0 : index
    %56 = vector.load %arg5[%c0_51, %c0_52] : memref<1x128xf32, #tpu.memory_space<vmem>>, vector<1x128xf32>
    %c0_53 = arith.constant 0 : index
    %c0_54 = arith.constant 0 : index
    %57 = tpu.strided_load %arg13[%c0_53, %c0_54] {strides = array<i32: 2, 1>} : memref<171x128xf32, #tpu.memory_space<vmem>>, vector<6x128xf32>
    %58 = vector.broadcast %56 : vector<1x128xf32> to vector<6x128xf32>
    %59 = arith.addf %57, %58 : vector<6x128xf32>
    %cst_55 = arith.constant 0.000000e+00 : f32
    %60 = vector.broadcast %cst_55 : f32 to vector<6x128xf32>
    %61 = arith.maximumf %59, %60 : vector<6x128xf32>
    %62 = arith.truncf %61 : vector<6x128xf32> to vector<6x128xbf16>
    %c0_56 = arith.constant 0 : index
    %c0_57 = arith.constant 0 : index
    %63 = vector.load %arg14[%c0_56, %c0_57] : memref<48x128xbf16, #tpu.memory_space<vmem>>, vector<6x128xbf16>
    tpu.vector_store %arg14[%c0_56, %c0_57], %62 {strides = array<i32>} : memref<48x128xbf16, #tpu.memory_space<vmem>>, vector<6x128xbf16>,
    %c32_58 = arith.constant 32 : index
    %c0_59 = arith.constant 0 : index
    %64 = tpu.strided_load %arg13[%c32_58, %c0_59] {strides = array<i32: 2, 1>} : memref<171x128xf32, #tpu.memory_space<vmem>>, vector<6x128xf32>
    %65 = vector.broadcast %56 : vector<1x128xf32> to vector<6x128xf32>
    %66 = arith.addf %64, %65 : vector<6x128xf32>
    %cst_60 = arith.constant 0.000000e+00 : f32
    %67 = vector.broadcast %cst_60 : f32 to vector<6x128xf32>
    %68 = arith.maximumf %66, %67 : vector<6x128xf32>
    %69 = arith.truncf %68 : vector<6x128xf32> to vector<6x128xbf16>
    %c8 = arith.constant 8 : index
    %c0_61 = arith.constant 0 : index
    %70 = vector.load %arg14[%c8, %c0_61] : memref<48x128xbf16, #tpu.memory_space<vmem>>, vector<6x128xbf16>
    tpu.vector_store %arg14[%c8, %c0_61], %69 {strides = array<i32>} : memref<48x128xbf16, #tpu.memory_space<vmem>>, vector<6x128xbf16>,
    %c64 = arith.constant 64 : index
    %c0_62 = arith.constant 0 : index
    %71 = tpu.strided_load %arg13[%c64, %c0_62] {strides = array<i32: 2, 1>} : memref<171x128xf32, #tpu.memory_space<vmem>>, vector<6x128xf32>
    %72 = vector.broadcast %56 : vector<1x128xf32> to vector<6x128xf32>
    %73 = arith.addf %71, %72 : vector<6x128xf32>
    %cst_63 = arith.constant 0.000000e+00 : f32
    %74 = vector.broadcast %cst_63 : f32 to vector<6x128xf32>
    %75 = arith.maximumf %73, %74 : vector<6x128xf32>
    %76 = arith.truncf %75 : vector<6x128xf32> to vector<6x128xbf16>
    %c16_64 = arith.constant 16 : index
    %c0_65 = arith.constant 0 : index
    %77 = vector.load %arg14[%c16_64, %c0_65] : memref<48x128xbf16, #tpu.memory_space<vmem>>, vector<6x128xbf16>
    tpu.vector_store %arg14[%c16_64, %c0_65], %76 {strides = array<i32>} : memref<48x128xbf16, #tpu.memory_space<vmem>>, vector<6x128xbf16>,
    %c96 = arith.constant 96 : index
    %c0_66 = arith.constant 0 : index
    %78 = tpu.strided_load %arg13[%c96, %c0_66] {strides = array<i32: 2, 1>} : memref<171x128xf32, #tpu.memory_space<vmem>>, vector<6x128xf32>
    %79 = vector.broadcast %56 : vector<1x128xf32> to vector<6x128xf32>
    %80 = arith.addf %78, %79 : vector<6x128xf32>
    %cst_67 = arith.constant 0.000000e+00 : f32
    %81 = vector.broadcast %cst_67 : f32 to vector<6x128xf32>
    %82 = arith.maximumf %80, %81 : vector<6x128xf32>
    %83 = arith.truncf %82 : vector<6x128xf32> to vector<6x128xbf16>
    %c24 = arith.constant 24 : index
    %c0_68 = arith.constant 0 : index
    %84 = vector.load %arg14[%c24, %c0_68] : memref<48x128xbf16, #tpu.memory_space<vmem>>, vector<6x128xbf16>
    tpu.vector_store %arg14[%c24, %c0_68], %83 {strides = array<i32>} : memref<48x128xbf16, #tpu.memory_space<vmem>>, vector<6x128xbf16>,
    %c128 = arith.constant 128 : index
    %c0_69 = arith.constant 0 : index
    %85 = tpu.strided_load %arg13[%c128, %c0_69] {strides = array<i32: 2, 1>} : memref<171x128xf32, #tpu.memory_space<vmem>>, vector<6x128xf32>
    %86 = vector.broadcast %56 : vector<1x128xf32> to vector<6x128xf32>
    %87 = arith.addf %85, %86 : vector<6x128xf32>
    %cst_70 = arith.constant 0.000000e+00 : f32
    %88 = vector.broadcast %cst_70 : f32 to vector<6x128xf32>
    %89 = arith.maximumf %87, %88 : vector<6x128xf32>
    %90 = arith.truncf %89 : vector<6x128xf32> to vector<6x128xbf16>
    %c32_71 = arith.constant 32 : index
    %c0_72 = arith.constant 0 : index
    %91 = vector.load %arg14[%c32_71, %c0_72] : memref<48x128xbf16, #tpu.memory_space<vmem>>, vector<6x128xbf16>
    tpu.vector_store %arg14[%c32_71, %c0_72], %90 {strides = array<i32>} : memref<48x128xbf16, #tpu.memory_space<vmem>>, vector<6x128xbf16>,
    %c160 = arith.constant 160 : index
    %c0_73 = arith.constant 0 : index
    %92 = tpu.strided_load %arg13[%c160, %c0_73] {strides = array<i32: 2, 1>} : memref<171x128xf32, #tpu.memory_space<vmem>>, vector<6x128xf32>
    %93 = vector.broadcast %56 : vector<1x128xf32> to vector<6x128xf32>
    %94 = arith.addf %92, %93 : vector<6x128xf32>
    %cst_74 = arith.constant 0.000000e+00 : f32
    %95 = vector.broadcast %cst_74 : f32 to vector<6x128xf32>
    %96 = arith.maximumf %94, %95 : vector<6x128xf32>
    %97 = arith.truncf %96 : vector<6x128xf32> to vector<6x128xbf16>
    %c40 = arith.constant 40 : index
    %c0_75 = arith.constant 0 : index
    %98 = vector.load %arg14[%c40, %c0_75] : memref<48x128xbf16, #tpu.memory_space<vmem>>, vector<6x128xbf16>
    tpu.vector_store %arg14[%c40, %c0_75], %97 {strides = array<i32>} : memref<48x128xbf16, #tpu.memory_space<vmem>>, vector<6x128xbf16>,
    %c0_76 = arith.constant 0 : index
    %c0_77 = arith.constant 0 : index
    %99 = vector.load %arg14[%c0_76, %c0_77] : memref<48x128xbf16, #tpu.memory_space<vmem>>, vector<28x128xbf16>
    %c1_78 = arith.constant 1 : index
    %c0_79 = arith.constant 0 : index
    %100 = vector.load %arg14[%c1_78, %c0_79] : memref<48x128xbf16, #tpu.memory_space<vmem>>, vector<28x128xbf16>
    %c2_80 = arith.constant 2 : index
    %c0_81 = arith.constant 0 : index
    %101 = vector.load %arg14[%c2_80, %c0_81] : memref<48x128xbf16, #tpu.memory_space<vmem>>, vector<28x128xbf16>
    %c8_82 = arith.constant 8 : index
    %c0_83 = arith.constant 0 : index
    %102 = vector.load %arg14[%c8_82, %c0_83] : memref<48x128xbf16, #tpu.memory_space<vmem>>, vector<28x128xbf16>
    %c9 = arith.constant 9 : index
    %c0_84 = arith.constant 0 : index
    %103 = vector.load %arg14[%c9, %c0_84] : memref<48x128xbf16, #tpu.memory_space<vmem>>, vector<28x128xbf16>
    %c10 = arith.constant 10 : index
    %c0_85 = arith.constant 0 : index
    %104 = vector.load %arg14[%c10, %c0_85] : memref<48x128xbf16, #tpu.memory_space<vmem>>, vector<28x128xbf16>
    %c16_86 = arith.constant 16 : index
    %c0_87 = arith.constant 0 : index
    %105 = vector.load %arg14[%c16_86, %c0_87] : memref<48x128xbf16, #tpu.memory_space<vmem>>, vector<28x128xbf16>
    %c17_88 = arith.constant 17 : index
    %c0_89 = arith.constant 0 : index
    %106 = vector.load %arg14[%c17_88, %c0_89] : memref<48x128xbf16, #tpu.memory_space<vmem>>, vector<28x128xbf16>
    %c18_90 = arith.constant 18 : index
    %c0_91 = arith.constant 0 : index
    %107 = vector.load %arg14[%c18_90, %c0_91] : memref<48x128xbf16, #tpu.memory_space<vmem>>, vector<28x128xbf16>
    %108 = tpu.concatenate %99, %100, %101, %102, %103, %104, %105, %106, %107 in 1 : vector<28x128xbf16>, vector<28x128xbf16>, vector<28x128xbf16>, vector<28x128xbf16>, vector<28x128xbf16>, vector<28x128xbf16>, vector<28x128xbf16>, vector<28x128xbf16>, vector<28x128xbf16> -> vector<28x1152xbf16>
    %c0_92 = arith.constant 0 : index
    %c0_93 = arith.constant 0 : index
    %109 = vector.load %arg6[%c0_92, %c0_93] : memref<1152x128xbf16, #tpu.memory_space<vmem>>, vector<1152x128xbf16>
    %cst_94 = arith.constant dense<0.000000e+00> : vector<28x128xf32>
    %110 = tpu.matmul %108, %109, %cst_94 {dimension_numbers = #tpu.dot_dimension_numbers<[1], [0], [0], [1], [0, 0, 1, 1], [], []>} : vector<28x1152xbf16>, vector<1152x128xbf16>, vector<28x128xf32> -> vector<28x128xf32>
    %c0_95 = arith.constant 0 : index
    %c0_96 = arith.constant 0 : index
    %111 = vector.load %arg7[%c0_95, %c0_96] : memref<1x128xf32, #tpu.memory_space<vmem>>, vector<1x128xf32>
    %112 = vector.broadcast %111 : vector<1x128xf32> to vector<28x128xf32>
    %113 = arith.addf %110, %112 : vector<28x128xf32>
    %c0_97 = arith.constant 0 : index
    %c0_98 = arith.constant 0 : index
    %114 = vector.load %arg15[%c0_97, %c0_98] : memref<28x128xf32, #tpu.memory_space<vmem>>, vector<28x128xf32>
    tpu.vector_store %arg15[%c0_97, %c0_98], %113 {strides = array<i32>} : memref<28x128xf32, #tpu.memory_space<vmem>>, vector<28x128xf32>,
    %c0_99 = arith.constant 0 : index
    %c0_100 = arith.constant 0 : index
    %115 = vector.load %arg15[%c0_99, %c0_100] : memref<28x128xf32, #tpu.memory_space<vmem>>, vector<1x128xf32>
    %c1_101 = arith.constant 1 : index
    %c0_102 = arith.constant 0 : index
    %116 = vector.load %arg15[%c1_101, %c0_102] : memref<28x128xf32, #tpu.memory_space<vmem>>, vector<1x128xf32>
    %117 = arith.maximumf %115, %116 : vector<1x128xf32>
    %c8_103 = arith.constant 8 : index
    %c0_104 = arith.constant 0 : index
    %118 = vector.load %arg15[%c8_103, %c0_104] : memref<28x128xf32, #tpu.memory_space<vmem>>, vector<1x128xf32>
    %c9_105 = arith.constant 9 : index
    %c0_106 = arith.constant 0 : index
    %119 = vector.load %arg15[%c9_105, %c0_106] : memref<28x128xf32, #tpu.memory_space<vmem>>, vector<1x128xf32>
    %120 = arith.maximumf %118, %119 : vector<1x128xf32>
    %121 = arith.maximumf %117, %120 : vector<1x128xf32>
    %cst_107 = arith.constant 0.000000e+00 : f32
    %122 = vector.broadcast %cst_107 : f32 to vector<1x128xf32>
    %123 = arith.maximumf %121, %122 : vector<1x128xf32>
    %c2_108 = arith.constant 2 : index
    %c0_109 = arith.constant 0 : index
    %124 = vector.load %arg15[%c2_108, %c0_109] : memref<28x128xf32, #tpu.memory_space<vmem>>, vector<1x128xf32>
    %c3 = arith.constant 3 : index
    %c0_110 = arith.constant 0 : index
    %125 = vector.load %arg15[%c3, %c0_110] : memref<28x128xf32, #tpu.memory_space<vmem>>, vector<1x128xf32>
    %126 = arith.maximumf %124, %125 : vector<1x128xf32>
    %c10_111 = arith.constant 10 : index
    %c0_112 = arith.constant 0 : index
    %127 = vector.load %arg15[%c10_111, %c0_112] : memref<28x128xf32, #tpu.memory_space<vmem>>, vector<1x128xf32>
    %c11 = arith.constant 11 : index
    %c0_113 = arith.constant 0 : index
    %128 = vector.load %arg15[%c11, %c0_113] : memref<28x128xf32, #tpu.memory_space<vmem>>, vector<1x128xf32>
    %129 = arith.maximumf %127, %128 : vector<1x128xf32>
    %130 = arith.maximumf %126, %129 : vector<1x128xf32>
    %cst_114 = arith.constant 0.000000e+00 : f32
    %131 = vector.broadcast %cst_114 : f32 to vector<1x128xf32>
    %132 = arith.maximumf %130, %131 : vector<1x128xf32>
    %133 = arith.addf %123, %132 : vector<1x128xf32>
    %c16_115 = arith.constant 16 : index
    %c0_116 = arith.constant 0 : index
    %134 = vector.load %arg15[%c16_115, %c0_116] : memref<28x128xf32, #tpu.memory_space<vmem>>, vector<1x128xf32>
    %c17_117 = arith.constant 17 : index
    %c0_118 = arith.constant 0 : index
    %135 = vector.load %arg15[%c17_117, %c0_118] : memref<28x128xf32, #tpu.memory_space<vmem>>, vector<1x128xf32>
    %136 = arith.maximumf %134, %135 : vector<1x128xf32>
    %c24_119 = arith.constant 24 : index
    %c0_120 = arith.constant 0 : index
    %137 = vector.load %arg15[%c24_119, %c0_120] : memref<28x128xf32, #tpu.memory_space<vmem>>, vector<1x128xf32>
    %c25 = arith.constant 25 : index
    %c0_121 = arith.constant 0 : index
    %138 = vector.load %arg15[%c25, %c0_121] : memref<28x128xf32, #tpu.memory_space<vmem>>, vector<1x128xf32>
    %139 = arith.maximumf %137, %138 : vector<1x128xf32>
    %140 = arith.maximumf %136, %139 : vector<1x128xf32>
    %cst_122 = arith.constant 0.000000e+00 : f32
    %141 = vector.broadcast %cst_122 : f32 to vector<1x128xf32>
    %142 = arith.maximumf %140, %141 : vector<1x128xf32>
    %143 = arith.addf %133, %142 : vector<1x128xf32>
    %c18_123 = arith.constant 18 : index
    %c0_124 = arith.constant 0 : index
    %144 = vector.load %arg15[%c18_123, %c0_124] : memref<28x128xf32, #tpu.memory_space<vmem>>, vector<1x128xf32>
    %c19 = arith.constant 19 : index
    %c0_125 = arith.constant 0 : index
    %145 = vector.load %arg15[%c19, %c0_125] : memref<28x128xf32, #tpu.memory_space<vmem>>, vector<1x128xf32>
    %146 = arith.maximumf %144, %145 : vector<1x128xf32>
    %c26 = arith.constant 26 : index
    %c0_126 = arith.constant 0 : index
    %147 = vector.load %arg15[%c26, %c0_126] : memref<28x128xf32, #tpu.memory_space<vmem>>, vector<1x128xf32>
    %c27 = arith.constant 27 : index
    %c0_127 = arith.constant 0 : index
    %148 = vector.load %arg15[%c27, %c0_127] : memref<28x128xf32, #tpu.memory_space<vmem>>, vector<1x128xf32>
    %149 = arith.maximumf %147, %148 : vector<1x128xf32>
    %150 = arith.maximumf %146, %149 : vector<1x128xf32>
    %cst_128 = arith.constant 0.000000e+00 : f32
    %151 = vector.broadcast %cst_128 : f32 to vector<1x128xf32>
    %152 = arith.maximumf %150, %151 : vector<1x128xf32>
    %153 = arith.addf %143, %152 : vector<1x128xf32>
    %cst_129 = arith.constant 2.500000e-01 : f32
    %154 = vector.broadcast %cst_129 : f32 to vector<1x128xf32>
    %155 = arith.mulf %153, %154 : vector<1x128xf32>
    %156 = arith.truncf %155 : vector<1x128xf32> to vector<1x128xbf16>
    %c0_130 = arith.constant 0 : index
    %c0_131 = arith.constant 0 : index
    %157 = vector.load %arg8[%c0_130, %c0_131] : memref<128x10xbf16, #tpu.memory_space<vmem>>, vector<128x10xbf16>
    %cst_132 = arith.constant dense<0.000000e+00> : vector<1x10xf32>
    %158 = tpu.matmul %156, %157, %cst_132 {dimension_numbers = #tpu.dot_dimension_numbers<[1], [0], [0], [1], [0, 0, 1, 1], [], []>} : vector<1x128xbf16>, vector<128x10xbf16>, vector<1x10xf32> -> vector<1x10xf32>
    %c0_133 = arith.constant 0 : index
    %c0_134 = arith.constant 0 : index
    %159 = vector.load %arg9[%c0_133, %c0_134] : memref<1x10xf32, #tpu.memory_space<vmem>>, vector<1x10xf32>
    %160 = arith.addf %158, %159 : vector<1x10xf32>
    %c0_135 = arith.constant 0 : index
    %c0_136 = arith.constant 0 : index
    %c0_137 = arith.constant 0 : index
    %161 = vector.load %arg10[%c0_135, %c0_136, %c0_137] : memref<1x1x10xf32, #tpu.memory_space<vmem>>, vector<1x1x10xf32>
    %162 = vector.shape_cast %161 : vector<1x1x10xf32> to vector<1x10xf32>
    %163 = vector.shape_cast %160 : vector<1x10xf32> to vector<1x1x10xf32>
    tpu.vector_store %arg10[%c0_135, %c0_136, %c0_137], %163 {strides = array<i32>} : memref<1x1x10xf32, #tpu.memory_space<vmem>>, vector<1x1x10xf32>,
    return
  }
  func.func @transform_0(%arg0: i32) -> (i32, i32, i32) {
    %c0_i32 = arith.constant 0 : i32
    %c0_i32_0 = arith.constant 0 : i32
    %c0_i32_1 = arith.constant 0 : i32
    return %arg0, %c0_i32, %c0_i32_0 : i32, i32, i32
  }
  func.func @transform_1(%arg0: i32) -> (i32, i32) {
    %c0_i32 = arith.constant 0 : i32
    %c0_i32_0 = arith.constant 0 : i32
    %c0_i32_1 = arith.constant 0 : i32
    return %c0_i32, %c0_i32_0 : i32, i32
  }
  func.func @transform_2(%arg0: i32) -> (i32, i32) {
    %c0_i32 = arith.constant 0 : i32
    %c0_i32_0 = arith.constant 0 : i32
    %c0_i32_1 = arith.constant 0 : i32
    return %c0_i32, %c0_i32_0 : i32, i32
  }
  func.func @transform_3(%arg0: i32) -> (i32, i32, i32) {
    %c0_i32 = arith.constant 0 : i32
    %c0_i32_0 = arith.constant 0 : i32
    %c0_i32_1 = arith.constant 0 : i32
    %c0_i32_2 = arith.constant 0 : i32
    return %c0_i32, %c0_i32_0, %c0_i32_1 : i32, i32, i32
  }
  func.func @transform_4(%arg0: i32) -> (i32, i32) {
    %c0_i32 = arith.constant 0 : i32
    %c0_i32_0 = arith.constant 0 : i32
    %c0_i32_1 = arith.constant 0 : i32
    return %c0_i32, %c0_i32_0 : i32, i32
  }
  func.func @transform_5(%arg0: i32) -> (i32, i32) {
    %c0_i32 = arith.constant 0 : i32
    %c0_i32_0 = arith.constant 0 : i32
    %c0_i32_1 = arith.constant 0 : i32
    return %c0_i32, %c0_i32_0 : i32, i32
  }
  func.func @transform_6(%arg0: i32) -> (i32, i32) {
    %c0_i32 = arith.constant 0 : i32
    %c0_i32_0 = arith.constant 0 : i32
    %c0_i32_1 = arith.constant 0 : i32
    return %c0_i32, %c0_i32_0 : i32, i32
  }
  func.func @transform_7(%arg0: i32) -> (i32, i32) {
    %c0_i32 = arith.constant 0 : i32
    %c0_i32_0 = arith.constant 0 : i32
    %c0_i32_1 = arith.constant 0 : i32
    return %c0_i32, %c0_i32_0 : i32, i32
  }
  func.func @transform_8(%arg0: i32) -> (i32, i32) {
    %c0_i32 = arith.constant 0 : i32
    %c0_i32_0 = arith.constant 0 : i32
    %c0_i32_1 = arith.constant 0 : i32
    return %c0_i32, %c0_i32_0 : i32, i32
  }
  func.func @transform_9(%arg0: i32) -> (i32, i32, i32) {
    %c0_i32 = arith.constant 0 : i32
    %c0_i32_0 = arith.constant 0 : i32
    %c0_i32_1 = arith.constant 0 : i32
    return %arg0, %c0_i32, %c0_i32_0 : i32, i32, i32
  }
}

</mosaic_0001>

<llo_original>
// kernel: net_forward.1
$region0: #{net_forward.1}
  #allocation0 [shape = 'u32[]', space=smem, size = 0x4, offset = 0x4, fixed_abs, tag = 'smem constant byte address 0x4 - core index']
  #allocation1 [shape = 'u32[72,128]{1,0:T(1,128)}', space=vmem, size = 0x9000, scoped, tag = 'internal scratch']
  #allocation2 [shape = 'bf16[224,128]{1,0:T(8,128)(2,1)}', space=vmem, size = 0xe000, scoped, tag = 'scratch operand']
  #allocation3 [shape = 'f32[188,128]{1,0:T(8,128)}', space=vmem, size = 0x18000, scoped, tag = 'scratch operand']
  #allocation4 [shape = 'f32[171,128]{1,0:T(8,128)}', space=vmem, size = 0x16000, scoped, tag = 'scratch operand']
  #allocation5 [shape = 'bf16[48,128]{1,0:T(8,128)(2,1)}', space=vmem, size = 0x3000, scoped, tag = 'scratch operand']
  #allocation6 [shape = 'f32[28,128]{1,0:T(8,128)}', space=vmem, size = 0x4000, scoped, tag = 'scratch operand']
  %s0 = inlined_call_operand.vmem [shape: bf16[2,896,128], index: 0, kind: input, shape index: {}]
  %s1 = inlined_call_operand.vmem [shape: bf16[128,128], index: 1, kind: input, shape index: {}]
  %s2 = inlined_call_operand.vmem [shape: f32[1,128], index: 2, kind: input, shape index: {}]
  %s3 = inlined_call_operand.vmem [shape: bf16[3,384,128], index: 3, kind: input, shape index: {}]
  %s4 = inlined_call_operand.vmem [shape: f32[1,128], index: 4, kind: input, shape index: {}]
  %s5 = inlined_call_operand.vmem [shape: bf16[1152,128], index: 5, kind: input, shape index: {}]
  %s6 = inlined_call_operand.vmem [shape: f32[1,128], index: 6, kind: input, shape index: {}]
  %s7 = inlined_call_operand.vmem [shape: bf16[128,10], index: 7, kind: input, shape index: {}]
  %s8 = inlined_call_operand.vmem [shape: f32[1,10], index: 8, kind: input, shape index: {}]
  %s9 = inlined_call_operand.hbm [shape: f32[2,1,10], index: 9, kind: output, shape index: {}]
  %s10 = sld [smem:[#allocation0]]
  $region69: #{net_forward.1} parent=0
    _
  %s12 = ssub.s32 1, %s10
  %s13 = scalar_select 0, %s12, %s10
  $region1: #{net_forward.1} parent=0
    #allocation7 [shape = 'u8[1024]{0}', space=vmem, size = 0x400, scoped, tag = 'output window, operand 0']
    #allocation8 [shape = 's32[2]{0}', space=sflag, size = 0x8, scoped, tag = 'scoped memory for net_forward.1']
    %14 = vsyncpa [#allocation8], 0
    %s15 = scalar_lea.sflag [#allocation8], 1
    %16 = vsyncpa %s15, 0
    loop: start=0, step=1, limit=4
    $region2: #{net_forward.1} parent=1 // loop_pre_header
      _
    $region3: #{net_forward.1} parent=1 // loop_header
      %s18 = sphi 0, %s22
      %p19 = scmp.ge.s32.totalorder %s18, 4
      %s28 = sphi 0, %s30
      %s31 = sphi 0, %s28
      %s32 = sphi 0, %s31
      %s48 = sphi 0, %s32
      %s52 = sphi 0, %s52
      %s54 = sphi 0, %s52
      %s55 = sphi 0, %s54
      %s69 = sphi 0, %s55
      %s73 = sphi 0, %s73
      %s75 = sphi 0, %s73
      %s76 = sphi 0, %s75
      %s90 = sphi 0, %s76
      %s94 = sphi 0, %s94
      %s96 = sphi 0, %s94
      %s97 = sphi 0, %s96
      %s111 = sphi 0, %s97
      %s115 = sphi 0, %s115
      %s117 = sphi 0, %s115
      %s118 = sphi 0, %s117
      %s132 = sphi 0, %s118
      %s136 = sphi 0, %s136
      %s138 = sphi 0, %s136
      %s139 = sphi 0, %s138
      %s153 = sphi 0, %s139
      %s157 = sphi 0, %s157
      %s159 = sphi 0, %s157
      %s160 = sphi 0, %s159
      %s174 = sphi 0, %s160
      %s178 = sphi 0, %s178
      %s180 = sphi 0, %s178
      %s181 = sphi 0, %s180
      %s195 = sphi 0, %s181
      %s199 = sphi 0, %s199
      %s201 = sphi 0, %s199
      %s202 = sphi 0, %s201
      %s216 = sphi 0, %s202
      %s222 = sphi 0, %s224
      %s225 = sphi 0, %s222
      %s226 = sphi 0, %s225
      %s242 = sphi 0, %s226
    $region4: #{net_forward.1} parent=1 // loop_header_branch
      %21 = sbr.rel (%p19) target = $region8
    $region5: #{net_forward.1} parent=1 // loop_body
      %s23 = ssub.s32 %s18, 1
      %s24 = ssub.s32 %s18, 2
      %s25 = sadd.s32 %s18, 1
      %s26 = ssub.s32 %s18, %s25
      %p27 = scmp.eq.s32.totalorder %s26, 0
      %s29 = sadd.s32 %s28, 1
      %s30 = scalar_select %p27, %s28, %s29
      %p33 = pneg %p27
      %p34 = scmp.eq.s32.totalorder %s18, 1
      %p35 = por %p33, %p34
      %p36 = scmp.ne.s32.totalorder %s28, %s31
      %p37 = scmp.eq.s32.totalorder %s18, 0
      %p38 = por %p36, %p37
      %p39 = scmp.ne.s32.totalorder %s28, %s31
      %p40 = scmp.eq.s32.totalorder %s23, 1
      %p41 = por %p39, %p40
      %p42 = scmp.ne.s32.totalorder %s31, %s32
      %p43 = scmp.eq.s32.totalorder %s23, 0
      %p44 = por %p42, %p43
      %p45 = scmp.ne.s32.totalorder %s31, %s32
      %p46 = scmp.eq.s32.totalorder %s24, 1
      %p47 = por %p45, %p46
      %p49 = scmp.ne.s32.totalorder %s32, %s48
      %p50 = scmp.eq.s32.totalorder %s24, 0
      %p51 = por %p49, %p50
      %s53 = sadd.s32 %s52, 1
      %p56 = scmp.eq.s32.totalorder %s18, 1
      %p57 = scmp.ne.s32.totalorder %s52, %s54
      %p58 = scmp.eq.s32.totalorder %s18, 0
      %p59 = por %p57, %p58
      %p60 = scmp.ne.s32.totalorder %s52, %s54
      %p61 = scmp.eq.s32.totalorder %s23, 1
      %p62 = por %p60, %p61
      %p63 = scmp.ne.s32.totalorder %s54, %s55
      %p64 = scmp.eq.s32.totalorder %s23, 0
      %p65 = por %p63, %p64
      %p66 = scmp.ne.s32.totalorder %s54, %s55
      %p67 = scmp.eq.s32.totalorder %s24, 1
      %p68 = por %p66, %p67
      %p70 = scmp.ne.s32.totalorder %s55, %s69
      %p71 = scmp.eq.s32.totalorder %s24, 0
      %p72 = por %p70, %p71
      %s74 = sadd.s32 %s73, 1
      %p77 = scmp.eq.s32.totalorder %s18, 1
      %p78 = scmp.ne.s32.totalorder %s73, %s75
      %p79 = scmp.eq.s32.totalorder %s18, 0
      %p80 = por %p78, %p79
      %p81 = scmp.ne.s32.totalorder %s73, %s75
      %p82 = scmp.eq.s32.totalorder %s23, 1
      %p83 = por %p81, %p82
      %p84 = scmp.ne.s32.totalorder %s75, %s76
      %p85 = scmp.eq.s32.totalorder %s23, 0
      %p86 = por %p84, %p85
      %p87 = scmp.ne.s32.totalorder %s75, %s76
      %p88 = scmp.eq.s32.totalorder %s24, 1
      %p89 = por %p87, %p88
      %p91 = scmp.ne.s32.totalorder %s76, %s90
      %p92 = scmp.eq.s32.totalorder %s24, 0
      %p93 = por %p91, %p92
      %s95 = sadd.s32 %s94, 1
      %p98 = scmp.eq.s32.totalorder %s18, 1
      %p99 = scmp.ne.s32.totalorder %s94, %s96
      %p100 = scmp.eq.s32.totalorder %s18, 0
      %p101 = por %p99, %p100
      %p102 = scmp.ne.s32.totalorder %s94, %s96
      %p103 = scmp.eq.s32.totalorder %s23, 1
      %p104 = por %p102, %p103
      %p105 = scmp.ne.s32.totalorder %s96, %s97
      %p106 = scmp.eq.s32.totalorder %s23, 0
      %p107 = por %p105, %p106
      %p108 = scmp.ne.s32.totalorder %s96, %s97
      %p109 = scmp.eq.s32.totalorder %s24, 1
      %p110 = por %p108, %p109
      %p112 = scmp.ne.s32.totalorder %s97, %s111
      %p113 = scmp.eq.s32.totalorder %s24, 0
      %p114 = por %p112, %p113
      %s116 = sadd.s32 %s115, 1
      %p119 = scmp.eq.s32.totalorder %s18, 1
      %p120 = scmp.ne.s32.totalorder %s115, %s117
      %p121 = scmp.eq.s32.totalorder %s18, 0
      %p122 = por %p120, %p121
      %p123 = scmp.ne.s32.totalorder %s115, %s117
      %p124 = scmp.eq.s32.totalorder %s23, 1
      %p125 = por %p123, %p124
      %p126 = scmp.ne.s32.totalorder %s117, %s118
      %p127 = scmp.eq.s32.totalorder %s23, 0
      %p128 = por %p126, %p127
      %p129 = scmp.ne.s32.totalorder %s117, %s118
      %p130 = scmp.eq.s32.totalorder %s24, 1
      %p131 = por %p129, %p130
      %p133 = scmp.ne.s32.totalorder %s118, %s132
      %p134 = scmp.eq.s32.totalorder %s24, 0
      %p135 = por %p133, %p134
      %s137 = sadd.s32 %s136, 1
      %p140 = scmp.eq.s32.totalorder %s18, 1
      %p141 = scmp.ne.s32.totalorder %s136, %s138
      %p142 = scmp.eq.s32.totalorder %s18, 0
      %p143 = por %p141, %p142
      %p144 = scmp.ne.s32.totalorder %s136, %s138
      %p145 = scmp.eq.s32.totalorder %s23, 1
      %p146 = por %p144, %p145
      %p147 = scmp.ne.s32.totalorder %s138, %s139
      %p148 = scmp.eq.s32.totalorder %s23, 0
      %p149 = por %p147, %p148
      %p150 = scmp.ne.s32.totalorder %s138, %s139
      %p151 = scmp.eq.s32.totalorder %s24, 1
      %p152 = por %p150, %p151
      %p154 = scmp.ne.s32.totalorder %s139, %s153
      %p155 = scmp.eq.s32.totalorder %s24, 0
      %p156 = por %p154, %p155
      %s158 = sadd.s32 %s157, 1
      %p161 = scmp.eq.s32.totalorder %s18, 1
      %p162 = scmp.ne.s32.totalorder %s157, %s159
      %p163 = scmp.eq.s32.totalorder %s18, 0
      %p164 = por %p162, %p163
      %p165 = scmp.ne.s32.totalorder %s157, %s159
      %p166 = scmp.eq.s32.totalorder %s23, 1
      %p167 = por %p165, %p166
      %p168 = scmp.ne.s32.totalorder %s159, %s160
      %p169 = scmp.eq.s32.totalorder %s23, 0
      %p170 = por %p168, %p169
      %p171 = scmp.ne.s32.totalorder %s159, %s160
      %p172 = scmp.eq.s32.totalorder %s24, 1
      %p173 = por %p171, %p172
      %p175 = scmp.ne.s32.totalorder %s160, %s174
      %p176 = scmp.eq.s32.totalorder %s24, 0
      %p177 = por %p175, %p176
      %s179 = sadd.s32 %s178, 1
      %p182 = scmp.eq.s32.totalorder %s18, 1
      %p183 = scmp.ne.s32.totalorder %s178, %s180
      %p184 = scmp.eq.s32.totalorder %s18, 0
      %p185 = por %p183, %p184
      %p186 = scmp.ne.s32.totalorder %s178, %s180
      %p187 = scmp.eq.s32.totalorder %s23, 1
      %p188 = por %p186, %p187
      %p189 = scmp.ne.s32.totalorder %s180, %s181
      %p190 = scmp.eq.s32.totalorder %s23, 0
      %p191 = por %p189, %p190
      %p192 = scmp.ne.s32.totalorder %s180, %s181
      %p193 = scmp.eq.s32.totalorder %s24, 1
      %p194 = por %p192, %p193
      %p196 = scmp.ne.s32.totalorder %s181, %s195
      %p197 = scmp.eq.s32.totalorder %s24, 0
      %p198 = por %p196, %p197
      %s200 = sadd.s32 %s199, 1
      %p203 = scmp.eq.s32.totalorder %s18, 1
      %p204 = scmp.ne.s32.totalorder %s199, %s201
      %p205 = scmp.eq.s32.totalorder %s18, 0
      %p206 = por %p204, %p205
      %p207 = scmp.ne.s32.totalorder %s199, %s201
      %p208 = scmp.eq.s32.totalorder %s23, 1
      %p209 = por %p207, %p208
      %p210 = scmp.ne.s32.totalorder %s201, %s202
      %p211 = scmp.eq.s32.totalorder %s23, 0
      %p212 = por %p210, %p211
      %p213 = scmp.ne.s32.totalorder %s201, %s202
      %p214 = scmp.eq.s32.totalorder %s24, 1
      %p215 = por %p213, %p214
      %p217 = scmp.ne.s32.totalorder %s202, %s216
      %p218 = scmp.eq.s32.totalorder %s24, 0
      %p219 = por %p217, %p218
      %s220 = ssub.s32 %s18, %s25
      %p221 = scmp.eq.s32.totalorder %s220, 0
      %s223 = sadd.s32 %s222, 1
      %s224 = scalar_select %p221, %s222, %s223
      %p227 = pneg %p221
      %p228 = scmp.eq.s32.totalorder %s18, 1
      %p229 = por %p227, %p228
      %p230 = scmp.ne.s32.totalorder %s222, %s225
      %p231 = scmp.eq.s32.totalorder %s18, 0
      %p232 = por %p230, %p231
      %p233 = scmp.ne.s32.totalorder %s222, %s225
      %p234 = scmp.eq.s32.totalorder %s23, 1
      %p235 = por %p233, %p234
      %p236 = scmp.ne.s32.totalorder %s225, %s226
      %p237 = scmp.eq.s32.totalorder %s23, 0
      %p238 = por %p236, %p237
      %p239 = scmp.ne.s32.totalorder %s225, %s226
      %p240 = scmp.eq.s32.totalorder %s24, 1
      %p241 = por %p239, %p240
      %p243 = scmp.ne.s32.totalorder %s226, %s242
      %p244 = scmp.eq.s32.totalorder %s24, 0
      %p245 = por %p243, %p244
      %p246 = scmp.le.s32.totalorder 1, %s18
      %p247 = scmp.lt.s32.totalorder %s18, 3
      %p248 = pnand %p246, %p247
      %p249 = pneg %p248
      // Predicated region
      $region9: #{net_forward.1} parent=5 // pred_check
        _
      $region10: #{net_forward.1} parent=5 // pred_check_branch
        %251 = sbr.rel (%p248) target = $region12
      $region11: #{net_forward.1} parent=5 // pred_region
        %s252 = ssub.s32 %s18, 1
        // Predicated region
        $region13: #{net_forward.1} parent=11 // pred_check
          %p253 = pneg %p65
        $region14: #{net_forward.1} parent=11 // pred_check_branch
          %255 = sbr.rel (%p253) target = $region16
        $region15: #{net_forward.1} parent=11 // pred_region
          _
        $region16: #{net_forward.1} parent=11 // pred_fallthru
          _
        // Predicated region
        $region17: #{net_forward.1} parent=11 // pred_check
          %p256 = pneg %p86
        $region18: #{net_forward.1} parent=11 // pred_check_branch
          %258 = sbr.rel (%p256) target = $region20
        $region19: #{net_forward.1} parent=11 // pred_region
          _
        $region20: #{net_forward.1} parent=11 // pred_fallthru
          _
        // Predicated region
        $region21: #{net_forward.1} parent=11 // pred_check
          %p259 = pneg %p107
        $region22: #{net_forward.1} parent=11 // pred_check_branch
          %261 = sbr.rel (%p259) target = $region24
        $region23: #{net_forward.1} parent=11 // pred_region
          _
        $region24: #{net_forward.1} parent=11 // pred_fallthru
          _
        // Predicated region
        $region25: #{net_forward.1} parent=11 // pred_check
          %p262 = pneg %p128
        $region26: #{net_forward.1} parent=11 // pred_check_branch
          %264 = sbr.rel (%p262) target = $region28
        $region27: #{net_forward.1} parent=11 // pred_region
          _
        $region28: #{net_forward.1} parent=11 // pred_fallthru
          _
        // Predicated region
        $region29: #{net_forward.1} parent=11 // pred_check
          %p265 = pneg %p149
        $region30: #{net_forward.1} parent=11 // pred_check_branch
          %267 = sbr.rel (%p265) target = $region32
        $region31: #{net_forward.1} parent=11 // pred_region
          _
        $region32: #{net_forward.1} parent=11 // pred_fallthru
          _
        // Predicated region
        $region33: #{net_forward.1} parent=11 // pred_check
          %p268 = pneg %p170
        $region34: #{net_forward.1} parent=11 // pred_check_branch
          %270 = sbr.rel (%p268) target = $region36
        $region35: #{net_forward.1} parent=11 // pred_region
          _
        $region36: #{net_forward.1} parent=11 // pred_fallthru
          _
        // Predicated region
        $region37: #{net_forward.1} parent=11 // pred_check
          %p271 = pneg %p191
        $region38: #{net_forward.1} parent=11 // pred_check_branch
          %273 = sbr.rel (%p271) target = $region40
        $region39: #{net_forward.1} parent=11 // pred_region
          _
        $region40: #{net_forward.1} parent=11 // pred_fallthru
          _
        // Predicated region
        $region41: #{net_forward.1} parent=11 // pred_check
          %p274 = pneg %p212
        $region42: #{net_forward.1} parent=11 // pred_check_branch
          %276 = sbr.rel (%p274) target = $region44
        $region43: #{net_forward.1} parent=11 // pred_region
          _
        $region44: #{net_forward.1} parent=11 // pred_fallthru
          _
      $region12: #{net_forward.1} parent=5 // pred_fallthru
        _
      %p277 = scmp.lt.s32.totalorder %s18, 2
      // Predicated region
      $region45: #{net_forward.1} parent=5 // pred_check
        %p278 = pneg %p277
      $region46: #{net_forward.1} parent=5 // pred_check_branch
        %280 = sbr.rel (%p278) target = $region48
      $region47: #{net_forward.1} parent=5 // pred_region
        // Predicated region
        $region49: #{net_forward.1} parent=47 // pred_check
          %p281 = pneg %p38
        $region50: #{net_forward.1} parent=47 // pred_check_branch
          %283 = sbr.rel (%p281) target = $region52
        $region51: #{net_forward.1} parent=47 // pred_region
          %p284 = scmp.lt.s32.totalorder %s18, 1
          %s285 = scalar_select %p284, %s18, 1
          %s286 = smul.addr %s285, 112
          %s287 = smul.addr %s286, 4
          %s288 = scalar_lea.vmem %s0, %s287
        $region52: #{net_forward.1} parent=47 // pred_fallthru
          _
      $region48: #{net_forward.1} parent=5 // pred_fallthru
        _
      %p289 = scmp.le.s32.totalorder 1, %s18
      %p290 = scmp.lt.s32.totalorder %s18, 3
      %p291 = pnand %p289, %p290
      %p292 = pneg %p291
      // Predicated region
      $region53: #{net_forward.1} parent=5 // pred_check
        _
      $region54: #{net_forward.1} parent=5 // pred_check_branch
        %294 = sbr.rel (%p291) target = $region56
      $region55: #{net_forward.1} parent=5 // pred_region
        %s295 = ssub.s32 %s18, 1
        %p296 = scmp.lt.s32.totalorder %s23, 1
        %s297 = scalar_select %p296, %s23, 1
        %s298 = smul.addr %s297, 112
        %s299 = smul.addr %s298, 4
        %s300 = scalar_lea.vmem %s0, %s299
        %p301 = pneg %p44
        %p302 = pneg %p41
        %p303 = pneg %p65
        %p304 = pneg %p62
        %p305 = pneg %p86
        %p306 = pneg %p83
        %p307 = pneg %p107
        %p308 = pneg %p104
        %p309 = pneg %p128
        %p310 = pneg %p125
        %p311 = pneg %p149
        %p312 = pneg %p146
        %p313 = pneg %p170
        %p314 = pneg %p167
        %p315 = pneg %p191
        %p316 = pneg %p188
        %p317 = pneg %p212
        %p318 = pneg %p209
        %p319 = pneg %p238
        %p320 = pneg %p235
        %s321 = sand.u32 %s225, 1
        %s322 = scalar_lea.sflag [#allocation8], %s321
        %s323 = sand.u32 %s225, 1
        %s324 = scalar_lea.vmem [#allocation7], %s323
        %p325 = scmp.lt.s32.totalorder %s23, 1
        %s326 = scalar_select %p325, %s23, 1
        %s327 = smul.addr %s326, 112
        %s328 = smul.addr %s327, 4
        %s329 = scalar_lea.vmem %s0, %s328
        %v331 = vld [vmem:[%s1] sm:$0xf]
        %v332 = vld [vmem:[%s1 + $0x4] sm:$0xf]
        %v333 = vld [vmem:[%s1 + $0x8] sm:$0xf]
        %v334 = vld [vmem:[%s1 + $0xc] sm:$0xf]
        %v335 = vld [vmem:[%s1 + $0x10] sm:$0xf]
        %v336 = vld [vmem:[%s1 + $0x14] sm:$0xf]
        %v337 = vld [vmem:[%s1 + $0x18] sm:$0xf]
        %v338 = vld [vmem:[%s1 + $0x1c] sm:$0xf]
        %v339 = vld [vmem:[%s1 + $0x20] sm:$0xf]
        %v340 = vld [vmem:[%s1 + $0x24] sm:$0xf]
        %v341 = vld [vmem:[%s1 + $0x28] sm:$0xf]
        %v342 = vld [vmem:[%s1 + $0x2c] sm:$0xf]
        %v343 = vld [vmem:[%s1 + $0x30] sm:$0xf]
        %v344 = vld [vmem:[%s1 + $0x34] sm:$0xf]
        %v345 = vld [vmem:[%s1 + $0x38] sm:$0xf]
        %v346 = vld [vmem:[%s1 + $0x3c] sm:$0xf]
        %v347 = vld [vmem:[%s329] sm:$0xf]
        %v348 = vld [vmem:[%s329 + $0x4] sm:$0xf]
        %v349 = vld [vmem:[%s329 + $0x8] sm:$0xf]
        %v350 = vld [vmem:[%s329 + $0xc] sm:$0xf]
        %v351 = vld [vmem:[%s329 + $0x10] sm:$0xf]
        %v352 = vld [vmem:[%s329 + $0x14] sm:$0xf]
        %v353 = vld [vmem:[%s329 + $0x18] sm:$0xf]
        %v354 = vld [vmem:[%s329 + $0x1c] sm:$0xf]
        %v355 = vld [vmem:[%s329 + $0x20] sm:$0xf]
        %v356 = vld [vmem:[%s329 + $0x24] sm:$0xf]
        %v357 = vld [vmem:[%s329 + $0x28] sm:$0xf]
        %v358 = vld [vmem:[%s329 + $0x2c] sm:$0xf]
        %v359 = vld [vmem:[%s329 + $0x30] sm:$0xf]
        %v360 = vld [vmem:[%s329 + $0x34] sm:$0xf]
        %v361 = vld [vmem:[%s329 + $0x38] sm:$0xf]
        %v362 = vld [vmem:[%s329 + $0x3c] sm:$0xf]
        %v363 = vld [vmem:[%s329 + $0x40] sm:$0xf]
        %v364 = vld [vmem:[%s329 + $0x44] sm:$0xf]
        %v365 = vld [vmem:[%s329 + $0x48] sm:$0xf]
        %v366 = vld [vmem:[%s329 + $0x4c] sm:$0xf]
        %v367 = vld [vmem:[%s329 + $0x50] sm:$0xf]
        %v368 = vld [vmem:[%s329 + $0x54] sm:$0xf]
        %v369 = vld [vmem:[%s329 + $0x58] sm:$0xf]
        %v370 = vld [vmem:[%s329 + $0x5c] sm:$0xf]
        %v371 = vld [vmem:[%s329 + $0x60] sm:$0xf]
        %v372 = vld [vmem:[%s329 + $0x64] sm:$0xf]
        %v373 = vld [vmem:[%s329 + $0x68] sm:$0xf]
        %v374 = vld [vmem:[%s329 + $0x6c] sm:$0xf]
        %v403 = vunpack.c.l.b16 %v347
        %v404 = vunpack.c.l.b16 %v348
        %v405 = vunpack.c.l.b16 %v349
        %v406 = vunpack.c.l.b16 %v350
        %v407 = vunpack.c.l.b16 %v351
        %v408 = vunpack.c.l.b16 %v352
        %v409 = vunpack.c.l.b16 %v353
        %v410 = vunpack.c.l.b16 %v354
        %v411 = vunpack.c.l.b16 %v355
        %v412 = vunpack.c.l.b16 %v356
        %v413 = vunpack.c.l.b16 %v357
        %v414 = vunpack.c.l.b16 %v358
        %v415 = vunpack.c.l.b16 %v359
        %v416 = vunpack.c.l.b16 %v360
        %v417 = vunpack.c.l.b16 %v361
        %v418 = vunpack.c.l.b16 %v362
        %v419 = vunpack.c.l.b16 %v363
        %v420 = vunpack.c.l.b16 %v364
        %v421 = vunpack.c.l.b16 %v365
        %v422 = vunpack.c.l.b16 %v366
        %v423 = vunpack.c.l.b16 %v367
        %v424 = vunpack.c.l.b16 %v368
        %v425 = vunpack.c.l.b16 %v369
        %v426 = vunpack.c.l.b16 %v370
        %v427 = vunpack.c.l.b16 %v371
        %v428 = vunpack.c.l.b16 %v372
        %v429 = vunpack.c.l.b16 %v373
        %v430 = vunpack.c.l.b16 %v374
        %v431 = vpack.c.b16 %v404, %v403
        %v432 = vpack.c.b16 %v406, %v405
        %v433 = vpack.c.b16 %v408, %v407
        %v434 = vpack.c.b16 %v410, %v409
        %v435 = vpack.c.b16 %v412, %v411
        %v436 = vpack.c.b16 %v414, %v413
        %v437 = vpack.c.b16 %v416, %v415
        %v438 = vpack.c.b16 %v418, %v417
        %v439 = vpack.c.b16 %v420, %v419
        %v440 = vpack.c.b16 %v422, %v421
        %v441 = vpack.c.b16 %v424, %v423
        %v442 = vpack.c.b16 %v426, %v425
        %v443 = vpack.c.b16 %v428, %v427
        %v444 = vpack.c.b16 %v430, %v429
        %v475 = vunpack.c.l.b16 %v331
        %v476 = vunpack.c.l.b16 %v332
        %v477 = vunpack.c.l.b16 %v333
        %v478 = vunpack.c.l.b16 %v334
        %v479 = vunpack.c.l.b16 %v335
        %v480 = vunpack.c.l.b16 %v336
        %v481 = vunpack.c.l.b16 %v337
        %v482 = vunpack.c.l.b16 %v338
        %v483 = vunpack.c.l.b16 %v339
        %v484 = vunpack.c.l.b16 %v340
        %v485 = vunpack.c.l.b16 %v341
        %v486 = vunpack.c.l.b16 %v342
        %v487 = vunpack.c.l.b16 %v343
        %v488 = vunpack.c.l.b16 %v344
        %v489 = vunpack.c.l.b16 %v345
        %v490 = vunpack.c.l.b16 %v346
        %v491 = vpack.c.b16 %v476, %v475
        %v492 = vpack.c.b16 %v478, %v477
        %v493 = vpack.c.b16 %v480, %v479
        %v494 = vpack.c.b16 %v482, %v481
        %v495 = vpack.c.b16 %v484, %v483
        %v496 = vpack.c.b16 %v486, %v485
        %v497 = vpack.c.b16 %v488, %v487
        %v498 = vpack.c.b16 %v490, %v489
        %507 = vmatpush.bf16.msra.mxu0 %v498
        %508 = vmatpush.bf16.msra.mxu0 %v497
        %509 = vmatpush.bf16.msra.mxu0 %v496
        %510 = vmatpush.bf16.msra.mxu0 %v495
        %511 = vmatpush.bf16.msra.mxu0 %v494
        %512 = vmatpush.bf16.msra.mxu0 %v493
        %513 = vmatpush.bf16.msra.mxu0 %v492
        %514 = vmatpush.bf16.msra.mxu0 %v491
        %515 = vmatmul.bf16.gmra.mxu0 %v431
        %v516 = vpop.f32.mrf.mxu0
        %v517 = vadd.f32 0.0, %v516
        %v518 = vpop.f32.mrf.mxu0
        %v519 = vadd.f32 0.0, %v518
        %520 = vmatmul.bf16.gmra.mxu0 %v432
        %v521 = vpop.f32.mrf.mxu0
        %v522 = vadd.f32 0.0, %v521
        %v523 = vpop.f32.mrf.mxu0
        %v524 = vadd.f32 0.0, %v523
        %525 = vmatmul.bf16.gmra.mxu0 %v433
        %v526 = vpop.f32.mrf.mxu0
        %v527 = vadd.f32 0.0, %v526
        %v528 = vpop.f32.mrf.mxu0
        %v529 = vadd.f32 0.0, %v528
        %530 = vmatmul.bf16.gmra.mxu0 %v434
        %v531 = vpop.f32.mrf.mxu0
        %v532 = vadd.f32 0.0, %v531
        %v533 = vpop.f32.mrf.mxu0
        %v534 = vadd.f32 0.0, %v533
        %535 = vmatmul.bf16.gmra.mxu0 %v435
        %v536 = vpop.f32.mrf.mxu0
        %v537 = vadd.f32 0.0, %v536
        %v538 = vpop.f32.mrf.mxu0
        %v539 = vadd.f32 0.0, %v538
        %540 = vmatmul.bf16.gmra.mxu0 %v436
        %v541 = vpop.f32.mrf.mxu0
        %v542 = vadd.f32 0.0, %v541
        %v543 = vpop.f32.mrf.mxu0
        %v544 = vadd.f32 0.0, %v543
        %545 = vmatmul.bf16.gmra.mxu0 %v437
        %v546 = vpop.f32.mrf.mxu0
        %v547 = vadd.f32 0.0, %v546
        %v548 = vpop.f32.mrf.mxu0
        %v549 = vadd.f32 0.0, %v548
        %550 = vmatmul.bf16.gmra.mxu0 %v438
        %v551 = vpop.f32.mrf.mxu0
        %v552 = vadd.f32 0.0, %v551
        %v553 = vpop.f32.mrf.mxu0
        %v554 = vadd.f32 0.0, %v553
        %555 = vmatmul.bf16.gmra.mxu0 %v439
        %v556 = vpop.f32.mrf.mxu0
        %v557 = vadd.f32 0.0, %v556
        %v558 = vpop.f32.mrf.mxu0
        %v559 = vadd.f32 0.0, %v558
        %560 = vmatmul.bf16.gmra.mxu0 %v440
        %v561 = vpop.f32.mrf.mxu0
        %v562 = vadd.f32 0.0, %v561
        %v563 = vpop.f32.mrf.mxu0
        %v564 = vadd.f32 0.0, %v563
        %565 = vmatmul.bf16.gmra.mxu0 %v441
        %v566 = vpop.f32.mrf.mxu0
        %v567 = vadd.f32 0.0, %v566
        %v568 = vpop.f32.mrf.mxu0
        %v569 = vadd.f32 0.0, %v568
        %570 = vmatmul.bf16.gmra.mxu0 %v442
        %v571 = vpop.f32.mrf.mxu0
        %v572 = vadd.f32 0.0, %v571
        %v573 = vpop.f32.mrf.mxu0
        %v574 = vadd.f32 0.0, %v573
        %575 = vmatmul.bf16.gmra.mxu0 %v443
        %v576 = vpop.f32.mrf.mxu0
        %v577 = vadd.f32 0.0, %v576
        %v578 = vpop.f32.mrf.mxu0
        %v579 = vadd.f32 0.0, %v578
        %580 = vmatmul.bf16.gmra.mxu0 %v444
        %v581 = vpop.f32.mrf.mxu0
        %v582 = vadd.f32 0.0, %v581
        %v583 = vpop.f32.mrf.mxu0
        %v584 = vadd.f32 0.0, %v583
        %585 = vdwg.mxu0
        %v586 = vld [vmem:[%s329 + $0x70] sm:$0xf]
        %v587 = vld [vmem:[%s329 + $0x74] sm:$0xf]
        %v588 = vld [vmem:[%s329 + $0x78] sm:$0xf]
        %v589 = vld [vmem:[%s329 + $0x7c] sm:$0xf]
        %v590 = vld [vmem:[%s329 + $0x80] sm:$0xf]
        %v591 = vld [vmem:[%s329 + $0x84] sm:$0xf]
        %v592 = vld [vmem:[%s329 + $0x88] sm:$0xf]
        %v593 = vld [vmem:[%s329 + $0x8c] sm:$0xf]
        %v594 = vld [vmem:[%s329 + $0x90] sm:$0xf]
        %v595 = vld [vmem:[%s329 + $0x94] sm:$0xf]
        %v596 = vld [vmem:[%s329 + $0x98] sm:$0xf]
        %v597 = vld [vmem:[%s329 + $0x9c] sm:$0xf]
        %v598 = vld [vmem:[%s329 + $0xa0] sm:$0xf]
        %v599 = vld [vmem:[%s329 + $0xa4] sm:$0xf]
        %v600 = vld [vmem:[%s329 + $0xa8] sm:$0xf]
        %v601 = vld [vmem:[%s329 + $0xac] sm:$0xf]
        %v602 = vld [vmem:[%s329 + $0xb0] sm:$0xf]
        %v603 = vld [vmem:[%s329 + $0xb4] sm:$0xf]
        %v604 = vld [vmem:[%s329 + $0xb8] sm:$0xf]
        %v605 = vld [vmem:[%s329 + $0xbc] sm:$0xf]
        %v606 = vld [vmem:[%s329 + $0xc0] sm:$0xf]
        %v607 = vld [vmem:[%s329 + $0xc4] sm:$0xf]
        %v608 = vld [vmem:[%s329 + $0xc8] sm:$0xf]
        %v609 = vld [vmem:[%s329 + $0xcc] sm:$0xf]
        %v610 = vld [vmem:[%s329 + $0xd0] sm:$0xf]
        %v611 = vld [vmem:[%s329 + $0xd4] sm:$0xf]
        %v612 = vld [vmem:[%s329 + $0xd8] sm:$0xf]
        %v613 = vld [vmem:[%s329 + $0xdc] sm:$0xf]
        %v642 = vunpack.c.l.b16 %v586
        %v643 = vunpack.c.l.b16 %v587
        %v644 = vunpack.c.l.b16 %v588
        %v645 = vunpack.c.l.b16 %v589
        %v646 = vunpack.c.l.b16 %v590
        %v647 = vunpack.c.l.b16 %v591
        %v648 = vunpack.c.l.b16 %v592
        %v649 = vunpack.c.l.b16 %v593
        %v650 = vunpack.c.l.b16 %v594
        %v651 = vunpack.c.l.b16 %v595
        %v652 = vunpack.c.l.b16 %v596
        %v653 = vunpack.c.l.b16 %v597
        %v654 = vunpack.c.l.b16 %v598
        %v655 = vunpack.c.l.b16 %v599
        %v656 = vunpack.c.l.b16 %v600
        %v657 = vunpack.c.l.b16 %v601
        %v658 = vunpack.c.l.b16 %v602
        %v659 = vunpack.c.l.b16 %v603
        %v660 = vunpack.c.l.b16 %v604
        %v661 = vunpack.c.l.b16 %v605
        %v662 = vunpack.c.l.b16 %v606
        %v663 = vunpack.c.l.b16 %v607
        %v664 = vunpack.c.l.b16 %v608
        %v665 = vunpack.c.l.b16 %v609
        %v666 = vunpack.c.l.b16 %v610
        %v667 = vunpack.c.l.b16 %v611
        %v668 = vunpack.c.l.b16 %v612
        %v669 = vunpack.c.l.b16 %v613
        %v670 = vpack.c.b16 %v643, %v642
        %v671 = vpack.c.b16 %v645, %v644
        %v672 = vpack.c.b16 %v647, %v646
        %v673 = vpack.c.b16 %v649, %v648
        %v674 = vpack.c.b16 %v651, %v650
        %v675 = vpack.c.b16 %v653, %v652
        %v676 = vpack.c.b16 %v655, %v654
        %v677 = vpack.c.b16 %v657, %v656
        %v678 = vpack.c.b16 %v659, %v658
        %v679 = vpack.c.b16 %v661, %v660
        %v680 = vpack.c.b16 %v663, %v662
        %v681 = vpack.c.b16 %v665, %v664
        %v682 = vpack.c.b16 %v667, %v666
        %v683 = vpack.c.b16 %v669, %v668
        %698 = vmatpush.bf16.msra.mxu0 %v498
        %699 = vmatpush.bf16.msra.mxu0 %v497
        %700 = vmatpush.bf16.msra.mxu0 %v496
        %701 = vmatpush.bf16.msra.mxu0 %v495
        %702 = vmatpush.bf16.msra.mxu0 %v494
        %703 = vmatpush.bf16.msra.mxu0 %v493
        %704 = vmatpush.bf16.msra.mxu0 %v492
        %705 = vmatpush.bf16.msra.mxu0 %v491
        %706 = vmatmul.bf16.gmra.mxu0 %v670
        %v707 = vpop.f32.mrf.mxu0
        %v708 = vadd.f32 0.0, %v707
        %v709 = vpop.f32.mrf.mxu0
        %v710 = vadd.f32 0.0, %v709
        %711 = vmatmul.bf16.gmra.mxu0 %v671
        %v712 = vpop.f32.mrf.mxu0
        %v713 = vadd.f32 0.0, %v712
        %v714 = vpop.f32.mrf.mxu0
        %v715 = vadd.f32 0.0, %v714
        %716 = vmatmul.bf16.gmra.mxu0 %v672
        %v717 = vpop.f32.mrf.mxu0
        %v718 = vadd.f32 0.0, %v717
        %v719 = vpop.f32.mrf.mxu0
        %v720 = vadd.f32 0.0, %v719
        %721 = vmatmul.bf16.gmra.mxu0 %v673
        %v722 = vpop.f32.mrf.mxu0
        %v723 = vadd.f32 0.0, %v722
        %v724 = vpop.f32.mrf.mxu0
        %v725 = vadd.f32 0.0, %v724
        %726 = vmatmul.bf16.gmra.mxu0 %v674
        %v727 = vpop.f32.mrf.mxu0
        %v728 = vadd.f32 0.0, %v727
        %v729 = vpop.f32.mrf.mxu0
        %v730 = vadd.f32 0.0, %v729
        %731 = vmatmul.bf16.gmra.mxu0 %v675
        %v732 = vpop.f32.mrf.mxu0
        %v733 = vadd.f32 0.0, %v732
        %v734 = vpop.f32.mrf.mxu0
        %v735 = vadd.f32 0.0, %v734
        %736 = vmatmul.bf16.gmra.mxu0 %v676
        %v737 = vpop.f32.mrf.mxu0
        %v738 = vadd.f32 0.0, %v737
        %v739 = vpop.f32.mrf.mxu0
        %v740 = vadd.f32 0.0, %v739
        %741 = vmatmul.bf16.gmra.mxu0 %v677
        %v742 = vpop.f32.mrf.mxu0
        %v743 = vadd.f32 0.0, %v742
        %v744 = vpop.f32.mrf.mxu0
        %v745 = vadd.f32 0.0, %v744
        %746 = vmatmul.bf16.gmra.mxu0 %v678
        %v747 = vpop.f32.mrf.mxu0
        %v748 = vadd.f32 0.0, %v747
        %v749 = vpop.f32.mrf.mxu0
        %v750 = vadd.f32 0.0, %v749
        %751 = vmatmul.bf16.gmra.mxu0 %v679
        %v752 = vpop.f32.mrf.mxu0
        %v753 = vadd.f32 0.0, %v752
        %v754 = vpop.f32.mrf.mxu0
        %v755 = vadd.f32 0.0, %v754
        %756 = vmatmul.bf16.gmra.mxu0 %v680
        %v757 = vpop.f32.mrf.mxu0
        %v758 = vadd.f32 0.0, %v757
        %v759 = vpop.f32.mrf.mxu0
        %v760 = vadd.f32 0.0, %v759
        %761 = vmatmul.bf16.gmra.mxu0 %v681
        %v762 = vpop.f32.mrf.mxu0
        %v763 = vadd.f32 0.0, %v762
        %v764 = vpop.f32.mrf.mxu0
        %v765 = vadd.f32 0.0, %v764
        %766 = vmatmul.bf16.gmra.mxu0 %v682
        %v767 = vpop.f32.mrf.mxu0
        %v768 = vadd.f32 0.0, %v767
        %v769 = vpop.f32.mrf.mxu0
        %v770 = vadd.f32 0.0, %v769
        %771 = vmatmul.bf16.gmra.mxu0 %v683
        %v772 = vpop.f32.mrf.mxu0
        %v773 = vadd.f32 0.0, %v772
        %v774 = vpop.f32.mrf.mxu0
        %v775 = vadd.f32 0.0, %v774
        %776 = vdwg.mxu0
        %v777 = vmax.f32 %v517, %v708
        %v778 = vmax.f32 %v519, %v710
        %v779 = vmax.f32 %v522, %v713
        %v780 = vmax.f32 %v524, %v715
        %v781 = vmax.f32 %v527, %v718
        %v782 = vmax.f32 %v529, %v720
        %v783 = vmax.f32 %v532, %v723
        %v784 = vmax.f32 %v534, %v725
        %v785 = vmax.f32 %v537, %v728
        %v786 = vmax.f32 %v539, %v730
        %v787 = vmax.f32 %v542, %v733
        %v788 = vmax.f32 %v544, %v735
        %v789 = vmax.f32 %v547, %v738
        %v790 = vmax.f32 %v549, %v740
        %v791 = vmax.f32 %v552, %v743
        %v792 = vmax.f32 %v554, %v745
        %v793 = vmax.f32 %v557, %v748
        %v794 = vmax.f32 %v559, %v750
        %v795 = vmax.f32 %v562, %v753
        %v796 = vmax.f32 %v564, %v755
        %v797 = vmax.f32 %v567, %v758
        %v798 = vmax.f32 %v569, %v760
        %v799 = vmax.f32 %v572, %v763
        %v800 = vmax.f32 %v574, %v765
        %v801 = vmax.f32 %v577, %v768
        %v802 = vmax.f32 %v579, %v770
        %v803 = vmax.f32 %v582, %v773
        %v804 = vmax.f32 %v584, %v775
        %v805 = vld [vmem:[%s329 + $0xe0] sm:$0xf]
        %v806 = vld [vmem:[%s329 + $0xe4] sm:$0xf]
        %v807 = vld [vmem:[%s329 + $0xe8] sm:$0xf]
        %v808 = vld [vmem:[%s329 + $0xec] sm:$0xf]
        %v809 = vld [vmem:[%s329 + $0xf0] sm:$0xf]
        %v810 = vld [vmem:[%s329 + $0xf4] sm:$0xf]
        %v811 = vld [vmem:[%s329 + $0xf8] sm:$0xf]
        %v812 = vld [vmem:[%s329 + $0xfc] sm:$0xf]
        %v813 = vld [vmem:[%s329 + $0x100] sm:$0xf]
        %v814 = vld [vmem:[%s329 + $0x104] sm:$0xf]
        %v815 = vld [vmem:[%s329 + $0x108] sm:$0xf]
        %v816 = vld [vmem:[%s329 + $0x10c] sm:$0xf]
        %v817 = vld [vmem:[%s329 + $0x110] sm:$0xf]
        %v818 = vld [vmem:[%s329 + $0x114] sm:$0xf]
        %v819 = vld [vmem:[%s329 + $0x118] sm:$0xf]
        %v820 = vld [vmem:[%s329 + $0x11c] sm:$0xf]
        %v821 = vld [vmem:[%s329 + $0x120] sm:$0xf]
        %v822 = vld [vmem:[%s329 + $0x124] sm:$0xf]
        %v823 = vld [vmem:[%s329 + $0x128] sm:$0xf]
        %v824 = vld [vmem:[%s329 + $0x12c] sm:$0xf]
        %v825 = vld [vmem:[%s329 + $0x130] sm:$0xf]
        %v826 = vld [vmem:[%s329 + $0x134] sm:$0xf]
        %v827 = vld [vmem:[%s329 + $0x138] sm:$0xf]
        %v828 = vld [vmem:[%s329 + $0x13c] sm:$0xf]
        %v829 = vld [vmem:[%s329 + $0x140] sm:$0xf]
        %v830 = vld [vmem:[%s329 + $0x144] sm:$0xf]
        %v831 = vld [vmem:[%s329 + $0x148] sm:$0xf]
        %v832 = vld [vmem:[%s329 + $0x14c] sm:$0xf]
        %v861 = vunpack.c.l.b16 %v805
        %v862 = vunpack.c.l.b16 %v806
        %v863 = vunpack.c.l.b16 %v807
        %v864 = vunpack.c.l.b16 %v808
        %v865 = vunpack.c.l.b16 %v809
        %v866 = vunpack.c.l.b16 %v810
        %v867 = vunpack.c.l.b16 %v811
        %v868 = vunpack.c.l.b16 %v812
        %v869 = vunpack.c.l.b16 %v813
        %v870 = vunpack.c.l.b16 %v814
        %v871 = vunpack.c.l.b16 %v815
        %v872 = vunpack.c.l.b16 %v816
        %v873 = vunpack.c.l.b16 %v817
        %v874 = vunpack.c.l.b16 %v818
        %v875 = vunpack.c.l.b16 %v819
        %v876 = vunpack.c.l.b16 %v820
        %v877 = vunpack.c.l.b16 %v821
        %v878 = vunpack.c.l.b16 %v822
        %v879 = vunpack.c.l.b16 %v823
        %v880 = vunpack.c.l.b16 %v824
        %v881 = vunpack.c.l.b16 %v825
        %v882 = vunpack.c.l.b16 %v826
        %v883 = vunpack.c.l.b16 %v827
        %v884 = vunpack.c.l.b16 %v828
        %v885 = vunpack.c.l.b16 %v829
        %v886 = vunpack.c.l.b16 %v830
        %v887 = vunpack.c.l.b16 %v831
        %v888 = vunpack.c.l.b16 %v832
        %v889 = vpack.c.b16 %v862, %v861
        %v890 = vpack.c.b16 %v864, %v863
        %v891 = vpack.c.b16 %v866, %v865
        %v892 = vpack.c.b16 %v868, %v867
        %v893 = vpack.c.b16 %v870, %v869
        %v894 = vpack.c.b16 %v872, %v871
        %v895 = vpack.c.b16 %v874, %v873
        %v896 = vpack.c.b16 %v876, %v875
        %v897 = vpack.c.b16 %v878, %v877
        %v898 = vpack.c.b16 %v880, %v879
        %v899 = vpack.c.b16 %v882, %v881
        %v900 = vpack.c.b16 %v884, %v883
        %v901 = vpack.c.b16 %v886, %v885
        %v902 = vpack.c.b16 %v888, %v887
        %917 = vmatpush.bf16.msra.mxu0 %v498
        %918 = vmatpush.bf16.msra.mxu0 %v497
        %919 = vmatpush.bf16.msra.mxu0 %v496
        %920 = vmatpush.bf16.msra.mxu0 %v495
        %921 = vmatpush.bf16.msra.mxu0 %v494
        %922 = vmatpush.bf16.msra.mxu0 %v493
        %923 = vmatpush.bf16.msra.mxu0 %v492
        %924 = vmatpush.bf16.msra.mxu0 %v491
        %925 = vmatmul.bf16.gmra.mxu0 %v889
        %v926 = vpop.f32.mrf.mxu0
        %v927 = vadd.f32 0.0, %v926
        %v928 = vpop.f32.mrf.mxu0
        %v929 = vadd.f32 0.0, %v928
        %930 = vmatmul.bf16.gmra.mxu0 %v890
        %v931 = vpop.f32.mrf.mxu0
        %v932 = vadd.f32 0.0, %v931
        %v933 = vpop.f32.mrf.mxu0
        %v934 = vadd.f32 0.0, %v933
        %935 = vmatmul.bf16.gmra.mxu0 %v891
        %v936 = vpop.f32.mrf.mxu0
        %v937 = vadd.f32 0.0, %v936
        %v938 = vpop.f32.mrf.mxu0
        %v939 = vadd.f32 0.0, %v938
        %940 = vmatmul.bf16.gmra.mxu0 %v892
        %v941 = vpop.f32.mrf.mxu0
        %v942 = vadd.f32 0.0, %v941
        %v943 = vpop.f32.mrf.mxu0
        %v944 = vadd.f32 0.0, %v943
        %945 = vmatmul.bf16.gmra.mxu0 %v893
        %v946 = vpop.f32.mrf.mxu0
        %v947 = vadd.f32 0.0, %v946
        %v948 = vpop.f32.mrf.mxu0
        %v949 = vadd.f32 0.0, %v948
        %950 = vmatmul.bf16.gmra.mxu0 %v894
        %v951 = vpop.f32.mrf.mxu0
        %v952 = vadd.f32 0.0, %v951
        %v953 = vpop.f32.mrf.mxu0
        %v954 = vadd.f32 0.0, %v953
        %955 = vmatmul.bf16.gmra.mxu0 %v895
        %v956 = vpop.f32.mrf.mxu0
        %v957 = vadd.f32 0.0, %v956
        %v958 = vpop.f32.mrf.mxu0
        %v959 = vadd.f32 0.0, %v958
        %960 = vmatmul.bf16.gmra.mxu0 %v896
        %v961 = vpop.f32.mrf.mxu0
        %v962 = vadd.f32 0.0, %v961
        %v963 = vpop.f32.mrf.mxu0
        %v964 = vadd.f32 0.0, %v963
        %965 = vmatmul.bf16.gmra.mxu0 %v897
        %v966 = vpop.f32.mrf.mxu0
        %v967 = vadd.f32 0.0, %v966
        %v968 = vpop.f32.mrf.mxu0
        %v969 = vadd.f32 0.0, %v968
        %970 = vmatmul.bf16.gmra.mxu0 %v898
        %v971 = vpop.f32.mrf.mxu0
        %v972 = vadd.f32 0.0, %v971
        %v973 = vpop.f32.mrf.mxu0
        %v974 = vadd.f32 0.0, %v973
        %975 = vmatmul.bf16.gmra.mxu0 %v899
        %v976 = vpop.f32.mrf.mxu0
        %v977 = vadd.f32 0.0, %v976
        %v978 = vpop.f32.mrf.mxu0
        %v979 = vadd.f32 0.0, %v978
        %980 = vmatmul.bf16.gmra.mxu0 %v900
        %v981 = vpop.f32.mrf.mxu0
        %v982 = vadd.f32 0.0, %v981
        %v983 = vpop.f32.mrf.mxu0
        %v984 = vadd.f32 0.0, %v983
        %985 = vmatmul.bf16.gmra.mxu0 %v901
        %v986 = vpop.f32.mrf.mxu0
        %v987 = vadd.f32 0.0, %v986
        %v988 = vpop.f32.mrf.mxu0
        %v989 = vadd.f32 0.0, %v988
        %990 = vmatmul.bf16.gmra.mxu0 %v902
        %v991 = vpop.f32.mrf.mxu0
        %v992 = vadd.f32 0.0, %v991
        %v993 = vpop.f32.mrf.mxu0
        %v994 = vadd.f32 0.0, %v993
        %995 = vdwg.mxu0
        %v996 = vmax.f32 %v777, %v927
        %v997 = vmax.f32 %v778, %v929
        %v998 = vmax.f32 %v779, %v932
        %v999 = vmax.f32 %v780, %v934
        %v1000 = vmax.f32 %v781, %v937
        %v1001 = vmax.f32 %v782, %v939
        %v1002 = vmax.f32 %v783, %v942
        %v1003 = vmax.f32 %v784, %v944
        %v1004 = vmax.f32 %v785, %v947
        %v1005 = vmax.f32 %v786, %v949
        %v1006 = vmax.f32 %v787, %v952
        %v1007 = vmax.f32 %v788, %v954
        %v1008 = vmax.f32 %v789, %v957
        %v1009 = vmax.f32 %v790, %v959
        %v1010 = vmax.f32 %v791, %v962
        %v1011 = vmax.f32 %v792, %v964
        %v1012 = vmax.f32 %v793, %v967
        %v1013 = vmax.f32 %v794, %v969
        %v1014 = vmax.f32 %v795, %v972
        %v1015 = vmax.f32 %v796, %v974
        %v1016 = vmax.f32 %v797, %v977
        %v1017 = vmax.f32 %v798, %v979
        %v1018 = vmax.f32 %v799, %v982
        %v1019 = vmax.f32 %v800, %v984
        %v1020 = vmax.f32 %v801, %v987
        %v1021 = vmax.f32 %v802, %v989
        %v1022 = vmax.f32 %v803, %v992
        %v1023 = vmax.f32 %v804, %v994
        %v1024 = vld [vmem:[%s329 + $0x150] sm:$0xf]
        %v1025 = vld [vmem:[%s329 + $0x154] sm:$0xf]
        %v1026 = vld [vmem:[%s329 + $0x158] sm:$0xf]
        %v1027 = vld [vmem:[%s329 + $0x15c] sm:$0xf]
        %v1028 = vld [vmem:[%s329 + $0x160] sm:$0xf]
        %v1029 = vld [vmem:[%s329 + $0x164] sm:$0xf]
        %v1030 = vld [vmem:[%s329 + $0x168] sm:$0xf]
        %v1031 = vld [vmem:[%s329 + $0x16c] sm:$0xf]
        %v1032 = vld [vmem:[%s329 + $0x170] sm:$0xf]
        %v1033 = vld [vmem:[%s329 + $0x174] sm:$0xf]
        %v1034 = vld [vmem:[%s329 + $0x178] sm:$0xf]
        %v1035 = vld [vmem:[%s329 + $0x17c] sm:$0xf]
        %v1036 = vld [vmem:[%s329 + $0x180] sm:$0xf]
        %v1037 = vld [vmem:[%s329 + $0x184] sm:$0xf]
        %v1038 = vld [vmem:[%s329 + $0x188] sm:$0xf]
        %v1039 = vld [vmem:[%s329 + $0x18c] sm:$0xf]
        %v1040 = vld [vmem:[%s329 + $0x190] sm:$0xf]
        %v1041 = vld [vmem:[%s329 + $0x194] sm:$0xf]
        %v1042 = vld [vmem:[%s329 + $0x198] sm:$0xf]
        %v1043 = vld [vmem:[%s329 + $0x19c] sm:$0xf]
        %v1044 = vld [vmem:[%s329 + $0x1a0] sm:$0xf]
        %v1045 = vld [vmem:[%s329 + $0x1a4] sm:$0xf]
        %v1046 = vld [vmem:[%s329 + $0x1a8] sm:$0xf]
        %v1047 = vld [vmem:[%s329 + $0x1ac] sm:$0xf]
        %v1048 = vld [vmem:[%s329 + $0x1b0] sm:$0xf]
        %v1049 = vld [vmem:[%s329 + $0x1b4] sm:$0xf]
        %v1050 = vld [vmem:[%s329 + $0x1b8] sm:$0xf]
        %v1051 = vld [vmem:[%s329 + $0x1bc] sm:$0xf]
        %v1080 = vunpack.c.l.b16 %v1024
        %v1081 = vunpack.c.l.b16 %v1025
        %v1082 = vunpack.c.l.b16 %v1026
        %v1083 = vunpack.c.l.b16 %v1027
        %v1084 = vunpack.c.l.b16 %v1028
        %v1085 = vunpack.c.l.b16 %v1029
        %v1086 = vunpack.c.l.b16 %v1030
        %v1087 = vunpack.c.l.b16 %v1031
        %v1088 = vunpack.c.l.b16 %v1032
        %v1089 = vunpack.c.l.b16 %v1033
        %v1090 = vunpack.c.l.b16 %v1034
        %v1091 = vunpack.c.l.b16 %v1035
        %v1092 = vunpack.c.l.b16 %v1036
        %v1093 = vunpack.c.l.b16 %v1037
        %v1094 = vunpack.c.l.b16 %v1038
        %v1095 = vunpack.c.l.b16 %v1039
        %v1096 = vunpack.c.l.b16 %v1040
        %v1097 = vunpack.c.l.b16 %v1041
        %v1098 = vunpack.c.l.b16 %v1042
        %v1099 = vunpack.c.l.b16 %v1043
        %v1100 = vunpack.c.l.b16 %v1044
        %v1101 = vunpack.c.l.b16 %v1045
        %v1102 = vunpack.c.l.b16 %v1046
        %v1103 = vunpack.c.l.b16 %v1047
        %v1104 = vunpack.c.l.b16 %v1048
        %v1105 = vunpack.c.l.b16 %v1049
        %v1106 = vunpack.c.l.b16 %v1050
        %v1107 = vunpack.c.l.b16 %v1051
        %v1108 = vpack.c.b16 %v1081, %v1080
        %v1109 = vpack.c.b16 %v1083, %v1082
        %v1110 = vpack.c.b16 %v1085, %v1084
        %v1111 = vpack.c.b16 %v1087, %v1086
        %v1112 = vpack.c.b16 %v1089, %v1088
        %v1113 = vpack.c.b16 %v1091, %v1090
        %v1114 = vpack.c.b16 %v1093, %v1092
        %v1115 = vpack.c.b16 %v1095, %v1094
        %v1116 = vpack.c.b16 %v1097, %v1096
        %v1117 = vpack.c.b16 %v1099, %v1098
        %v1118 = vpack.c.b16 %v1101, %v1100
        %v1119 = vpack.c.b16 %v1103, %v1102
        %v1120 = vpack.c.b16 %v1105, %v1104
        %v1121 = vpack.c.b16 %v1107, %v1106
        %1136 = vmatpush.bf16.msra.mxu0 %v498
        %1137 = vmatpush.bf16.msra.mxu0 %v497
        %1138 = vmatpush.bf16.msra.mxu0 %v496
        %1139 = vmatpush.bf16.msra.mxu0 %v495
        %1140 = vmatpush.bf16.msra.mxu0 %v494
        %1141 = vmatpush.bf16.msra.mxu0 %v493
        %1142 = vmatpush.bf16.msra.mxu0 %v492
        %1143 = vmatpush.bf16.msra.mxu0 %v491
        %1144 = vmatmul.bf16.gmra.mxu0 %v1108
        %v1145 = vpop.f32.mrf.mxu0
        %v1146 = vadd.f32 0.0, %v1145
        %v1147 = vpop.f32.mrf.mxu0
        %v1148 = vadd.f32 0.0, %v1147
        %1149 = vmatmul.bf16.gmra.mxu0 %v1109
        %v1150 = vpop.f32.mrf.mxu0
        %v1151 = vadd.f32 0.0, %v1150
        %v1152 = vpop.f32.mrf.mxu0
        %v1153 = vadd.f32 0.0, %v1152
        %1154 = vmatmul.bf16.gmra.mxu0 %v1110
        %v1155 = vpop.f32.mrf.mxu0
        %v1156 = vadd.f32 0.0, %v1155
        %v1157 = vpop.f32.mrf.mxu0
        %v1158 = vadd.f32 0.0, %v1157
        %1159 = vmatmul.bf16.gmra.mxu0 %v1111
        %v1160 = vpop.f32.mrf.mxu0
        %v1161 = vadd.f32 0.0, %v1160
        %v1162 = vpop.f32.mrf.mxu0
        %v1163 = vadd.f32 0.0, %v1162
        %1164 = vmatmul.bf16.gmra.mxu0 %v1112
        %v1165 = vpop.f32.mrf.mxu0
        %v1166 = vadd.f32 0.0, %v1165
        %v1167 = vpop.f32.mrf.mxu0
        %v1168 = vadd.f32 0.0, %v1167
        %1169 = vmatmul.bf16.gmra.mxu0 %v1113
        %v1170 = vpop.f32.mrf.mxu0
        %v1171 = vadd.f32 0.0, %v1170
        %v1172 = vpop.f32.mrf.mxu0
        %v1173 = vadd.f32 0.0, %v1172
        %1174 = vmatmul.bf16.gmra.mxu0 %v1114
        %v1175 = vpop.f32.mrf.mxu0
        %v1176 = vadd.f32 0.0, %v1175
        %v1177 = vpop.f32.mrf.mxu0
        %v1178 = vadd.f32 0.0, %v1177
        %1179 = vmatmul.bf16.gmra.mxu0 %v1115
        %v1180 = vpop.f32.mrf.mxu0
        %v1181 = vadd.f32 0.0, %v1180
        %v1182 = vpop.f32.mrf.mxu0
        %v1183 = vadd.f32 0.0, %v1182
        %1184 = vmatmul.bf16.gmra.mxu0 %v1116
        %v1185 = vpop.f32.mrf.mxu0
        %v1186 = vadd.f32 0.0, %v1185
        %v1187 = vpop.f32.mrf.mxu0
        %v1188 = vadd.f32 0.0, %v1187
        %1189 = vmatmul.bf16.gmra.mxu0 %v1117
        %v1190 = vpop.f32.mrf.mxu0
        %v1191 = vadd.f32 0.0, %v1190
        %v1192 = vpop.f32.mrf.mxu0
        %v1193 = vadd.f32 0.0, %v1192
        %1194 = vmatmul.bf16.gmra.mxu0 %v1118
        %v1195 = vpop.f32.mrf.mxu0
        %v1196 = vadd.f32 0.0, %v1195
        %v1197 = vpop.f32.mrf.mxu0
        %v1198 = vadd.f32 0.0, %v1197
        %1199 = vmatmul.bf16.gmra.mxu0 %v1119
        %v1200 = vpop.f32.mrf.mxu0
        %v1201 = vadd.f32 0.0, %v1200
        %v1202 = vpop.f32.mrf.mxu0
        %v1203 = vadd.f32 0.0, %v1202
        %1204 = vmatmul.bf16.gmra.mxu0 %v1120
        %v1205 = vpop.f32.mrf.mxu0
        %v1206 = vadd.f32 0.0, %v1205
        %v1207 = vpop.f32.mrf.mxu0
        %v1208 = vadd.f32 0.0, %v1207
        %1209 = vmatmul.bf16.gmra.mxu0 %v1121
        %v1210 = vpop.f32.mrf.mxu0
        %v1211 = vadd.f32 0.0, %v1210
        %v1212 = vpop.f32.mrf.mxu0
        %v1213 = vadd.f32 0.0, %v1212
        %1214 = vdwg.mxu0
        %v1215 = vmax.f32 %v996, %v1146
        %v1216 = vmax.f32 %v997, %v1148
        %v1217 = vmax.f32 %v998, %v1151
        %v1218 = vmax.f32 %v999, %v1153
        %v1219 = vmax.f32 %v1000, %v1156
        %v1220 = vmax.f32 %v1001, %v1158
        %v1221 = vmax.f32 %v1002, %v1161
        %v1222 = vmax.f32 %v1003, %v1163
        %v1223 = vmax.f32 %v1004, %v1166
        %v1224 = vmax.f32 %v1005, %v1168
        %v1225 = vmax.f32 %v1006, %v1171
        %v1226 = vmax.f32 %v1007, %v1173
        %v1227 = vmax.f32 %v1008, %v1176
        %v1228 = vmax.f32 %v1009, %v1178
        %v1229 = vmax.f32 %v1010, %v1181
        %v1230 = vmax.f32 %v1011, %v1183
        %v1231 = vmax.f32 %v1012, %v1186
        %v1232 = vmax.f32 %v1013, %v1188
        %v1233 = vmax.f32 %v1014, %v1191
        %v1234 = vmax.f32 %v1015, %v1193
        %v1235 = vmax.f32 %v1016, %v1196
        %v1236 = vmax.f32 %v1017, %v1198
        %v1237 = vmax.f32 %v1018, %v1201
        %v1238 = vmax.f32 %v1019, %v1203
        %v1239 = vmax.f32 %v1020, %v1206
        %v1240 = vmax.f32 %v1021, %v1208
        %v1241 = vmax.f32 %v1022, %v1211
        %v1242 = vmax.f32 %v1023, %v1213
        %v1243 = vld [vmem:[%s2] sm:$0x1]
        %v1245 = vperm.slane %v1243, 0
        %v1247 = vadd.f32 %v1215, %v1245
        %v1248 = vadd.f32 %v1216, %v1245
        %v1249 = vadd.f32 %v1217, %v1245
        %v1250 = vadd.f32 %v1218, %v1245
        %v1251 = vadd.f32 %v1219, %v1245
        %v1252 = vadd.f32 %v1220, %v1245
        %v1253 = vadd.f32 %v1221, %v1245
        %v1254 = vadd.f32 %v1222, %v1245
        %v1255 = vadd.f32 %v1223, %v1245
        %v1256 = vadd.f32 %v1224, %v1245
        %v1257 = vadd.f32 %v1225, %v1245
        %v1258 = vadd.f32 %v1226, %v1245
        %v1259 = vadd.f32 %v1227, %v1245
        %v1260 = vadd.f32 %v1228, %v1245
        %v1261 = vadd.f32 %v1229, %v1245
        %v1262 = vadd.f32 %v1230, %v1245
        %v1263 = vadd.f32 %v1231, %v1245
        %v1264 = vadd.f32 %v1232, %v1245
        %v1265 = vadd.f32 %v1233, %v1245
        %v1266 = vadd.f32 %v1234, %v1245
        %v1267 = vadd.f32 %v1235, %v1245
        %v1268 = vadd.f32 %v1236, %v1245
        %v1269 = vadd.f32 %v1237, %v1245
        %v1270 = vadd.f32 %v1238, %v1245
        %v1271 = vadd.f32 %v1239, %v1245
        %v1272 = vadd.f32 %v1240, %v1245
        %v1273 = vadd.f32 %v1241, %v1245
        %v1274 = vadd.f32 %v1242, %v1245
        %v1275 = vmax.f32 %v1247, 0.0
        %v1276 = vmax.f32 %v1248, 0.0
        %v1277 = vmax.f32 %v1249, 0.0
        %v1278 = vmax.f32 %v1250, 0.0
        %v1279 = vmax.f32 %v1251, 0.0
        %v1280 = vmax.f32 %v1252, 0.0
        %v1281 = vmax.f32 %v1253, 0.0
        %v1282 = vmax.f32 %v1254, 0.0
        %v1283 = vmax.f32 %v1255, 0.0
        %v1284 = vmax.f32 %v1256, 0.0
        %v1285 = vmax.f32 %v1257, 0.0
        %v1286 = vmax.f32 %v1258, 0.0
        %v1287 = vmax.f32 %v1259, 0.0
        %v1288 = vmax.f32 %v1260, 0.0
        %v1289 = vmax.f32 %v1261, 0.0
        %v1290 = vmax.f32 %v1262, 0.0
        %v1291 = vmax.f32 %v1263, 0.0
        %v1292 = vmax.f32 %v1264, 0.0
        %v1293 = vmax.f32 %v1265, 0.0
        %v1294 = vmax.f32 %v1266, 0.0
        %v1295 = vmax.f32 %v1267, 0.0
        %v1296 = vmax.f32 %v1268, 0.0
        %v1297 = vmax.f32 %v1269, 0.0
        %v1298 = vmax.f32 %v1270, 0.0
        %v1299 = vmax.f32 %v1271, 0.0
        %v1300 = vmax.f32 %v1272, 0.0
        %v1301 = vmax.f32 %v1273, 0.0
        %v1302 = vmax.f32 %v1274, 0.0
        %v1303 = vpack.c.bf16 %v1275, %v1275
        %v1304 = vpack.c.bf16 %v1276, %v1276
        %v1305 = vpack.c.bf16 %v1277, %v1277
        %v1306 = vpack.c.bf16 %v1278, %v1278
        %v1307 = vpack.c.bf16 %v1279, %v1279
        %v1308 = vpack.c.bf16 %v1280, %v1280
        %v1309 = vpack.c.bf16 %v1281, %v1281
        %v1310 = vpack.c.bf16 %v1282, %v1282
        %v1311 = vpack.c.bf16 %v1283, %v1283
        %v1312 = vpack.c.bf16 %v1284, %v1284
        %v1313 = vpack.c.bf16 %v1285, %v1285
        %v1314 = vpack.c.bf16 %v1286, %v1286
        %v1315 = vpack.c.bf16 %v1287, %v1287
        %v1316 = vpack.c.bf16 %v1288, %v1288
        %v1317 = vpack.c.bf16 %v1289, %v1289
        %v1318 = vpack.c.bf16 %v1290, %v1290
        %v1319 = vpack.c.bf16 %v1291, %v1291
        %v1320 = vpack.c.bf16 %v1292, %v1292
        %v1321 = vpack.c.bf16 %v1293, %v1293
        %v1322 = vpack.c.bf16 %v1294, %v1294
        %v1323 = vpack.c.bf16 %v1295, %v1295
        %v1324 = vpack.c.bf16 %v1296, %v1296
        %v1325 = vpack.c.bf16 %v1297, %v1297
        %v1326 = vpack.c.bf16 %v1298, %v1298
        %v1327 = vpack.c.bf16 %v1299, %v1299
        %v1328 = vpack.c.bf16 %v1300, %v1300
        %v1329 = vpack.c.bf16 %v1301, %v1301
        %v1330 = vpack.c.bf16 %v1302, %v1302
        %1331 = vst [vmem:[#allocation2] sm:$0xf] %v1303
        %1332 = vst [vmem:[#allocation2 + $0x4] sm:$0xf] %v1304
        %1333 = vst [vmem:[#allocation2 + $0x8] sm:$0xf] %v1305
        %1334 = vst [vmem:[#allocation2 + $0xc] sm:$0xf] %v1306
        %1335 = vst [vmem:[#allocation2 + $0x10] sm:$0xf] %v1307
        %1336 = vst [vmem:[#allocation2 + $0x14] sm:$0xf] %v1308
        %1337 = vst [vmem:[#allocation2 + $0x18] sm:$0xf] %v1309
        %1338 = vst [vmem:[#allocation2 + $0x1c] sm:$0xf] %v1310
        %1339 = vst [vmem:[#allocation2 + $0x20] sm:$0xf] %v1311
        %1340 = vst [vmem:[#allocation2 + $0x24] sm:$0xf] %v1312
        %1341 = vst [vmem:[#allocation2 + $0x28] sm:$0xf] %v1313
        %1342 = vst [vmem:[#allocation2 + $0x2c] sm:$0xf] %v1314
        %1343 = vst [vmem:[#allocation2 + $0x30] sm:$0xf] %v1315
        %1344 = vst [vmem:[#allocation2 + $0x34] sm:$0xf] %v1316
        %1345 = vst [vmem:[#allocation2 + $0x38] sm:$0xf] %v1317
        %1346 = vst [vmem:[#allocation2 + $0x3c] sm:$0xf] %v1318
        %1347 = vst [vmem:[#allocation2 + $0x40] sm:$0xf] %v1319
        %1348 = vst [vmem:[#allocation2 + $0x44] sm:$0xf] %v1320
        %1349 = vst [vmem:[#allocation2 + $0x48] sm:$0xf] %v1321
        %1350 = vst [vmem:[#allocation2 + $0x4c] sm:$0xf] %v1322
        %1351 = vst [vmem:[#allocation2 + $0x50] sm:$0xf] %v1323
        %1352 = vst [vmem:[#allocation2 + $0x54] sm:$0xf] %v1324
        %1353 = vst [vmem:[#allocation2 + $0x58] sm:$0xf] %v1325
        %1354 = vst [vmem:[#allocation2 + $0x5c] sm:$0xf] %v1326
        %1355 = vst [vmem:[#allocation2 + $0x60] sm:$0xf] %v1327
        %1356 = vst [vmem:[#allocation2 + $0x64] sm:$0xf] %v1328
        %1357 = vst [vmem:[#allocation2 + $0x68] sm:$0xf] %v1329
        %1358 = vst [vmem:[#allocation2 + $0x6c] sm:$0xf] %v1330
        %v1359 = vld [vmem:[#allocation2] sm:$0xf]
        %v1360 = vld [vmem:[#allocation2 + $0x4] sm:$0xf]
        %v1361 = vld [vmem:[#allocation2 + $0x8] sm:$0xf]
        %v1362 = vld [vmem:[#allocation2 + $0xc] sm:$0xf]
        %v1363 = vld [vmem:[#allocation2 + $0x10] sm:$0xf]
        %v1364 = vld [vmem:[#allocation2 + $0x14] sm:$0xf]
        %v1365 = vld [vmem:[#allocation2 + $0x18] sm:$0xf]
        %v1366 = vld [vmem:[#allocation2 + $0x1c] sm:$0xf]
        %v1367 = vld [vmem:[#allocation2 + $0x20] sm:$0xf]
        %v1368 = vld [vmem:[#allocation2 + $0x24] sm:$0xf]
        %v1369 = vld [vmem:[#allocation2 + $0x28] sm:$0xf]
        %v1370 = vld [vmem:[#allocation2 + $0x2c] sm:$0xf]
        %v1371 = vld [vmem:[#allocation2 + $0x30] sm:$0xf]
        %v1372 = vld [vmem:[#allocation2 + $0x34] sm:$0xf]
        %v1373 = vld [vmem:[#allocation2 + $0x38] sm:$0xf]
        %v1374 = vld [vmem:[#allocation2 + $0x3c] sm:$0xf]
        %v1375 = vld [vmem:[#allocation2 + $0x40] sm:$0xf]
        %v1376 = vld [vmem:[#allocation2 + $0x44] sm:$0xf]
        %v1377 = vld [vmem:[#allocation2 + $0x48] sm:$0xf]
        %v1378 = vld [vmem:[#allocation2 + $0x4c] sm:$0xf]
        %v1379 = vld [vmem:[#allocation2 + $0x50] sm:$0xf]
        %v1380 = vld [vmem:[#allocation2 + $0x54] sm:$0xf]
        %v1381 = vld [vmem:[#allocation2 + $0x58] sm:$0xf]
        %v1382 = vld [vmem:[#allocation2 + $0x5c] sm:$0x3]
        %v1383 = vld [vmem:[#allocation2 + $0x5c] sm:$0x7]
        %v1384 = vld [vmem:[#allocation2] sm:$0xe]
        %v1409 = vunpack.c.l.b16 %v1359
        %v1410 = vunpack.c.l.b16 %v1360
        %v1411 = vunpack.c.l.b16 %v1361
        %v1412 = vunpack.c.l.b16 %v1362
        %v1413 = vunpack.c.l.b16 %v1363
        %v1414 = vunpack.c.l.b16 %v1364
        %v1415 = vunpack.c.l.b16 %v1365
        %v1416 = vunpack.c.l.b16 %v1366
        %v1417 = vunpack.c.l.b16 %v1367
        %v1418 = vunpack.c.l.b16 %v1368
        %v1419 = vunpack.c.l.b16 %v1369
        %v1420 = vunpack.c.l.b16 %v1370
        %v1421 = vunpack.c.l.b16 %v1371
        %v1422 = vunpack.c.l.b16 %v1372
        %v1423 = vunpack.c.l.b16 %v1373
        %v1424 = vunpack.c.l.b16 %v1374
        %v1425 = vunpack.c.l.b16 %v1375
        %v1426 = vunpack.c.l.b16 %v1376
        %v1427 = vunpack.c.l.b16 %v1377
        %v1428 = vunpack.c.l.b16 %v1378
        %v1429 = vunpack.c.l.b16 %v1379
        %v1430 = vunpack.c.l.b16 %v1380
        %v1431 = vunpack.c.l.b16 %v1381
        %v1432 = vunpack.c.l.b16 %v1382
        %v1433 = vpack.c.b16 %v1410, %v1409
        %v1434 = vpack.c.b16 %v1412, %v1411
        %v1435 = vpack.c.b16 %v1414, %v1413
        %v1436 = vpack.c.b16 %v1416, %v1415
        %v1437 = vpack.c.b16 %v1418, %v1417
        %v1438 = vpack.c.b16 %v1420, %v1419
        %v1439 = vpack.c.b16 %v1422, %v1421
        %v1440 = vpack.c.b16 %v1424, %v1423
        %v1441 = vpack.c.b16 %v1426, %v1425
        %v1442 = vpack.c.b16 %v1428, %v1427
        %v1443 = vpack.c.b16 %v1430, %v1429
        %v1444 = vpack.c.b16 %v1432, %v1431
        %v1458 = vunpack.c.l.b16 %v1383
        %v1459 = vpack.c.b16 %v1458, %v1431
        %vm1460 = vsmask.f32 7424
        %v1462 = vshrl.u32 %v1433, 16
        %v1464 = vshll.u32 %v1433, 16
        %v1466 = vrot.slane %v1464, 1
        %v1467 = vor.u32 %v1462, %v1466
        %v1469 = vshll.u32 %v1434, 16
        %v1471 = vrot.slane %v1469, 1
        %v1472 = vsel %vm1460, %v1467, %v1471
        %v1473 = vshrl.u32 %v1434, 16
        %v1475 = vor.u32 %v1473, %v1471
        %v1477 = vshll.u32 %v1435, 16
        %v1479 = vrot.slane %v1477, 1
        %v1480 = vsel %vm1460, %v1475, %v1479
        %v1481 = vshrl.u32 %v1435, 16
        %v1483 = vor.u32 %v1481, %v1479
        %v1485 = vshll.u32 %v1436, 16
        %v1487 = vrot.slane %v1485, 1
        %v1488 = vsel %vm1460, %v1483, %v1487
        %v1489 = vshrl.u32 %v1436, 16
        %v1491 = vor.u32 %v1489, %v1487
        %v1493 = vshll.u32 %v1437, 16
        %v1495 = vrot.slane %v1493, 1
        %v1496 = vsel %vm1460, %v1491, %v1495
        %v1497 = vshrl.u32 %v1437, 16
        %v1499 = vor.u32 %v1497, %v1495
        %v1501 = vshll.u32 %v1438, 16
        %v1503 = vrot.slane %v1501, 1
        %v1504 = vsel %vm1460, %v1499, %v1503
        %v1505 = vshrl.u32 %v1438, 16
        %v1507 = vor.u32 %v1505, %v1503
        %v1509 = vshll.u32 %v1439, 16
        %v1511 = vrot.slane %v1509, 1
        %v1512 = vsel %vm1460, %v1507, %v1511
        %v1513 = vshrl.u32 %v1439, 16
        %v1515 = vor.u32 %v1513, %v1511
        %v1517 = vshll.u32 %v1440, 16
        %v1519 = vrot.slane %v1517, 1
        %v1520 = vsel %vm1460, %v1515, %v1519
        %v1521 = vshrl.u32 %v1440, 16
        %v1523 = vor.u32 %v1521, %v1519
        %v1525 = vshll.u32 %v1441, 16
        %v1527 = vrot.slane %v1525, 1
        %v1528 = vsel %vm1460, %v1523, %v1527
        %v1529 = vshrl.u32 %v1441, 16
        %v1531 = vor.u32 %v1529, %v1527
        %v1533 = vshll.u32 %v1442, 16
        %v1535 = vrot.slane %v1533, 1
        %v1536 = vsel %vm1460, %v1531, %v1535
        %v1537 = vshrl.u32 %v1442, 16
        %v1539 = vor.u32 %v1537, %v1535
        %v1541 = vshll.u32 %v1443, 16
        %v1543 = vrot.slane %v1541, 1
        %v1544 = vsel %vm1460, %v1539, %v1543
        %v1545 = vshrl.u32 %v1443, 16
        %v1547 = vor.u32 %v1545, %v1543
        %v1549 = vshll.u32 %v1459, 16
        %v1551 = vrot.slane %v1549, 1
        %v1552 = vsel %vm1460, %v1547, %v1551
        %v1553 = vshrl.u32 %v1459, 16
        %v1555 = vor.u32 %v1553, %v1551
        %v1569 = vunpack.c.l.b16 %v1384
        %v1570 = vpack.c.b16 %v1410, %v1569
        %vm1571 = vcmask 1046528
        %v1572 = vrot.slane %v1570, 1
        %v1573 = vrot.slane %v1434, 1
        %v1574 = vsel %vm1571, %v1572, %v1573
        %v1575 = vrot.slane %v1435, 1
        %v1576 = vsel %vm1571, %v1573, %v1575
        %v1577 = vrot.slane %v1436, 1
        %v1578 = vsel %vm1571, %v1575, %v1577
        %v1579 = vrot.slane %v1437, 1
        %v1580 = vsel %vm1571, %v1577, %v1579
        %v1581 = vrot.slane %v1438, 1
        %v1582 = vsel %vm1571, %v1579, %v1581
        %v1583 = vrot.slane %v1439, 1
        %v1584 = vsel %vm1571, %v1581, %v1583
        %v1585 = vrot.slane %v1440, 1
        %v1586 = vsel %vm1571, %v1583, %v1585
        %v1587 = vrot.slane %v1441, 1
        %v1588 = vsel %vm1571, %v1585, %v1587
        %v1589 = vrot.slane %v1442, 1
        %v1590 = vsel %vm1571, %v1587, %v1589
        %v1591 = vrot.slane %v1443, 1
        %v1592 = vsel %vm1571, %v1589, %v1591
        %v1593 = vrot.slane %v1459, 1
        %v1594 = vsel %vm1571, %v1591, %v1593
        %v1607 = vld [vmem:[%s3] sm:$0xf]
        %v1608 = vld [vmem:[%s3 + $0x4] sm:$0xf]
        %v1609 = vld [vmem:[%s3 + $0x8] sm:$0xf]
        %v1610 = vld [vmem:[%s3 + $0xc] sm:$0xf]
        %v1611 = vld [vmem:[%s3 + $0x10] sm:$0xf]
        %v1612 = vld [vmem:[%s3 + $0x14] sm:$0xf]
        %v1613 = vld [vmem:[%s3 + $0x18] sm:$0xf]
        %v1614 = vld [vmem:[%s3 + $0x1c] sm:$0xf]
        %v1615 = vld [vmem:[%s3 + $0x20] sm:$0xf]
        %v1616 = vld [vmem:[%s3 + $0x24] sm:$0xf]
        %v1617 = vld [vmem:[%s3 + $0x28] sm:$0xf]
        %v1618 = vld [vmem:[%s3 + $0x2c] sm:$0xf]
        %v1619 = vld [vmem:[%s3 + $0x30] sm:$0xf]
        %v1620 = vld [vmem:[%s3 + $0x34] sm:$0xf]
        %v1621 = vld [vmem:[%s3 + $0x38] sm:$0xf]
        %v1622 = vld [vmem:[%s3 + $0x3c] sm:$0xf]
        %v1623 = vld [vmem:[%s3 + $0x40] sm:$0xf]
        %v1624 = vld [vmem:[%s3 + $0x44] sm:$0xf]
        %v1625 = vld [vmem:[%s3 + $0x48] sm:$0xf]
        %v1626 = vld [vmem:[%s3 + $0x4c] sm:$0xf]
        %v1627 = vld [vmem:[%s3 + $0x50] sm:$0xf]
        %v1628 = vld [vmem:[%s3 + $0x54] sm:$0xf]
        %v1629 = vld [vmem:[%s3 + $0x58] sm:$0xf]
        %v1630 = vld [vmem:[%s3 + $0x5c] sm:$0xf]
        %v1631 = vld [vmem:[%s3 + $0x60] sm:$0xf]
        %v1632 = vld [vmem:[%s3 + $0x64] sm:$0xf]
        %v1633 = vld [vmem:[%s3 + $0x68] sm:$0xf]
        %v1634 = vld [vmem:[%s3 + $0x6c] sm:$0xf]
        %v1635 = vld [vmem:[%s3 + $0x70] sm:$0xf]
        %v1636 = vld [vmem:[%s3 + $0x74] sm:$0xf]
        %v1637 = vld [vmem:[%s3 + $0x78] sm:$0xf]
        %v1638 = vld [vmem:[%s3 + $0x7c] sm:$0xf]
        %v1639 = vld [vmem:[%s3 + $0x80] sm:$0xf]
        %v1640 = vld [vmem:[%s3 + $0x84] sm:$0xf]
        %v1641 = vld [vmem:[%s3 + $0x88] sm:$0xf]
        %v1642 = vld [vmem:[%s3 + $0x8c] sm:$0xf]
        %v1643 = vld [vmem:[%s3 + $0x90] sm:$0xf]
        %v1644 = vld [vmem:[%s3 + $0x94] sm:$0xf]
        %v1645 = vld [vmem:[%s3 + $0x98] sm:$0xf]
        %v1646 = vld [vmem:[%s3 + $0x9c] sm:$0xf]
        %v1647 = vld [vmem:[%s3 + $0xa0] sm:$0xf]
        %v1648 = vld [vmem:[%s3 + $0xa4] sm:$0xf]
        %v1649 = vld [vmem:[%s3 + $0xa8] sm:$0xf]
        %v1650 = vld [vmem:[%s3 + $0xac] sm:$0xf]
        %v1651 = vld [vmem:[%s3 + $0xb0] sm:$0xf]
        %v1652 = vld [vmem:[%s3 + $0xb4] sm:$0xf]
        %v1653 = vld [vmem:[%s3 + $0xb8] sm:$0xf]
        %v1654 = vld [vmem:[%s3 + $0xbc] sm:$0xf]
        %v1655 = vld [vmem:[#allocation2 + $0x5c] sm:$0xf]
        %v1656 = vld [vmem:[#allocation2 + $0x60] sm:$0xf]
        %v1657 = vld [vmem:[#allocation2 + $0x64] sm:$0x3]
        %v1658 = vld [vmem:[#allocation2 + $0x64] sm:$0x7]
        %v1659 = vld [vmem:[#allocation2 + $0x8] sm:$0xe]
        %v1663 = vunpack.c.l.b16 %v1655
        %v1664 = vunpack.c.l.b16 %v1656
        %v1665 = vunpack.c.l.b16 %v1657
        %v1666 = vpack.c.b16 %v1663, %v1431
        %v1667 = vpack.c.b16 %v1665, %v1664
        %v1671 = vunpack.c.l.b16 %v1658
        %v1672 = vpack.c.b16 %v1671, %v1664
        %v1674 = vshll.u32 %v1666, 16
        %v1676 = vrot.slane %v1674, 1
        %v1677 = vsel %vm1460, %v1547, %v1676
        %v1678 = vshrl.u32 %v1666, 16
        %v1680 = vor.u32 %v1678, %v1676
        %v1682 = vshll.u32 %v1672, 16
        %v1684 = vrot.slane %v1682, 1
        %v1685 = vsel %vm1460, %v1680, %v1684
        %v1686 = vshrl.u32 %v1672, 16
        %v1688 = vor.u32 %v1686, %v1684
        %v1693 = vunpack.c.l.b16 %v1659
        %v1694 = vpack.c.b16 %v1412, %v1693
        %v1695 = vrot.slane %v1694, 1
        %v1696 = vsel %vm1571, %v1695, %v1575
        %v1697 = vrot.slane %v1666, 1
        %v1698 = vsel %vm1571, %v1591, %v1697
        %v1699 = vrot.slane %v1672, 1
        %v1700 = vsel %vm1571, %v1697, %v1699
        %s1705 = scalar_lea.vmem %s3, 192
        %v1706 = vld [vmem:[%s1705] sm:$0xf]
        %v1707 = vld [vmem:[%s1705 + $0x4] sm:$0xf]
        %v1708 = vld [vmem:[%s1705 + $0x8] sm:$0xf]
        %v1709 = vld [vmem:[%s1705 + $0xc] sm:$0xf]
        %v1710 = vld [vmem:[%s1705 + $0x10] sm:$0xf]
        %v1711 = vld [vmem:[%s1705 + $0x14] sm:$0xf]
        %v1712 = vld [vmem:[%s1705 + $0x18] sm:$0xf]
        %v1713 = vld [vmem:[%s1705 + $0x1c] sm:$0xf]
        %v1714 = vld [vmem:[%s1705 + $0x20] sm:$0xf]
        %v1715 = vld [vmem:[%s1705 + $0x24] sm:$0xf]
        %v1716 = vld [vmem:[%s1705 + $0x28] sm:$0xf]
        %v1717 = vld [vmem:[%s1705 + $0x2c] sm:$0xf]
        %v1718 = vld [vmem:[%s1705 + $0x30] sm:$0xf]
        %v1719 = vld [vmem:[%s1705 + $0x34] sm:$0xf]
        %v1720 = vld [vmem:[%s1705 + $0x38] sm:$0xf]
        %v1721 = vld [vmem:[%s1705 + $0x3c] sm:$0xf]
        %v1722 = vld [vmem:[%s1705 + $0x40] sm:$0xf]
        %v1723 = vld [vmem:[%s1705 + $0x44] sm:$0xf]
        %v1724 = vld [vmem:[%s1705 + $0x48] sm:$0xf]
        %v1725 = vld [vmem:[%s1705 + $0x4c] sm:$0xf]
        %v1726 = vld [vmem:[%s1705 + $0x50] sm:$0xf]
        %v1727 = vld [vmem:[%s1705 + $0x54] sm:$0xf]
        %v1728 = vld [vmem:[%s1705 + $0x58] sm:$0xf]
        %v1729 = vld [vmem:[%s1705 + $0x5c] sm:$0xf]
        %v1730 = vld [vmem:[%s1705 + $0x60] sm:$0xf]
        %v1731 = vld [vmem:[%s1705 + $0x64] sm:$0xf]
        %v1732 = vld [vmem:[%s1705 + $0x68] sm:$0xf]
        %v1733 = vld [vmem:[%s1705 + $0x6c] sm:$0xf]
        %v1734 = vld [vmem:[%s1705 + $0x70] sm:$0xf]
        %v1735 = vld [vmem:[%s1705 + $0x74] sm:$0xf]
        %v1736 = vld [vmem:[%s1705 + $0x78] sm:$0xf]
        %v1737 = vld [vmem:[%s1705 + $0x7c] sm:$0xf]
        %v1738 = vld [vmem:[%s1705 + $0x80] sm:$0xf]
        %v1739 = vld [vmem:[%s1705 + $0x84] sm:$0xf]
        %v1740 = vld [vmem:[%s1705 + $0x88] sm:$0xf]
        %v1741 = vld [vmem:[%s1705 + $0x8c] sm:$0xf]
        %v1742 = vld [vmem:[%s1705 + $0x90] sm:$0xf]
        %v1743 = vld [vmem:[%s1705 + $0x94] sm:$0xf]
        %v1744 = vld [vmem:[%s1705 + $0x98] sm:$0xf]
        %v1745 = vld [vmem:[%s1705 + $0x9c] sm:$0xf]
        %v1746 = vld [vmem:[%s1705 + $0xa0] sm:$0xf]
        %v1747 = vld [vmem:[%s1705 + $0xa4] sm:$0xf]
        %v1748 = vld [vmem:[%s1705 + $0xa8] sm:$0xf]
        %v1749 = vld [vmem:[%s1705 + $0xac] sm:$0xf]
        %v1750 = vld [vmem:[%s1705 + $0xb0] sm:$0xf]
        %v1751 = vld [vmem:[%s1705 + $0xb4] sm:$0xf]
        %v1752 = vld [vmem:[%s1705 + $0xb8] sm:$0xf]
        %v1753 = vld [vmem:[%s1705 + $0xbc] sm:$0xf]
        %v1802 = vunpack.c.l.b16 %v1706
        %v1803 = vunpack.c.l.b16 %v1707
        %v1804 = vunpack.c.l.b16 %v1708
        %v1805 = vunpack.c.l.b16 %v1709
        %v1806 = vunpack.c.l.b16 %v1710
        %v1807 = vunpack.c.l.b16 %v1711
        %v1808 = vunpack.c.l.b16 %v1712
        %v1809 = vunpack.c.l.b16 %v1713
        %v1810 = vunpack.c.l.b16 %v1714
        %v1811 = vunpack.c.l.b16 %v1715
        %v1812 = vunpack.c.l.b16 %v1716
        %v1813 = vunpack.c.l.b16 %v1717
        %v1814 = vunpack.c.l.b16 %v1718
        %v1815 = vunpack.c.l.b16 %v1719
        %v1816 = vunpack.c.l.b16 %v1720
        %v1817 = vunpack.c.l.b16 %v1721
        %v1818 = vunpack.c.l.b16 %v1722
        %v1819 = vunpack.c.l.b16 %v1723
        %v1820 = vunpack.c.l.b16 %v1724
        %v1821 = vunpack.c.l.b16 %v1725
        %v1822 = vunpack.c.l.b16 %v1726
        %v1823 = vunpack.c.l.b16 %v1727
        %v1824 = vunpack.c.l.b16 %v1728
        %v1825 = vunpack.c.l.b16 %v1729
        %v1826 = vunpack.c.l.b16 %v1730
        %v1827 = vunpack.c.l.b16 %v1731
        %v1828 = vunpack.c.l.b16 %v1732
        %v1829 = vunpack.c.l.b16 %v1733
        %v1830 = vunpack.c.l.b16 %v1734
        %v1831 = vunpack.c.l.b16 %v1735
        %v1832 = vunpack.c.l.b16 %v1736
        %v1833 = vunpack.c.l.b16 %v1737
        %v1834 = vunpack.c.l.b16 %v1738
        %v1835 = vunpack.c.l.b16 %v1739
        %v1836 = vunpack.c.l.b16 %v1740
        %v1837 = vunpack.c.l.b16 %v1741
        %v1838 = vunpack.c.l.b16 %v1742
        %v1839 = vunpack.c.l.b16 %v1743
        %v1840 = vunpack.c.l.b16 %v1744
        %v1841 = vunpack.c.l.b16 %v1745
        %v1842 = vunpack.c.l.b16 %v1746
        %v1843 = vunpack.c.l.b16 %v1747
        %v1844 = vunpack.c.l.b16 %v1748
        %v1845 = vunpack.c.l.b16 %v1749
        %v1846 = vunpack.c.l.b16 %v1750
        %v1847 = vunpack.c.l.b16 %v1751
        %v1848 = vunpack.c.l.b16 %v1752
        %v1849 = vunpack.c.l.b16 %v1753
        %v1850 = vpack.c.b16 %v1803, %v1802
        %v1851 = vpack.c.b16 %v1805, %v1804
        %v1852 = vpack.c.b16 %v1807, %v1806
        %v1853 = vpack.c.b16 %v1809, %v1808
        %v1854 = vpack.c.b16 %v1811, %v1810
        %v1855 = vpack.c.b16 %v1813, %v1812
        %v1856 = vpack.c.b16 %v1815, %v1814
        %v1857 = vpack.c.b16 %v1817, %v1816
        %v1858 = vpack.c.b16 %v1819, %v1818
        %v1859 = vpack.c.b16 %v1821, %v1820
        %v1860 = vpack.c.b16 %v1823, %v1822
        %v1861 = vpack.c.b16 %v1825, %v1824
        %v1862 = vpack.c.b16 %v1827, %v1826
        %v1863 = vpack.c.b16 %v1829, %v1828
        %v1864 = vpack.c.b16 %v1831, %v1830
        %v1865 = vpack.c.b16 %v1833, %v1832
        %v1866 = vpack.c.b16 %v1835, %v1834
        %v1867 = vpack.c.b16 %v1837, %v1836
        %v1868 = vpack.c.b16 %v1839, %v1838
        %v1869 = vpack.c.b16 %v1841, %v1840
        %v1870 = vpack.c.b16 %v1843, %v1842
        %v1871 = vpack.c.b16 %v1845, %v1844
        %v1872 = vpack.c.b16 %v1847, %v1846
        %v1873 = vpack.c.b16 %v1849, %v1848
        %1898 = vmatpush.bf16.msra.mxu0 %v1857
        %1899 = vmatpush.bf16.msra.mxu0 %v1856
        %1900 = vmatpush.bf16.msra.mxu0 %v1855
        %1901 = vmatpush.bf16.msra.mxu0 %v1854
        %1902 = vmatpush.bf16.msra.mxu0 %v1853
        %1903 = vmatpush.bf16.msra.mxu0 %v1852
        %1904 = vmatpush.bf16.msra.mxu0 %v1851
        %1905 = vmatpush.bf16.msra.mxu0 %v1850
        %1906 = vmatmul.bf16.gmra.mxu0 %v1434
        %v1907 = vpop.f32.mrf.mxu0
        %v1908 = vadd.f32 0.0, %v1907
        %v1909 = vpop.f32.mrf.mxu0
        %v1910 = vadd.f32 0.0, %v1909
        %1911 = vmatmul.bf16.gmra.mxu0 %v1435
        %v1912 = vpop.f32.mrf.mxu0
        %v1913 = vadd.f32 0.0, %v1912
        %v1914 = vpop.f32.mrf.mxu0
        %v1915 = vadd.f32 0.0, %v1914
        %1916 = vmatmul.bf16.gmra.mxu0 %v1436
        %v1917 = vpop.f32.mrf.mxu0
        %v1918 = vadd.f32 0.0, %v1917
        %v1919 = vpop.f32.mrf.mxu0
        %v1920 = vadd.f32 0.0, %v1919
        %1921 = vmatmul.bf16.gmra.mxu0 %v1437
        %v1922 = vpop.f32.mrf.mxu0
        %v1923 = vadd.f32 0.0, %v1922
        %v1924 = vpop.f32.mrf.mxu0
        %v1925 = vadd.f32 0.0, %v1924
        %1926 = vmatmul.bf16.gmra.mxu0 %v1438
        %v1927 = vpop.f32.mrf.mxu0
        %v1928 = vadd.f32 0.0, %v1927
        %v1929 = vpop.f32.mrf.mxu0
        %v1930 = vadd.f32 0.0, %v1929
        %1931 = vmatmul.bf16.gmra.mxu0 %v1439
        %v1932 = vpop.f32.mrf.mxu0
        %v1933 = vadd.f32 0.0, %v1932
        %v1934 = vpop.f32.mrf.mxu0
        %v1935 = vadd.f32 0.0, %v1934
        %1936 = vmatmul.bf16.gmra.mxu0 %v1440
        %v1937 = vpop.f32.mrf.mxu0
        %v1938 = vadd.f32 0.0, %v1937
        %v1939 = vpop.f32.mrf.mxu0
        %v1940 = vadd.f32 0.0, %v1939
        %1941 = vmatmul.bf16.gmra.mxu0 %v1441
        %v1942 = vpop.f32.mrf.mxu0
        %v1943 = vadd.f32 0.0, %v1942
        %v1944 = vpop.f32.mrf.mxu0
        %v1945 = vadd.f32 0.0, %v1944
        %1946 = vmatmul.bf16.gmra.mxu0 %v1442
        %v1947 = vpop.f32.mrf.mxu0
        %v1948 = vadd.f32 0.0, %v1947
        %v1949 = vpop.f32.mrf.mxu0
        %v1950 = vadd.f32 0.0, %v1949
        %1951 = vmatmul.bf16.gmra.mxu0 %v1443
        %v1952 = vpop.f32.mrf.mxu0
        %v1953 = vadd.f32 0.0, %v1952
        %v1954 = vpop.f32.mrf.mxu0
        %v1955 = vadd.f32 0.0, %v1954
        %1956 = vmatmul.bf16.gmra.mxu0 %v1666
        %v1957 = vpop.f32.mrf.mxu0
        %v1958 = vadd.f32 0.0, %v1957
        %v1959 = vpop.f32.mrf.mxu0
        %v1960 = vadd.f32 0.0, %v1959
        %1961 = vmatmul.bf16.gmra.mxu0 %v1667
        %v1962 = vpop.f32.mrf.mxu0
        %v1963 = vadd.f32 0.0, %v1962
        %v1964 = vpop.f32.mrf.mxu0
        %v1965 = vadd.f32 0.0, %v1964
        %1966 = vdwg.mxu0
        %1967 = vmatpush.bf16.msra.mxu0 %v1865
        %1968 = vmatpush.bf16.msra.mxu0 %v1864
        %1969 = vmatpush.bf16.msra.mxu0 %v1863
        %1970 = vmatpush.bf16.msra.mxu0 %v1862
        %1971 = vmatpush.bf16.msra.mxu0 %v1861
        %1972 = vmatpush.bf16.msra.mxu0 %v1860
        %1973 = vmatpush.bf16.msra.mxu0 %v1859
        %1974 = vmatpush.bf16.msra.mxu0 %v1858
        %1975 = vmatmul.bf16.gmra.mxu0 %v1480
        %v1976 = vpop.f32.mrf.mxu0
        %v1977 = vadd.f32 %v1908, %v1976
        %v1978 = vpop.f32.mrf.mxu0
        %v1979 = vadd.f32 %v1910, %v1978
        %1980 = vmatmul.bf16.gmra.mxu0 %v1488
        %v1981 = vpop.f32.mrf.mxu0
        %v1982 = vadd.f32 %v1913, %v1981
        %v1983 = vpop.f32.mrf.mxu0
        %v1984 = vadd.f32 %v1915, %v1983
        %1985 = vmatmul.bf16.gmra.mxu0 %v1496
        %v1986 = vpop.f32.mrf.mxu0
        %v1987 = vadd.f32 %v1918, %v1986
        %v1988 = vpop.f32.mrf.mxu0
        %v1989 = vadd.f32 %v1920, %v1988
        %1990 = vmatmul.bf16.gmra.mxu0 %v1504
        %v1991 = vpop.f32.mrf.mxu0
        %v1992 = vadd.f32 %v1923, %v1991
        %v1993 = vpop.f32.mrf.mxu0
        %v1994 = vadd.f32 %v1925, %v1993
        %1995 = vmatmul.bf16.gmra.mxu0 %v1512
        %v1996 = vpop.f32.mrf.mxu0
        %v1997 = vadd.f32 %v1928, %v1996
        %v1998 = vpop.f32.mrf.mxu0
        %v1999 = vadd.f32 %v1930, %v1998
        %2000 = vmatmul.bf16.gmra.mxu0 %v1520
        %v2001 = vpop.f32.mrf.mxu0
        %v2002 = vadd.f32 %v1933, %v2001
        %v2003 = vpop.f32.mrf.mxu0
        %v2004 = vadd.f32 %v1935, %v2003
        %2005 = vmatmul.bf16.gmra.mxu0 %v1528
        %v2006 = vpop.f32.mrf.mxu0
        %v2007 = vadd.f32 %v1938, %v2006
        %v2008 = vpop.f32.mrf.mxu0
        %v2009 = vadd.f32 %v1940, %v2008
        %2010 = vmatmul.bf16.gmra.mxu0 %v1536
        %v2011 = vpop.f32.mrf.mxu0
        %v2012 = vadd.f32 %v1943, %v2011
        %v2013 = vpop.f32.mrf.mxu0
        %v2014 = vadd.f32 %v1945, %v2013
        %2015 = vmatmul.bf16.gmra.mxu0 %v1544
        %v2016 = vpop.f32.mrf.mxu0
        %v2017 = vadd.f32 %v1948, %v2016
        %v2018 = vpop.f32.mrf.mxu0
        %v2019 = vadd.f32 %v1950, %v2018
        %2020 = vmatmul.bf16.gmra.mxu0 %v1677
        %v2021 = vpop.f32.mrf.mxu0
        %v2022 = vadd.f32 %v1953, %v2021
        %v2023 = vpop.f32.mrf.mxu0
        %v2024 = vadd.f32 %v1955, %v2023
        %2025 = vmatmul.bf16.gmra.mxu0 %v1685
        %v2026 = vpop.f32.mrf.mxu0
        %v2027 = vadd.f32 %v1958, %v2026
        %v2028 = vpop.f32.mrf.mxu0
        %v2029 = vadd.f32 %v1960, %v2028
        %2030 = vmatmul.bf16.gmra.mxu0 %v1688
        %v2031 = vpop.f32.mrf.mxu0
        %v2032 = vadd.f32 %v1963, %v2031
        %v2033 = vpop.f32.mrf.mxu0
        %v2034 = vadd.f32 %v1965, %v2033
        %2035 = vdwg.mxu0
        %2036 = vmatpush.bf16.msra.mxu0 %v1873
        %2037 = vmatpush.bf16.msra.mxu0 %v1872
        %2038 = vmatpush.bf16.msra.mxu0 %v1871
        %2039 = vmatpush.bf16.msra.mxu0 %v1870
        %2040 = vmatpush.bf16.msra.mxu0 %v1869
        %2041 = vmatpush.bf16.msra.mxu0 %v1868
        %2042 = vmatpush.bf16.msra.mxu0 %v1867
        %2043 = vmatpush.bf16.msra.mxu0 %v1866
        %2044 = vmatmul.bf16.gmra.mxu0 %v1696
        %v2045 = vpop.f32.mrf.mxu0
        %v2046 = vadd.f32 %v1977, %v2045
        %v2047 = vpop.f32.mrf.mxu0
        %v2048 = vadd.f32 %v1979, %v2047
        %2049 = vmatmul.bf16.gmra.mxu0 %v1578
        %v2050 = vpop.f32.mrf.mxu0
        %v2051 = vadd.f32 %v1982, %v2050
        %v2052 = vpop.f32.mrf.mxu0
        %v2053 = vadd.f32 %v1984, %v2052
        %2054 = vmatmul.bf16.gmra.mxu0 %v1580
        %v2055 = vpop.f32.mrf.mxu0
        %v2056 = vadd.f32 %v1987, %v2055
        %v2057 = vpop.f32.mrf.mxu0
        %v2058 = vadd.f32 %v1989, %v2057
        %2059 = vmatmul.bf16.gmra.mxu0 %v1582
        %v2060 = vpop.f32.mrf.mxu0
        %v2061 = vadd.f32 %v1992, %v2060
        %v2062 = vpop.f32.mrf.mxu0
        %v2063 = vadd.f32 %v1994, %v2062
        %2064 = vmatmul.bf16.gmra.mxu0 %v1584
        %v2065 = vpop.f32.mrf.mxu0
        %v2066 = vadd.f32 %v1997, %v2065
        %v2067 = vpop.f32.mrf.mxu0
        %v2068 = vadd.f32 %v1999, %v2067
        %2069 = vmatmul.bf16.gmra.mxu0 %v1586
        %v2070 = vpop.f32.mrf.mxu0
        %v2071 = vadd.f32 %v2002, %v2070
        %v2072 = vpop.f32.mrf.mxu0
        %v2073 = vadd.f32 %v2004, %v2072
        %2074 = vmatmul.bf16.gmra.mxu0 %v1588
        %v2075 = vpop.f32.mrf.mxu0
        %v2076 = vadd.f32 %v2007, %v2075
        %v2077 = vpop.f32.mrf.mxu0
        %v2078 = vadd.f32 %v2009, %v2077
        %2079 = vmatmul.bf16.gmra.mxu0 %v1590
        %v2080 = vpop.f32.mrf.mxu0
        %v2081 = vadd.f32 %v2012, %v2080
        %v2082 = vpop.f32.mrf.mxu0
        %v2083 = vadd.f32 %v2014, %v2082
        %2084 = vmatmul.bf16.gmra.mxu0 %v1592
        %v2085 = vpop.f32.mrf.mxu0
        %v2086 = vadd.f32 %v2017, %v2085
        %v2087 = vpop.f32.mrf.mxu0
        %v2088 = vadd.f32 %v2019, %v2087
        %2089 = vmatmul.bf16.gmra.mxu0 %v1698
        %v2090 = vpop.f32.mrf.mxu0
        %v2091 = vadd.f32 %v2022, %v2090
        %v2092 = vpop.f32.mrf.mxu0
        %v2093 = vadd.f32 %v2024, %v2092
        %2094 = vmatmul.bf16.gmra.mxu0 %v1700
        %v2095 = vpop.f32.mrf.mxu0
        %v2096 = vadd.f32 %v2027, %v2095
        %v2097 = vpop.f32.mrf.mxu0
        %v2098 = vadd.f32 %v2029, %v2097
        %2099 = vmatmul.bf16.gmra.mxu0 %v1699
        %v2100 = vpop.f32.mrf.mxu0
        %v2101 = vadd.f32 %v2032, %v2100
        %v2102 = vpop.f32.mrf.mxu0
        %v2103 = vadd.f32 %v2034, %v2102
        %2104 = vdwg.mxu0
        %v2153 = vunpack.c.l.b16 %v1607
        %v2154 = vunpack.c.l.b16 %v1608
        %v2155 = vunpack.c.l.b16 %v1609
        %v2156 = vunpack.c.l.b16 %v1610
        %v2157 = vunpack.c.l.b16 %v1611
        %v2158 = vunpack.c.l.b16 %v1612
        %v2159 = vunpack.c.l.b16 %v1613
        %v2160 = vunpack.c.l.b16 %v1614
        %v2161 = vunpack.c.l.b16 %v1615
        %v2162 = vunpack.c.l.b16 %v1616
        %v2163 = vunpack.c.l.b16 %v1617
        %v2164 = vunpack.c.l.b16 %v1618
        %v2165 = vunpack.c.l.b16 %v1619
        %v2166 = vunpack.c.l.b16 %v1620
        %v2167 = vunpack.c.l.b16 %v1621
        %v2168 = vunpack.c.l.b16 %v1622
        %v2169 = vunpack.c.l.b16 %v1623
        %v2170 = vunpack.c.l.b16 %v1624
        %v2171 = vunpack.c.l.b16 %v1625
        %v2172 = vunpack.c.l.b16 %v1626
        %v2173 = vunpack.c.l.b16 %v1627
        %v2174 = vunpack.c.l.b16 %v1628
        %v2175 = vunpack.c.l.b16 %v1629
        %v2176 = vunpack.c.l.b16 %v1630
        %v2177 = vunpack.c.l.b16 %v1631
        %v2178 = vunpack.c.l.b16 %v1632
        %v2179 = vunpack.c.l.b16 %v1633
        %v2180 = vunpack.c.l.b16 %v1634
        %v2181 = vunpack.c.l.b16 %v1635
        %v2182 = vunpack.c.l.b16 %v1636
        %v2183 = vunpack.c.l.b16 %v1637
        %v2184 = vunpack.c.l.b16 %v1638
        %v2185 = vunpack.c.l.b16 %v1639
        %v2186 = vunpack.c.l.b16 %v1640
        %v2187 = vunpack.c.l.b16 %v1641
        %v2188 = vunpack.c.l.b16 %v1642
        %v2189 = vunpack.c.l.b16 %v1643
        %v2190 = vunpack.c.l.b16 %v1644
        %v2191 = vunpack.c.l.b16 %v1645
        %v2192 = vunpack.c.l.b16 %v1646
        %v2193 = vunpack.c.l.b16 %v1647
        %v2194 = vunpack.c.l.b16 %v1648
        %v2195 = vunpack.c.l.b16 %v1649
        %v2196 = vunpack.c.l.b16 %v1650
        %v2197 = vunpack.c.l.b16 %v1651
        %v2198 = vunpack.c.l.b16 %v1652
        %v2199 = vunpack.c.l.b16 %v1653
        %v2200 = vunpack.c.l.b16 %v1654
        %v2201 = vpack.c.b16 %v2154, %v2153
        %v2202 = vpack.c.b16 %v2156, %v2155
        %v2203 = vpack.c.b16 %v2158, %v2157
        %v2204 = vpack.c.b16 %v2160, %v2159
        %v2205 = vpack.c.b16 %v2162, %v2161
        %v2206 = vpack.c.b16 %v2164, %v2163
        %v2207 = vpack.c.b16 %v2166, %v2165
        %v2208 = vpack.c.b16 %v2168, %v2167
        %v2209 = vpack.c.b16 %v2170, %v2169
        %v2210 = vpack.c.b16 %v2172, %v2171
        %v2211 = vpack.c.b16 %v2174, %v2173
        %v2212 = vpack.c.b16 %v2176, %v2175
        %v2213 = vpack.c.b16 %v2178, %v2177
        %v2214 = vpack.c.b16 %v2180, %v2179
        %v2215 = vpack.c.b16 %v2182, %v2181
        %v2216 = vpack.c.b16 %v2184, %v2183
        %v2217 = vpack.c.b16 %v2186, %v2185
        %v2218 = vpack.c.b16 %v2188, %v2187
        %v2219 = vpack.c.b16 %v2190, %v2189
        %v2220 = vpack.c.b16 %v2192, %v2191
        %v2221 = vpack.c.b16 %v2194, %v2193
        %v2222 = vpack.c.b16 %v2196, %v2195
        %v2223 = vpack.c.b16 %v2198, %v2197
        %v2224 = vpack.c.b16 %v2200, %v2199
        %2249 = vmatpush.bf16.msra.mxu0 %v2208
        %2250 = vmatpush.bf16.msra.mxu0 %v2207
        %2251 = vmatpush.bf16.msra.mxu0 %v2206
        %2252 = vmatpush.bf16.msra.mxu0 %v2205
        %2253 = vmatpush.bf16.msra.mxu0 %v2204
        %2254 = vmatpush.bf16.msra.mxu0 %v2203
        %2255 = vmatpush.bf16.msra.mxu0 %v2202
        %2256 = vmatpush.bf16.msra.mxu0 %v2201
        %2257 = vmatmul.bf16.gmra.mxu0 %v1433
        %v2258 = vpop.f32.mrf.mxu0
        %v2259 = vadd.f32 %v2046, %v2258
        %v2260 = vpop.f32.mrf.mxu0
        %v2261 = vadd.f32 %v2048, %v2260
        %2262 = vmatmul.bf16.gmra.mxu0 %v1434
        %v2263 = vpop.f32.mrf.mxu0
        %v2264 = vadd.f32 %v2051, %v2263
        %v2265 = vpop.f32.mrf.mxu0
        %v2266 = vadd.f32 %v2053, %v2265
        %2267 = vmatmul.bf16.gmra.mxu0 %v1435
        %v2268 = vpop.f32.mrf.mxu0
        %v2269 = vadd.f32 %v2056, %v2268
        %v2270 = vpop.f32.mrf.mxu0
        %v2271 = vadd.f32 %v2058, %v2270
        %2272 = vmatmul.bf16.gmra.mxu0 %v1436
        %v2273 = vpop.f32.mrf.mxu0
        %v2274 = vadd.f32 %v2061, %v2273
        %v2275 = vpop.f32.mrf.mxu0
        %v2276 = vadd.f32 %v2063, %v2275
        %2277 = vmatmul.bf16.gmra.mxu0 %v1437
        %v2278 = vpop.f32.mrf.mxu0
        %v2279 = vadd.f32 %v2066, %v2278
        %v2280 = vpop.f32.mrf.mxu0
        %v2281 = vadd.f32 %v2068, %v2280
        %2282 = vmatmul.bf16.gmra.mxu0 %v1438
        %v2283 = vpop.f32.mrf.mxu0
        %v2284 = vadd.f32 %v2071, %v2283
        %v2285 = vpop.f32.mrf.mxu0
        %v2286 = vadd.f32 %v2073, %v2285
        %2287 = vmatmul.bf16.gmra.mxu0 %v1439
        %v2288 = vpop.f32.mrf.mxu0
        %v2289 = vadd.f32 %v2076, %v2288
        %v2290 = vpop.f32.mrf.mxu0
        %v2291 = vadd.f32 %v2078, %v2290
        %2292 = vmatmul.bf16.gmra.mxu0 %v1440
        %v2293 = vpop.f32.mrf.mxu0
        %v2294 = vadd.f32 %v2081, %v2293
        %v2295 = vpop.f32.mrf.mxu0
        %v2296 = vadd.f32 %v2083, %v2295
        %2297 = vmatmul.bf16.gmra.mxu0 %v1441
        %v2298 = vpop.f32.mrf.mxu0
        %v2299 = vadd.f32 %v2086, %v2298
        %v2300 = vpop.f32.mrf.mxu0
        %v2301 = vadd.f32 %v2088, %v2300
        %2302 = vmatmul.bf16.gmra.mxu0 %v1442
        %v2303 = vpop.f32.mrf.mxu0
        %v2304 = vadd.f32 %v2091, %v2303
        %v2305 = vpop.f32.mrf.mxu0
        %v2306 = vadd.f32 %v2093, %v2305
        %2307 = vmatmul.bf16.gmra.mxu0 %v1443
        %v2308 = vpop.f32.mrf.mxu0
        %v2309 = vadd.f32 %v2096, %v2308
        %v2310 = vpop.f32.mrf.mxu0
        %v2311 = vadd.f32 %v2098, %v2310
        %2312 = vmatmul.bf16.gmra.mxu0 %v1444
        %v2313 = vpop.f32.mrf.mxu0
        %v2314 = vadd.f32 %v2101, %v2313
        %v2315 = vpop.f32.mrf.mxu0
        %v2316 = vadd.f32 %v2103, %v2315
        %2317 = vdwg.mxu0
        %2318 = vmatpush.bf16.msra.mxu0 %v2216
        %2319 = vmatpush.bf16.msra.mxu0 %v2215
        %2320 = vmatpush.bf16.msra.mxu0 %v2214
        %2321 = vmatpush.bf16.msra.mxu0 %v2213
        %2322 = vmatpush.bf16.msra.mxu0 %v2212
        %2323 = vmatpush.bf16.msra.mxu0 %v2211
        %2324 = vmatpush.bf16.msra.mxu0 %v2210
        %2325 = vmatpush.bf16.msra.mxu0 %v2209
        %2326 = vmatmul.bf16.gmra.mxu0 %v1472
        %v2327 = vpop.f32.mrf.mxu0
        %v2328 = vadd.f32 %v2259, %v2327
        %v2329 = vpop.f32.mrf.mxu0
        %v2330 = vadd.f32 %v2261, %v2329
        %2331 = vmatmul.bf16.gmra.mxu0 %v1480
        %v2332 = vpop.f32.mrf.mxu0
        %v2333 = vadd.f32 %v2264, %v2332
        %v2334 = vpop.f32.mrf.mxu0
        %v2335 = vadd.f32 %v2266, %v2334
        %2336 = vmatmul.bf16.gmra.mxu0 %v1488
        %v2337 = vpop.f32.mrf.mxu0
        %v2338 = vadd.f32 %v2269, %v2337
        %v2339 = vpop.f32.mrf.mxu0
        %v2340 = vadd.f32 %v2271, %v2339
        %2341 = vmatmul.bf16.gmra.mxu0 %v1496
        %v2342 = vpop.f32.mrf.mxu0
        %v2343 = vadd.f32 %v2274, %v2342
        %v2344 = vpop.f32.mrf.mxu0
        %v2345 = vadd.f32 %v2276, %v2344
        %2346 = vmatmul.bf16.gmra.mxu0 %v1504
        %v2347 = vpop.f32.mrf.mxu0
        %v2348 = vadd.f32 %v2279, %v2347
        %v2349 = vpop.f32.mrf.mxu0
        %v2350 = vadd.f32 %v2281, %v2349
        %2351 = vmatmul.bf16.gmra.mxu0 %v1512
        %v2352 = vpop.f32.mrf.mxu0
        %v2353 = vadd.f32 %v2284, %v2352
        %v2354 = vpop.f32.mrf.mxu0
        %v2355 = vadd.f32 %v2286, %v2354
        %2356 = vmatmul.bf16.gmra.mxu0 %v1520
        %v2357 = vpop.f32.mrf.mxu0
        %v2358 = vadd.f32 %v2289, %v2357
        %v2359 = vpop.f32.mrf.mxu0
        %v2360 = vadd.f32 %v2291, %v2359
        %2361 = vmatmul.bf16.gmra.mxu0 %v1528
        %v2362 = vpop.f32.mrf.mxu0
        %v2363 = vadd.f32 %v2294, %v2362
        %v2364 = vpop.f32.mrf.mxu0
        %v2365 = vadd.f32 %v2296, %v2364
        %2366 = vmatmul.bf16.gmra.mxu0 %v1536
        %v2367 = vpop.f32.mrf.mxu0
        %v2368 = vadd.f32 %v2299, %v2367
        %v2369 = vpop.f32.mrf.mxu0
        %v2370 = vadd.f32 %v2301, %v2369
        %2371 = vmatmul.bf16.gmra.mxu0 %v1544
        %v2372 = vpop.f32.mrf.mxu0
        %v2373 = vadd.f32 %v2304, %v2372
        %v2374 = vpop.f32.mrf.mxu0
        %v2375 = vadd.f32 %v2306, %v2374
        %2376 = vmatmul.bf16.gmra.mxu0 %v1552
        %v2377 = vpop.f32.mrf.mxu0
        %v2378 = vadd.f32 %v2309, %v2377
        %v2379 = vpop.f32.mrf.mxu0
        %v2380 = vadd.f32 %v2311, %v2379
        %2381 = vmatmul.bf16.gmra.mxu0 %v1555
        %v2382 = vpop.f32.mrf.mxu0
        %v2383 = vadd.f32 %v2314, %v2382
        %v2384 = vpop.f32.mrf.mxu0
        %v2385 = vadd.f32 %v2316, %v2384
        %2386 = vdwg.mxu0
        %2387 = vmatpush.bf16.msra.mxu0 %v2224
        %2388 = vmatpush.bf16.msra.mxu0 %v2223
        %2389 = vmatpush.bf16.msra.mxu0 %v2222
        %2390 = vmatpush.bf16.msra.mxu0 %v2221
        %2391 = vmatpush.bf16.msra.mxu0 %v2220
        %2392 = vmatpush.bf16.msra.mxu0 %v2219
        %2393 = vmatpush.bf16.msra.mxu0 %v2218
        %2394 = vmatpush.bf16.msra.mxu0 %v2217
        %2395 = vmatmul.bf16.gmra.mxu0 %v1574
        %v2396 = vpop.f32.mrf.mxu0
        %v2397 = vadd.f32 %v2328, %v2396
        %v2398 = vpop.f32.mrf.mxu0
        %v2399 = vadd.f32 %v2330, %v2398
        %2400 = vmatmul.bf16.gmra.mxu0 %v1576
        %v2401 = vpop.f32.mrf.mxu0
        %v2402 = vadd.f32 %v2333, %v2401
        %v2403 = vpop.f32.mrf.mxu0
        %v2404 = vadd.f32 %v2335, %v2403
        %2405 = vmatmul.bf16.gmra.mxu0 %v1578
        %v2406 = vpop.f32.mrf.mxu0
        %v2407 = vadd.f32 %v2338, %v2406
        %v2408 = vpop.f32.mrf.mxu0
        %v2409 = vadd.f32 %v2340, %v2408
        %2410 = vmatmul.bf16.gmra.mxu0 %v1580
        %v2411 = vpop.f32.mrf.mxu0
        %v2412 = vadd.f32 %v2343, %v2411
        %v2413 = vpop.f32.mrf.mxu0
        %v2414 = vadd.f32 %v2345, %v2413
        %2415 = vmatmul.bf16.gmra.mxu0 %v1582
        %v2416 = vpop.f32.mrf.mxu0
        %v2417 = vadd.f32 %v2348, %v2416
        %v2418 = vpop.f32.mrf.mxu0
        %v2419 = vadd.f32 %v2350, %v2418
        %2420 = vmatmul.bf16.gmra.mxu0 %v1584
        %v2421 = vpop.f32.mrf.mxu0
        %v2422 = vadd.f32 %v2353, %v2421
        %v2423 = vpop.f32.mrf.mxu0
        %v2424 = vadd.f32 %v2355, %v2423
        %2425 = vmatmul.bf16.gmra.mxu0 %v1586
        %v2426 = vpop.f32.mrf.mxu0
        %v2427 = vadd.f32 %v2358, %v2426
        %v2428 = vpop.f32.mrf.mxu0
        %v2429 = vadd.f32 %v2360, %v2428
        %2430 = vmatmul.bf16.gmra.mxu0 %v1588
        %v2431 = vpop.f32.mrf.mxu0
        %v2432 = vadd.f32 %v2363, %v2431
        %v2433 = vpop.f32.mrf.mxu0
        %v2434 = vadd.f32 %v2365, %v2433
        %2435 = vmatmul.bf16.gmra.mxu0 %v1590
        %v2436 = vpop.f32.mrf.mxu0
        %v2437 = vadd.f32 %v2368, %v2436
        %v2438 = vpop.f32.mrf.mxu0
        %v2439 = vadd.f32 %v2370, %v2438
        %2440 = vmatmul.bf16.gmra.mxu0 %v1592
        %v2441 = vpop.f32.mrf.mxu0
        %v2442 = vadd.f32 %v2373, %v2441
        %v2443 = vpop.f32.mrf.mxu0
        %v2444 = vadd.f32 %v2375, %v2443
        %2445 = vmatmul.bf16.gmra.mxu0 %v1594
        %v2446 = vpop.f32.mrf.mxu0
        %v2447 = vadd.f32 %v2378, %v2446
        %v2448 = vpop.f32.mrf.mxu0
        %v2449 = vadd.f32 %v2380, %v2448
        %2450 = vmatmul.bf16.gmra.mxu0 %v1593
        %v2451 = vpop.f32.mrf.mxu0
        %v2452 = vadd.f32 %v2383, %v2451
        %v2453 = vpop.f32.mrf.mxu0
        %v2454 = vadd.f32 %v2385, %v2453
        %2455 = vdwg.mxu0
        %v2456 = vld [vmem:[#allocation2 + $0x10] sm:$0xf]
        %v2457 = vld [vmem:[#allocation2 + $0x14] sm:$0xf]
        %v2458 = vld [vmem:[#allocation2 + $0x18] sm:$0xf]
        %v2459 = vld [vmem:[#allocation2 + $0x1c] sm:$0xf]
        %v2460 = vld [vmem:[#allocation2 + $0x20] sm:$0xf]
        %v2461 = vld [vmem:[#allocation2 + $0x24] sm:$0xf]
        %v2462 = vld [vmem:[#allocation2 + $0x28] sm:$0xf]
        %v2463 = vld [vmem:[#allocation2 + $0x2c] sm:$0xf]
        %v2464 = vld [vmem:[#allocation2 + $0x30] sm:$0xf]
        %v2465 = vld [vmem:[#allocation2 + $0x34] sm:$0xf]
        %v2466 = vld [vmem:[#allocation2 + $0x38] sm:$0xf]
        %v2467 = vld [vmem:[#allocation2 + $0x3c] sm:$0xf]
        %v2468 = vld [vmem:[#allocation2 + $0x40] sm:$0xf]
        %v2469 = vld [vmem:[#allocation2 + $0x44] sm:$0xf]
        %v2470 = vld [vmem:[#allocation2 + $0x48] sm:$0xf]
        %v2471 = vld [vmem:[#allocation2 + $0x4c] sm:$0xf]
        %v2472 = vld [vmem:[#allocation2 + $0x50] sm:$0xf]
        %v2473 = vld [vmem:[#allocation2 + $0x54] sm:$0xf]
        %v2474 = vld [vmem:[#allocation2 + $0x58] sm:$0xf]
        %v2475 = vld [vmem:[#allocation2 + $0x5c] sm:$0xf]
        %v2476 = vld [vmem:[#allocation2 + $0x60] sm:$0xf]
        %v2477 = vld [vmem:[#allocation2 + $0x64] sm:$0xf]
        %v2478 = vld [vmem:[#allocation2 + $0x68] sm:$0xf]
        %v2479 = vld [vmem:[#allocation2 + $0x6c] sm:$0x3]
        %v2480 = vld [vmem:[#allocation2 + $0x6c] sm:$0x7]
        %v2481 = vld [vmem:[#allocation2 + $0x10] sm:$0xe]
        %v2506 = vunpack.c.l.b16 %v2456
        %v2507 = vunpack.c.l.b16 %v2457
        %v2508 = vunpack.c.l.b16 %v2458
        %v2509 = vunpack.c.l.b16 %v2459
        %v2510 = vunpack.c.l.b16 %v2460
        %v2511 = vunpack.c.l.b16 %v2461
        %v2512 = vunpack.c.l.b16 %v2462
        %v2513 = vunpack.c.l.b16 %v2463
        %v2514 = vunpack.c.l.b16 %v2464
        %v2515 = vunpack.c.l.b16 %v2465
        %v2516 = vunpack.c.l.b16 %v2466
        %v2517 = vunpack.c.l.b16 %v2467
        %v2518 = vunpack.c.l.b16 %v2468
        %v2519 = vunpack.c.l.b16 %v2469
        %v2520 = vunpack.c.l.b16 %v2470
        %v2521 = vunpack.c.l.b16 %v2471
        %v2522 = vunpack.c.l.b16 %v2472
        %v2523 = vunpack.c.l.b16 %v2473
        %v2524 = vunpack.c.l.b16 %v2474
        %v2525 = vunpack.c.l.b16 %v2475
        %v2526 = vunpack.c.l.b16 %v2476
        %v2527 = vunpack.c.l.b16 %v2477
        %v2528 = vunpack.c.l.b16 %v2478
        %v2529 = vunpack.c.l.b16 %v2479
        %v2530 = vpack.c.b16 %v2507, %v2506
        %v2531 = vpack.c.b16 %v2509, %v2508
        %v2532 = vpack.c.b16 %v2511, %v2510
        %v2533 = vpack.c.b16 %v2513, %v2512
        %v2534 = vpack.c.b16 %v2515, %v2514
        %v2535 = vpack.c.b16 %v2517, %v2516
        %v2536 = vpack.c.b16 %v2519, %v2518
        %v2537 = vpack.c.b16 %v2521, %v2520
        %v2538 = vpack.c.b16 %v2523, %v2522
        %v2539 = vpack.c.b16 %v2525, %v2524
        %v2540 = vpack.c.b16 %v2527, %v2526
        %v2541 = vpack.c.b16 %v2529, %v2528
        %v2555 = vunpack.c.l.b16 %v2480
        %v2556 = vpack.c.b16 %v2555, %v2528
        %v2558 = vshrl.u32 %v2530, 16
        %v2560 = vshll.u32 %v2530, 16
        %v2562 = vrot.slane %v2560, 1
        %v2563 = vor.u32 %v2558, %v2562
        %v2565 = vshll.u32 %v2531, 16
        %v2567 = vrot.slane %v2565, 1
        %v2568 = vsel %vm1460, %v2563, %v2567
        %v2569 = vshrl.u32 %v2531, 16
        %v2571 = vor.u32 %v2569, %v2567
        %v2573 = vshll.u32 %v2532, 16
        %v2575 = vrot.slane %v2573, 1
        %v2576 = vsel %vm1460, %v2571, %v2575
        %v2577 = vshrl.u32 %v2532, 16
        %v2579 = vor.u32 %v2577, %v2575
        %v2581 = vshll.u32 %v2533, 16
        %v2583 = vrot.slane %v2581, 1
        %v2584 = vsel %vm1460, %v2579, %v2583
        %v2585 = vshrl.u32 %v2533, 16
        %v2587 = vor.u32 %v2585, %v2583
        %v2589 = vshll.u32 %v2534, 16
        %v2591 = vrot.slane %v2589, 1
        %v2592 = vsel %vm1460, %v2587, %v2591
        %v2593 = vshrl.u32 %v2534, 16
        %v2595 = vor.u32 %v2593, %v2591
        %v2597 = vshll.u32 %v2535, 16
        %v2599 = vrot.slane %v2597, 1
        %v2600 = vsel %vm1460, %v2595, %v2599
        %v2601 = vshrl.u32 %v2535, 16
        %v2603 = vor.u32 %v2601, %v2599
        %v2605 = vshll.u32 %v2536, 16
        %v2607 = vrot.slane %v2605, 1
        %v2608 = vsel %vm1460, %v2603, %v2607
        %v2609 = vshrl.u32 %v2536, 16
        %v2611 = vor.u32 %v2609, %v2607
        %v2613 = vshll.u32 %v2537, 16
        %v2615 = vrot.slane %v2613, 1
        %v2616 = vsel %vm1460, %v2611, %v2615
        %v2617 = vshrl.u32 %v2537, 16
        %v2619 = vor.u32 %v2617, %v2615
        %v2621 = vshll.u32 %v2538, 16
        %v2623 = vrot.slane %v2621, 1
        %v2624 = vsel %vm1460, %v2619, %v2623
        %v2625 = vshrl.u32 %v2538, 16
        %v2627 = vor.u32 %v2625, %v2623
        %v2629 = vshll.u32 %v2539, 16
        %v2631 = vrot.slane %v2629, 1
        %v2632 = vsel %vm1460, %v2627, %v2631
        %v2633 = vshrl.u32 %v2539, 16
        %v2635 = vor.u32 %v2633, %v2631
        %v2637 = vshll.u32 %v2540, 16
        %v2639 = vrot.slane %v2637, 1
        %v2640 = vsel %vm1460, %v2635, %v2639
        %v2641 = vshrl.u32 %v2540, 16
        %v2643 = vor.u32 %v2641, %v2639
        %v2645 = vshll.u32 %v2556, 16
        %v2647 = vrot.slane %v2645, 1
        %v2648 = vsel %vm1460, %v2643, %v2647
        %v2649 = vshrl.u32 %v2556, 16
        %v2651 = vor.u32 %v2649, %v2647
        %v2665 = vunpack.c.l.b16 %v2481
        %v2666 = vpack.c.b16 %v2507, %v2665
        %v2667 = vrot.slane %v2666, 1
        %v2668 = vrot.slane %v2531, 1
        %v2669 = vsel %vm1571, %v2667, %v2668
        %v2670 = vrot.slane %v2532, 1
        %v2671 = vsel %vm1571, %v2668, %v2670
        %v2672 = vrot.slane %v2533, 1
        %v2673 = vsel %vm1571, %v2670, %v2672
        %v2674 = vrot.slane %v2534, 1
        %v2675 = vsel %vm1571, %v2672, %v2674
        %v2676 = vrot.slane %v2535, 1
        %v2677 = vsel %vm1571, %v2674, %v2676
        %v2678 = vrot.slane %v2536, 1
        %v2679 = vsel %vm1571, %v2676, %v2678
        %v2680 = vrot.slane %v2537, 1
        %v2681 = vsel %vm1571, %v2678, %v2680
        %v2682 = vrot.slane %v2538, 1
        %v2683 = vsel %vm1571, %v2680, %v2682
        %v2684 = vrot.slane %v2539, 1
        %v2685 = vsel %vm1571, %v2682, %v2684
        %v2686 = vrot.slane %v2540, 1
        %v2687 = vsel %vm1571, %v2684, %v2686
        %v2688 = vrot.slane %v2556, 1
        %v2689 = vsel %vm1571, %v2686, %v2688
        %s2702 = scalar_lea.vmem %s3, 384
        %v2703 = vld [vmem:[%s2702] sm:$0xf]
        %v2704 = vld [vmem:[%s2702 + $0x4] sm:$0xf]
        %v2705 = vld [vmem:[%s2702 + $0x8] sm:$0xf]
        %v2706 = vld [vmem:[%s2702 + $0xc] sm:$0xf]
        %v2707 = vld [vmem:[%s2702 + $0x10] sm:$0xf]
        %v2708 = vld [vmem:[%s2702 + $0x14] sm:$0xf]
        %v2709 = vld [vmem:[%s2702 + $0x18] sm:$0xf]
        %v2710 = vld [vmem:[%s2702 + $0x1c] sm:$0xf]
        %v2711 = vld [vmem:[%s2702 + $0x20] sm:$0xf]
        %v2712 = vld [vmem:[%s2702 + $0x24] sm:$0xf]
        %v2713 = vld [vmem:[%s2702 + $0x28] sm:$0xf]
        %v2714 = vld [vmem:[%s2702 + $0x2c] sm:$0xf]
        %v2715 = vld [vmem:[%s2702 + $0x30] sm:$0xf]
        %v2716 = vld [vmem:[%s2702 + $0x34] sm:$0xf]
        %v2717 = vld [vmem:[%s2702 + $0x38] sm:$0xf]
        %v2718 = vld [vmem:[%s2702 + $0x3c] sm:$0xf]
        %v2719 = vld [vmem:[%s2702 + $0x40] sm:$0xf]
        %v2720 = vld [vmem:[%s2702 + $0x44] sm:$0xf]
        %v2721 = vld [vmem:[%s2702 + $0x48] sm:$0xf]
        %v2722 = vld [vmem:[%s2702 + $0x4c] sm:$0xf]
        %v2723 = vld [vmem:[%s2702 + $0x50] sm:$0xf]
        %v2724 = vld [vmem:[%s2702 + $0x54] sm:$0xf]
        %v2725 = vld [vmem:[%s2702 + $0x58] sm:$0xf]
        %v2726 = vld [vmem:[%s2702 + $0x5c] sm:$0xf]
        %v2727 = vld [vmem:[%s2702 + $0x60] sm:$0xf]
        %v2728 = vld [vmem:[%s2702 + $0x64] sm:$0xf]
        %v2729 = vld [vmem:[%s2702 + $0x68] sm:$0xf]
        %v2730 = vld [vmem:[%s2702 + $0x6c] sm:$0xf]
        %v2731 = vld [vmem:[%s2702 + $0x70] sm:$0xf]
        %v2732 = vld [vmem:[%s2702 + $0x74] sm:$0xf]
        %v2733 = vld [vmem:[%s2702 + $0x78] sm:$0xf]
        %v2734 = vld [vmem:[%s2702 + $0x7c] sm:$0xf]
        %v2735 = vld [vmem:[%s2702 + $0x80] sm:$0xf]
        %v2736 = vld [vmem:[%s2702 + $0x84] sm:$0xf]
        %v2737 = vld [vmem:[%s2702 + $0x88] sm:$0xf]
        %v2738 = vld [vmem:[%s2702 + $0x8c] sm:$0xf]
        %v2739 = vld [vmem:[%s2702 + $0x90] sm:$0xf]
        %v2740 = vld [vmem:[%s2702 + $0x94] sm:$0xf]
        %v2741 = vld [vmem:[%s2702 + $0x98] sm:$0xf]
        %v2742 = vld [vmem:[%s2702 + $0x9c] sm:$0xf]
        %v2743 = vld [vmem:[%s2702 + $0xa0] sm:$0xf]
        %v2744 = vld [vmem:[%s2702 + $0xa4] sm:$0xf]
        %v2745 = vld [vmem:[%s2702 + $0xa8] sm:$0xf]
        %v2746 = vld [vmem:[%s2702 + $0xac] sm:$0xf]
        %v2747 = vld [vmem:[%s2702 + $0xb0] sm:$0xf]
        %v2748 = vld [vmem:[%s2702 + $0xb4] sm:$0xf]
        %v2749 = vld [vmem:[%s2702 + $0xb8] sm:$0xf]
        %v2750 = vld [vmem:[%s2702 + $0xbc] sm:$0xf]
        %v2799 = vunpack.c.l.b16 %v2703
        %v2800 = vunpack.c.l.b16 %v2704
        %v2801 = vunpack.c.l.b16 %v2705
        %v2802 = vunpack.c.l.b16 %v2706
        %v2803 = vunpack.c.l.b16 %v2707
        %v2804 = vunpack.c.l.b16 %v2708
        %v2805 = vunpack.c.l.b16 %v2709
        %v2806 = vunpack.c.l.b16 %v2710
        %v2807 = vunpack.c.l.b16 %v2711
        %v2808 = vunpack.c.l.b16 %v2712
        %v2809 = vunpack.c.l.b16 %v2713
        %v2810 = vunpack.c.l.b16 %v2714
        %v2811 = vunpack.c.l.b16 %v2715
        %v2812 = vunpack.c.l.b16 %v2716
        %v2813 = vunpack.c.l.b16 %v2717
        %v2814 = vunpack.c.l.b16 %v2718
        %v2815 = vunpack.c.l.b16 %v2719
        %v2816 = vunpack.c.l.b16 %v2720
        %v2817 = vunpack.c.l.b16 %v2721
        %v2818 = vunpack.c.l.b16 %v2722
        %v2819 = vunpack.c.l.b16 %v2723
        %v2820 = vunpack.c.l.b16 %v2724
        %v2821 = vunpack.c.l.b16 %v2725
        %v2822 = vunpack.c.l.b16 %v2726
        %v2823 = vunpack.c.l.b16 %v2727
        %v2824 = vunpack.c.l.b16 %v2728
        %v2825 = vunpack.c.l.b16 %v2729
        %v2826 = vunpack.c.l.b16 %v2730
        %v2827 = vunpack.c.l.b16 %v2731
        %v2828 = vunpack.c.l.b16 %v2732
        %v2829 = vunpack.c.l.b16 %v2733
        %v2830 = vunpack.c.l.b16 %v2734
        %v2831 = vunpack.c.l.b16 %v2735
        %v2832 = vunpack.c.l.b16 %v2736
        %v2833 = vunpack.c.l.b16 %v2737
        %v2834 = vunpack.c.l.b16 %v2738
        %v2835 = vunpack.c.l.b16 %v2739
        %v2836 = vunpack.c.l.b16 %v2740
        %v2837 = vunpack.c.l.b16 %v2741
        %v2838 = vunpack.c.l.b16 %v2742
        %v2839 = vunpack.c.l.b16 %v2743
        %v2840 = vunpack.c.l.b16 %v2744
        %v2841 = vunpack.c.l.b16 %v2745
        %v2842 = vunpack.c.l.b16 %v2746
        %v2843 = vunpack.c.l.b16 %v2747
        %v2844 = vunpack.c.l.b16 %v2748
        %v2845 = vunpack.c.l.b16 %v2749
        %v2846 = vunpack.c.l.b16 %v2750
        %v2847 = vpack.c.b16 %v2800, %v2799
        %v2848 = vpack.c.b16 %v2802, %v2801
        %v2849 = vpack.c.b16 %v2804, %v2803
        %v2850 = vpack.c.b16 %v2806, %v2805
        %v2851 = vpack.c.b16 %v2808, %v2807
        %v2852 = vpack.c.b16 %v2810, %v2809
        %v2853 = vpack.c.b16 %v2812, %v2811
        %v2854 = vpack.c.b16 %v2814, %v2813
        %v2855 = vpack.c.b16 %v2816, %v2815
        %v2856 = vpack.c.b16 %v2818, %v2817
        %v2857 = vpack.c.b16 %v2820, %v2819
        %v2858 = vpack.c.b16 %v2822, %v2821
        %v2859 = vpack.c.b16 %v2824, %v2823
        %v2860 = vpack.c.b16 %v2826, %v2825
        %v2861 = vpack.c.b16 %v2828, %v2827
        %v2862 = vpack.c.b16 %v2830, %v2829
        %v2863 = vpack.c.b16 %v2832, %v2831
        %v2864 = vpack.c.b16 %v2834, %v2833
        %v2865 = vpack.c.b16 %v2836, %v2835
        %v2866 = vpack.c.b16 %v2838, %v2837
        %v2867 = vpack.c.b16 %v2840, %v2839
        %v2868 = vpack.c.b16 %v2842, %v2841
        %v2869 = vpack.c.b16 %v2844, %v2843
        %v2870 = vpack.c.b16 %v2846, %v2845
        %2895 = vmatpush.bf16.msra.mxu0 %v2854
        %2896 = vmatpush.bf16.msra.mxu0 %v2853
        %2897 = vmatpush.bf16.msra.mxu0 %v2852
        %2898 = vmatpush.bf16.msra.mxu0 %v2851
        %2899 = vmatpush.bf16.msra.mxu0 %v2850
        %2900 = vmatpush.bf16.msra.mxu0 %v2849
        %2901 = vmatpush.bf16.msra.mxu0 %v2848
        %2902 = vmatpush.bf16.msra.mxu0 %v2847
        %2903 = vmatmul.bf16.gmra.mxu0 %v2530
        %v2904 = vpop.f32.mrf.mxu0
        %v2905 = vadd.f32 0.0, %v2904
        %v2906 = vpop.f32.mrf.mxu0
        %v2907 = vadd.f32 0.0, %v2906
        %2908 = vmatmul.bf16.gmra.mxu0 %v2531
        %v2909 = vpop.f32.mrf.mxu0
        %v2910 = vadd.f32 0.0, %v2909
        %v2911 = vpop.f32.mrf.mxu0
        %v2912 = vadd.f32 0.0, %v2911
        %2913 = vmatmul.bf16.gmra.mxu0 %v2532
        %v2914 = vpop.f32.mrf.mxu0
        %v2915 = vadd.f32 0.0, %v2914
        %v2916 = vpop.f32.mrf.mxu0
        %v2917 = vadd.f32 0.0, %v2916
        %2918 = vmatmul.bf16.gmra.mxu0 %v2533
        %v2919 = vpop.f32.mrf.mxu0
        %v2920 = vadd.f32 0.0, %v2919
        %v2921 = vpop.f32.mrf.mxu0
        %v2922 = vadd.f32 0.0, %v2921
        %2923 = vmatmul.bf16.gmra.mxu0 %v2534
        %v2924 = vpop.f32.mrf.mxu0
        %v2925 = vadd.f32 0.0, %v2924
        %v2926 = vpop.f32.mrf.mxu0
        %v2927 = vadd.f32 0.0, %v2926
        %2928 = vmatmul.bf16.gmra.mxu0 %v2535
        %v2929 = vpop.f32.mrf.mxu0
        %v2930 = vadd.f32 0.0, %v2929
        %v2931 = vpop.f32.mrf.mxu0
        %v2932 = vadd.f32 0.0, %v2931
        %2933 = vmatmul.bf16.gmra.mxu0 %v2536
        %v2934 = vpop.f32.mrf.mxu0
        %v2935 = vadd.f32 0.0, %v2934
        %v2936 = vpop.f32.mrf.mxu0
        %v2937 = vadd.f32 0.0, %v2936
        %2938 = vmatmul.bf16.gmra.mxu0 %v2537
        %v2939 = vpop.f32.mrf.mxu0
        %v2940 = vadd.f32 0.0, %v2939
        %v2941 = vpop.f32.mrf.mxu0
        %v2942 = vadd.f32 0.0, %v2941
        %2943 = vmatmul.bf16.gmra.mxu0 %v2538
        %v2944 = vpop.f32.mrf.mxu0
        %v2945 = vadd.f32 0.0, %v2944
        %v2946 = vpop.f32.mrf.mxu0
        %v2947 = vadd.f32 0.0, %v2946
        %2948 = vmatmul.bf16.gmra.mxu0 %v2539
        %v2949 = vpop.f32.mrf.mxu0
        %v2950 = vadd.f32 0.0, %v2949
        %v2951 = vpop.f32.mrf.mxu0
        %v2952 = vadd.f32 0.0, %v2951
        %2953 = vmatmul.bf16.gmra.mxu0 %v2540
        %v2954 = vpop.f32.mrf.mxu0
        %v2955 = vadd.f32 0.0, %v2954
        %v2956 = vpop.f32.mrf.mxu0
        %v2957 = vadd.f32 0.0, %v2956
        %2958 = vmatmul.bf16.gmra.mxu0 %v2541
        %v2959 = vpop.f32.mrf.mxu0
        %v2960 = vadd.f32 0.0, %v2959
        %v2961 = vpop.f32.mrf.mxu0
        %v2962 = vadd.f32 0.0, %v2961
        %2963 = vdwg.mxu0
        %2964 = vmatpush.bf16.msra.mxu0 %v2862
        %2965 = vmatpush.bf16.msra.mxu0 %v2861
        %2966 = vmatpush.bf16.msra.mxu0 %v2860
        %2967 = vmatpush.bf16.msra.mxu0 %v2859
        %2968 = vmatpush.bf16.msra.mxu0 %v2858
        %2969 = vmatpush.bf16.msra.mxu0 %v2857
        %2970 = vmatpush.bf16.msra.mxu0 %v2856
        %2971 = vmatpush.bf16.msra.mxu0 %v2855
        %2972 = vmatmul.bf16.gmra.mxu0 %v2568
        %v2973 = vpop.f32.mrf.mxu0
        %v2974 = vadd.f32 %v2905, %v2973
        %v2975 = vpop.f32.mrf.mxu0
        %v2976 = vadd.f32 %v2907, %v2975
        %2977 = vmatmul.bf16.gmra.mxu0 %v2576
        %v2978 = vpop.f32.mrf.mxu0
        %v2979 = vadd.f32 %v2910, %v2978
        %v2980 = vpop.f32.mrf.mxu0
        %v2981 = vadd.f32 %v2912, %v2980
        %2982 = vmatmul.bf16.gmra.mxu0 %v2584
        %v2983 = vpop.f32.mrf.mxu0
        %v2984 = vadd.f32 %v2915, %v2983
        %v2985 = vpop.f32.mrf.mxu0
        %v2986 = vadd.f32 %v2917, %v2985
        %2987 = vmatmul.bf16.gmra.mxu0 %v2592
        %v2988 = vpop.f32.mrf.mxu0
        %v2989 = vadd.f32 %v2920, %v2988
        %v2990 = vpop.f32.mrf.mxu0
        %v2991 = vadd.f32 %v2922, %v2990
        %2992 = vmatmul.bf16.gmra.mxu0 %v2600
        %v2993 = vpop.f32.mrf.mxu0
        %v2994 = vadd.f32 %v2925, %v2993
        %v2995 = vpop.f32.mrf.mxu0
        %v2996 = vadd.f32 %v2927, %v2995
        %2997 = vmatmul.bf16.gmra.mxu0 %v2608
        %v2998 = vpop.f32.mrf.mxu0
        %v2999 = vadd.f32 %v2930, %v2998
        %v3000 = vpop.f32.mrf.mxu0
        %v3001 = vadd.f32 %v2932, %v3000
        %3002 = vmatmul.bf16.gmra.mxu0 %v2616
        %v3003 = vpop.f32.mrf.mxu0
        %v3004 = vadd.f32 %v2935, %v3003
        %v3005 = vpop.f32.mrf.mxu0
        %v3006 = vadd.f32 %v2937, %v3005
        %3007 = vmatmul.bf16.gmra.mxu0 %v2624
        %v3008 = vpop.f32.mrf.mxu0
        %v3009 = vadd.f32 %v2940, %v3008
        %v3010 = vpop.f32.mrf.mxu0
        %v3011 = vadd.f32 %v2942, %v3010
        %3012 = vmatmul.bf16.gmra.mxu0 %v2632
        %v3013 = vpop.f32.mrf.mxu0
        %v3014 = vadd.f32 %v2945, %v3013
        %v3015 = vpop.f32.mrf.mxu0
        %v3016 = vadd.f32 %v2947, %v3015
        %3017 = vmatmul.bf16.gmra.mxu0 %v2640
        %v3018 = vpop.f32.mrf.mxu0
        %v3019 = vadd.f32 %v2950, %v3018
        %v3020 = vpop.f32.mrf.mxu0
        %v3021 = vadd.f32 %v2952, %v3020
        %3022 = vmatmul.bf16.gmra.mxu0 %v2648
        %v3023 = vpop.f32.mrf.mxu0
        %v3024 = vadd.f32 %v2955, %v3023
        %v3025 = vpop.f32.mrf.mxu0
        %v3026 = vadd.f32 %v2957, %v3025
        %3027 = vmatmul.bf16.gmra.mxu0 %v2651
        %v3028 = vpop.f32.mrf.mxu0
        %v3029 = vadd.f32 %v2960, %v3028
        %v3030 = vpop.f32.mrf.mxu0
        %v3031 = vadd.f32 %v2962, %v3030
        %3032 = vdwg.mxu0
        %3033 = vmatpush.bf16.msra.mxu0 %v2870
        %3034 = vmatpush.bf16.msra.mxu0 %v2869
        %3035 = vmatpush.bf16.msra.mxu0 %v2868
        %3036 = vmatpush.bf16.msra.mxu0 %v2867
        %3037 = vmatpush.bf16.msra.mxu0 %v2866
        %3038 = vmatpush.bf16.msra.mxu0 %v2865
        %3039 = vmatpush.bf16.msra.mxu0 %v2864
        %3040 = vmatpush.bf16.msra.mxu0 %v2863
        %3041 = vmatmul.bf16.gmra.mxu0 %v2669
        %v3042 = vpop.f32.mrf.mxu0
        %v3043 = vadd.f32 %v2974, %v3042
        %v3044 = vpop.f32.mrf.mxu0
        %v3045 = vadd.f32 %v2976, %v3044
        %3046 = vmatmul.bf16.gmra.mxu0 %v2671
        %v3047 = vpop.f32.mrf.mxu0
        %v3048 = vadd.f32 %v2979, %v3047
        %v3049 = vpop.f32.mrf.mxu0
        %v3050 = vadd.f32 %v2981, %v3049
        %3051 = vmatmul.bf16.gmra.mxu0 %v2673
        %v3052 = vpop.f32.mrf.mxu0
        %v3053 = vadd.f32 %v2984, %v3052
        %v3054 = vpop.f32.mrf.mxu0
        %v3055 = vadd.f32 %v2986, %v3054
        %3056 = vmatmul.bf16.gmra.mxu0 %v2675
        %v3057 = vpop.f32.mrf.mxu0
        %v3058 = vadd.f32 %v2989, %v3057
        %v3059 = vpop.f32.mrf.mxu0
        %v3060 = vadd.f32 %v2991, %v3059
        %3061 = vmatmul.bf16.gmra.mxu0 %v2677
        %v3062 = vpop.f32.mrf.mxu0
        %v3063 = vadd.f32 %v2994, %v3062
        %v3064 = vpop.f32.mrf.mxu0
        %v3065 = vadd.f32 %v2996, %v3064
        %3066 = vmatmul.bf16.gmra.mxu0 %v2679
        %v3067 = vpop.f32.mrf.mxu0
        %v3068 = vadd.f32 %v2999, %v3067
        %v3069 = vpop.f32.mrf.mxu0
        %v3070 = vadd.f32 %v3001, %v3069
        %3071 = vmatmul.bf16.gmra.mxu0 %v2681
        %v3072 = vpop.f32.mrf.mxu0
        %v3073 = vadd.f32 %v3004, %v3072
        %v3074 = vpop.f32.mrf.mxu0
        %v3075 = vadd.f32 %v3006, %v3074
        %3076 = vmatmul.bf16.gmra.mxu0 %v2683
        %v3077 = vpop.f32.mrf.mxu0
        %v3078 = vadd.f32 %v3009, %v3077
        %v3079 = vpop.f32.mrf.mxu0
        %v3080 = vadd.f32 %v3011, %v3079
        %3081 = vmatmul.bf16.gmra.mxu0 %v2685
        %v3082 = vpop.f32.mrf.mxu0
        %v3083 = vadd.f32 %v3014, %v3082
        %v3084 = vpop.f32.mrf.mxu0
        %v3085 = vadd.f32 %v3016, %v3084
        %3086 = vmatmul.bf16.gmra.mxu0 %v2687
        %v3087 = vpop.f32.mrf.mxu0
        %v3088 = vadd.f32 %v3019, %v3087
        %v3089 = vpop.f32.mrf.mxu0
        %v3090 = vadd.f32 %v3021, %v3089
        %3091 = vmatmul.bf16.gmra.mxu0 %v2689
        %v3092 = vpop.f32.mrf.mxu0
        %v3093 = vadd.f32 %v3024, %v3092
        %v3094 = vpop.f32.mrf.mxu0
        %v3095 = vadd.f32 %v3026, %v3094
        %3096 = vmatmul.bf16.gmra.mxu0 %v2688
        %v3097 = vpop.f32.mrf.mxu0
        %v3098 = vadd.f32 %v3029, %v3097
        %v3099 = vpop.f32.mrf.mxu0
        %v3100 = vadd.f32 %v3031, %v3099
        %3101 = vdwg.mxu0
        %v3102 = vadd.f32 %v2397, %v3043
        %v3103 = vadd.f32 %v2399, %v3045
        %v3104 = vadd.f32 %v2402, %v3048
        %v3105 = vadd.f32 %v2404, %v3050
        %v3106 = vadd.f32 %v2407, %v3053
        %v3107 = vadd.f32 %v2409, %v3055
        %v3108 = vadd.f32 %v2412, %v3058
        %v3109 = vadd.f32 %v2414, %v3060
        %v3110 = vadd.f32 %v2417, %v3063
        %v3111 = vadd.f32 %v2419, %v3065
        %v3112 = vadd.f32 %v2422, %v3068
        %v3113 = vadd.f32 %v2424, %v3070
        %v3114 = vadd.f32 %v2427, %v3073
        %v3115 = vadd.f32 %v2429, %v3075
        %v3116 = vadd.f32 %v2432, %v3078
        %v3117 = vadd.f32 %v2434, %v3080
        %v3118 = vadd.f32 %v2437, %v3083
        %v3119 = vadd.f32 %v2439, %v3085
        %v3120 = vadd.f32 %v2442, %v3088
        %v3121 = vadd.f32 %v2444, %v3090
        %v3122 = vadd.f32 %v2447, %v3093
        %v3123 = vadd.f32 %v2449, %v3095
        %v3124 = vadd.f32 %v2452, %v3098
        %v3125 = vadd.f32 %v2454, %v3100
        %3126 = vst [vmem:[#allocation3] sm:$0xff] %v3102
        %3127 = vst [vmem:[#allocation3 + $0x8] sm:$0xff] %v3103
        %3128 = vst [vmem:[#allocation3 + $0x10] sm:$0xff] %v3104
        %3129 = vst [vmem:[#allocation3 + $0x18] sm:$0xff] %v3105
        %3130 = vst [vmem:[#allocation3 + $0x20] sm:$0xff] %v3106
        %3131 = vst [vmem:[#allocation3 + $0x28] sm:$0xff] %v3107
        %3132 = vst [vmem:[#allocation3 + $0x30] sm:$0xff] %v3108
        %3133 = vst [vmem:[#allocation3 + $0x38] sm:$0xff] %v3109
        %3134 = vst [vmem:[#allocation3 + $0x40] sm:$0xff] %v3110
        %3135 = vst [vmem:[#allocation3 + $0x48] sm:$0xff] %v3111
        %3136 = vst [vmem:[#allocation3 + $0x50] sm:$0xff] %v3112
        %3137 = vst [vmem:[#allocation3 + $0x58] sm:$0xff] %v3113
        %3138 = vst [vmem:[#allocation3 + $0x60] sm:$0xff] %v3114
        %3139 = vst [vmem:[#allocation3 + $0x68] sm:$0xff] %v3115
        %3140 = vst [vmem:[#allocation3 + $0x70] sm:$0xff] %v3116
        %3141 = vst [vmem:[#allocation3 + $0x78] sm:$0xff] %v3117
        %3142 = vst [vmem:[#allocation3 + $0x80] sm:$0xff] %v3118
        %3143 = vst [vmem:[#allocation3 + $0x88] sm:$0xff] %v3119
        %3144 = vst [vmem:[#allocation3 + $0x90] sm:$0xff] %v3120
        %3145 = vst [vmem:[#allocation3 + $0x98] sm:$0xff] %v3121
        %3146 = vst [vmem:[#allocation3 + $0xa0] sm:$0xff] %v3122
        %3147 = vst [vmem:[#allocation3 + $0xa8] sm:$0xff] %v3123
        %3148 = vst [vmem:[#allocation3 + $0xb0] sm:$0xff] %v3124
        %3149 = vst [vmem:[#allocation3 + $0xb8] sm:$0xf] %v3125
        %v3150 = vld [vmem:[#allocation3] sm:$0xff]
        %v3151 = vld [vmem:[#allocation3 + $0x8] sm:$0xff]
        %v3152 = vld [vmem:[#allocation3 + $0x10] sm:$0xff]
        %v3153 = vld [vmem:[#allocation3 + $0x18] sm:$0xff]
        %v3154 = vld [vmem:[#allocation3 + $0x20] sm:$0xff]
        %v3155 = vld [vmem:[#allocation3 + $0x28] sm:$0xff]
        %v3156 = vld [vmem:[#allocation3 + $0x30] sm:$0xff]
        %v3157 = vld [vmem:[#allocation3 + $0x38] sm:$0xff]
        %v3158 = vld [vmem:[#allocation3 + $0x40] sm:$0xff]
        %v3159 = vld [vmem:[#allocation3 + $0x48] sm:$0xff]
        %v3160 = vld [vmem:[#allocation3 + $0x50] sm:$0xff]
        %v3161 = vld [vmem:[#allocation3 + $0x58] sm:$0xff]
        %v3162 = vld [vmem:[#allocation3 + $0x60] sm:$0xff]
        %v3163 = vld [vmem:[#allocation3 + $0x68] sm:$0xff]
        %v3164 = vld [vmem:[#allocation3 + $0x70] sm:$0xff]
        %v3165 = vld [vmem:[#allocation3 + $0x78] sm:$0xff]
        %v3166 = vld [vmem:[#allocation3 + $0x80] sm:$0xff]
        %v3167 = vld [vmem:[#allocation3 + $0x88] sm:$0xff]
        %v3168 = vld [vmem:[#allocation3 + $0x90] sm:$0xff]
        %v3169 = vld [vmem:[#allocation3 + $0x98] sm:$0xff]
        %v3170 = vld [vmem:[#allocation3 + $0xa0] sm:$0xff]
        %v3171 = vld [vmem:[#allocation3 + $0xa8] sm:$0xff]
        %v3172 = vld [vmem:[#allocation3 + $0xb0] sm:$0xff]
        %v3173 = vld [vmem:[#allocation3 + $0xb8] sm:$0x7]
        %v3174 = vld [vmem:[#allocation3 + $0x1] sm:$0xff]
        %v3175 = vld [vmem:[#allocation3 + $0x9] sm:$0xff]
        %v3176 = vld [vmem:[#allocation3 + $0x11] sm:$0xff]
        %v3177 = vld [vmem:[#allocation3 + $0x19] sm:$0xff]
        %v3178 = vld [vmem:[#allocation3 + $0x21] sm:$0xff]
        %v3179 = vld [vmem:[#allocation3 + $0x29] sm:$0xff]
        %v3180 = vld [vmem:[#allocation3 + $0x31] sm:$0xff]
        %v3181 = vld [vmem:[#allocation3 + $0x39] sm:$0xff]
        %v3182 = vld [vmem:[#allocation3 + $0x41] sm:$0xff]
        %v3183 = vld [vmem:[#allocation3 + $0x49] sm:$0xff]
        %v3184 = vld [vmem:[#allocation3 + $0x51] sm:$0xff]
        %v3185 = vld [vmem:[#allocation3 + $0x59] sm:$0xff]
        %v3186 = vld [vmem:[#allocation3 + $0x61] sm:$0xff]
        %v3187 = vld [vmem:[#allocation3 + $0x69] sm:$0xff]
        %v3188 = vld [vmem:[#allocation3 + $0x71] sm:$0xff]
        %v3189 = vld [vmem:[#allocation3 + $0x79] sm:$0xff]
        %v3190 = vld [vmem:[#allocation3 + $0x81] sm:$0xff]
        %v3191 = vld [vmem:[#allocation3 + $0x89] sm:$0xff]
        %v3192 = vld [vmem:[#allocation3 + $0x91] sm:$0xff]
        %v3193 = vld [vmem:[#allocation3 + $0x99] sm:$0xff]
        %v3194 = vld [vmem:[#allocation3 + $0xa1] sm:$0xff]
        %v3195 = vld [vmem:[#allocation3 + $0xa9] sm:$0xff]
        %v3196 = vld [vmem:[#allocation3 + $0xb1] sm:$0xff]
        %v3197 = vld [vmem:[#allocation3 + $0xb9] sm:$0x7]
        %v3198 = vmax.f32 %v3150, %v3174
        %v3199 = vmax.f32 %v3151, %v3175
        %v3200 = vmax.f32 %v3152, %v3176
        %v3201 = vmax.f32 %v3153, %v3177
        %v3202 = vmax.f32 %v3154, %v3178
        %v3203 = vmax.f32 %v3155, %v3179
        %v3204 = vmax.f32 %v3156, %v3180
        %v3205 = vmax.f32 %v3157, %v3181
        %v3206 = vmax.f32 %v3158, %v3182
        %v3207 = vmax.f32 %v3159, %v3183
        %v3208 = vmax.f32 %v3160, %v3184
        %v3209 = vmax.f32 %v3161, %v3185
        %v3210 = vmax.f32 %v3162, %v3186
        %v3211 = vmax.f32 %v3163, %v3187
        %v3212 = vmax.f32 %v3164, %v3188
        %v3213 = vmax.f32 %v3165, %v3189
        %v3214 = vmax.f32 %v3166, %v3190
        %v3215 = vmax.f32 %v3167, %v3191
        %v3216 = vmax.f32 %v3168, %v3192
        %v3217 = vmax.f32 %v3169, %v3193
        %v3218 = vmax.f32 %v3170, %v3194
        %v3219 = vmax.f32 %v3171, %v3195
        %v3220 = vmax.f32 %v3172, %v3196
        %v3221 = vmax.f32 %v3173, %v3197
        %v3222 = vmax.f32 %v3198, %v3200
        %v3223 = vmax.f32 %v3199, %v3201
        %v3224 = vmax.f32 %v3200, %v3202
        %v3225 = vmax.f32 %v3201, %v3203
        %v3226 = vmax.f32 %v3202, %v3204
        %v3227 = vmax.f32 %v3203, %v3205
        %v3228 = vmax.f32 %v3204, %v3206
        %v3229 = vmax.f32 %v3205, %v3207
        %v3230 = vmax.f32 %v3206, %v3208
        %v3231 = vmax.f32 %v3207, %v3209
        %v3232 = vmax.f32 %v3208, %v3210
        %v3233 = vmax.f32 %v3209, %v3211
        %v3234 = vmax.f32 %v3210, %v3212
        %v3235 = vmax.f32 %v3211, %v3213
        %v3236 = vmax.f32 %v3212, %v3214
        %v3237 = vmax.f32 %v3213, %v3215
        %v3238 = vmax.f32 %v3214, %v3216
        %v3239 = vmax.f32 %v3215, %v3217
        %v3240 = vmax.f32 %v3216, %v3218
        %v3241 = vmax.f32 %v3217, %v3219
        %v3242 = vmax.f32 %v3218, %v3220
        %v3243 = vmax.f32 %v3219, %v3221
        %3244 = vst [vmem:[#allocation4] sm:$0xff] %v3222
        %3245 = vst [vmem:[#allocation4 + $0x8] sm:$0xff] %v3223
        %3246 = vst [vmem:[#allocation4 + $0x10] sm:$0xff] %v3224
        %3247 = vst [vmem:[#allocation4 + $0x18] sm:$0xff] %v3225
        %3248 = vst [vmem:[#allocation4 + $0x20] sm:$0xff] %v3226
        %3249 = vst [vmem:[#allocation4 + $0x28] sm:$0xff] %v3227
        %3250 = vst [vmem:[#allocation4 + $0x30] sm:$0xff] %v3228
        %3251 = vst [vmem:[#allocation4 + $0x38] sm:$0xff] %v3229
        %3252 = vst [vmem:[#allocation4 + $0x40] sm:$0xff] %v3230
        %3253 = vst [vmem:[#allocation4 + $0x48] sm:$0xff] %v3231
        %3254 = vst [vmem:[#allocation4 + $0x50] sm:$0xff] %v3232
        %3255 = vst [vmem:[#allocation4 + $0x58] sm:$0xff] %v3233
        %3256 = vst [vmem:[#allocation4 + $0x60] sm:$0xff] %v3234
        %3257 = vst [vmem:[#allocation4 + $0x68] sm:$0xff] %v3235
        %3258 = vst [vmem:[#allocation4 + $0x70] sm:$0xff] %v3236
        %3259 = vst [vmem:[#allocation4 + $0x78] sm:$0xff] %v3237
        %3260 = vst [vmem:[#allocation4 + $0x80] sm:$0xff] %v3238
        %3261 = vst [vmem:[#allocation4 + $0x88] sm:$0xff] %v3239
        %3262 = vst [vmem:[#allocation4 + $0x90] sm:$0xff] %v3240
        %3263 = vst [vmem:[#allocation4 + $0x98] sm:$0xff] %v3241
        %3264 = vst [vmem:[#allocation4 + $0xa0] sm:$0xff] %v3242
        %3265 = vst [vmem:[#allocation4 + $0xa8] sm:$0x7] %v3243
        %3266 = vst [vmem:[#allocation5] sm:$0xf] 0
        %3267 = vst [vmem:[#allocation5 + $0x4] sm:$0xf] 0
        %3268 = vst [vmem:[#allocation5 + $0x8] sm:$0xf] 0
        %3269 = vst [vmem:[#allocation5 + $0xc] sm:$0xf] 0
        %3270 = vst [vmem:[#allocation5 + $0x10] sm:$0xf] 0
        %3271 = vst [vmem:[#allocation5 + $0x14] sm:$0xf] 0
        %v3272 = vld [vmem:[%s4] sm:$0x1]
        %v3273 = vld [vmem:[#allocation4] ss:$2 sm:$0x3f]
        %v3275 = vperm.slane %v3272, 0
        %v3277 = vadd.f32 %v3273, %v3275
        %v3278 = vmax.f32 %v3277, 0.0
        %v3279 = vpack.c.bf16 %v3278, %v3278
        %3280 = vst [vmem:[#allocation5] sm:$0x7] %v3279
        %s3281 = scalar_lea.vmem [#allocation4], 32
        %v3282 = vld [vmem:[%s3281] ss:$2 sm:$0x3f]
        %v3283 = vadd.f32 %v3282, %v3275
        %v3284 = vmax.f32 %v3283, 0.0
        %v3285 = vpack.c.bf16 %v3284, %v3284
        %3286 = vst [vmem:[#allocation5 + $0x4] sm:$0x7] %v3285
        %s3287 = scalar_lea.vmem [#allocation4], 64
        %v3288 = vld [vmem:[%s3287] ss:$2 sm:$0x3f]
        %v3289 = vadd.f32 %v3288, %v3275
        %v3290 = vmax.f32 %v3289, 0.0
        %v3291 = vpack.c.bf16 %v3290, %v3290
        %3292 = vst [vmem:[#allocation5 + $0x8] sm:$0x7] %v3291
        %s3293 = scalar_lea.vmem [#allocation4], 96
        %v3294 = vld [vmem:[%s3293] ss:$2 sm:$0x3f]
        %v3295 = vadd.f32 %v3294, %v3275
        %v3296 = vmax.f32 %v3295, 0.0
        %v3297 = vpack.c.bf16 %v3296, %v3296
        %3298 = vst [vmem:[#allocation5 + $0xc] sm:$0x7] %v3297
        %s3299 = scalar_lea.vmem [#allocation4], 128
        %v3300 = vld [vmem:[%s3299] ss:$2 sm:$0x3f]
        %v3301 = vadd.f32 %v3300, %v3275
        %v3302 = vmax.f32 %v3301, 0.0
        %v3303 = vpack.c.bf16 %v3302, %v3302
        %3304 = vst [vmem:[#allocation5 + $0x10] sm:$0x7] %v3303
        %s3305 = scalar_lea.vmem [#allocation4], 160
        %v3306 = vld [vmem:[%s3305] ss:$2 sm:$0x3f]
        %v3307 = vadd.f32 %v3306, %v3275
        %v3308 = vmax.f32 %v3307, 0.0
        %v3309 = vpack.c.bf16 %v3308, %v3308
        %3310 = vst [vmem:[#allocation5 + $0x14] sm:$0x7] %v3309
        %v3311 = vld [vmem:[#allocation5] sm:$0xf]
        %v3312 = vld [vmem:[#allocation5 + $0x4] sm:$0xf]
        %v3313 = vld [vmem:[#allocation5 + $0x8] sm:$0xf]
        %v3314 = vld [vmem:[#allocation5 + $0xc] sm:$0x3]
        %v3315 = vld [vmem:[#allocation5 + $0xc] sm:$0x7]
        %v3316 = vld [vmem:[#allocation5] sm:$0xe]
        %v3317 = vld [vmem:[#allocation5 + $0xc] sm:$0xf]
        %v3318 = vld [vmem:[#allocation5 + $0x10] sm:$0x3]
        %v3319 = vld [vmem:[#allocation5 + $0x10] sm:$0x7]
        %v3320 = vld [vmem:[#allocation5 + $0x4] sm:$0xe]
        %v3321 = vld [vmem:[#allocation5 + $0x8] sm:$0xf]
        %v3322 = vld [vmem:[#allocation5 + $0xc] sm:$0xf]
        %v3323 = vld [vmem:[#allocation5 + $0x10] sm:$0xf]
        %v3324 = vld [vmem:[#allocation5 + $0x14] sm:$0x3]
        %v3325 = vld [vmem:[#allocation5 + $0x14] sm:$0x7]
        %v3326 = vld [vmem:[#allocation5 + $0x8] sm:$0xe]
        %v3331 = vunpack.c.l.b16 %v3311
        %v3332 = vunpack.c.l.b16 %v3312
        %v3333 = vunpack.c.l.b16 %v3313
        %v3334 = vunpack.c.l.b16 %v3314
        %v3335 = vpack.c.b16 %v3332, %v3331
        %v3336 = vpack.c.b16 %v3334, %v3333
        %v3340 = vunpack.c.l.b16 %v3315
        %v3341 = vpack.c.b16 %v3340, %v3333
        %v3343 = vshrl.u32 %v3335, 16
        %v3345 = vshll.u32 %v3335, 16
        %v3347 = vrot.slane %v3345, 1
        %v3348 = vor.u32 %v3343, %v3347
        %v3350 = vshll.u32 %v3341, 16
        %v3352 = vrot.slane %v3350, 1
        %v3353 = vsel %vm1460, %v3348, %v3352
        %v3354 = vshrl.u32 %v3341, 16
        %v3356 = vor.u32 %v3354, %v3352
        %v3360 = vunpack.c.l.b16 %v3316
        %v3361 = vpack.c.b16 %v3332, %v3360
        %v3362 = vrot.slane %v3361, 1
        %v3363 = vrot.slane %v3341, 1
        %v3364 = vsel %vm1571, %v3362, %v3363
        %v3369 = vunpack.c.l.b16 %v3317
        %v3370 = vunpack.c.l.b16 %v3318
        %v3371 = vpack.c.b16 %v3333, %v3332
        %v3372 = vpack.c.b16 %v3370, %v3369
        %v3376 = vunpack.c.l.b16 %v3319
        %v3377 = vpack.c.b16 %v3376, %v3369
        %v3379 = vshrl.u32 %v3371, 16
        %v3381 = vshll.u32 %v3371, 16
        %v3383 = vrot.slane %v3381, 1
        %v3384 = vor.u32 %v3379, %v3383
        %v3386 = vshll.u32 %v3377, 16
        %v3388 = vrot.slane %v3386, 1
        %v3389 = vsel %vm1460, %v3384, %v3388
        %v3390 = vshrl.u32 %v3377, 16
        %v3392 = vor.u32 %v3390, %v3388
        %v3396 = vunpack.c.l.b16 %v3320
        %v3397 = vpack.c.b16 %v3333, %v3396
        %v3398 = vrot.slane %v3397, 1
        %v3399 = vrot.slane %v3377, 1
        %v3400 = vsel %vm1571, %v3398, %v3399
        %v3407 = vunpack.c.l.b16 %v3321
        %v3408 = vunpack.c.l.b16 %v3322
        %v3409 = vunpack.c.l.b16 %v3323
        %v3410 = vunpack.c.l.b16 %v3324
        %v3411 = vpack.c.b16 %v3408, %v3407
        %v3412 = vpack.c.b16 %v3410, %v3409
        %v3416 = vunpack.c.l.b16 %v3325
        %v3417 = vpack.c.b16 %v3416, %v3409
        %v3419 = vshrl.u32 %v3411, 16
        %v3421 = vshll.u32 %v3411, 16
        %v3423 = vrot.slane %v3421, 1
        %v3424 = vor.u32 %v3419, %v3423
        %v3426 = vshll.u32 %v3417, 16
        %v3428 = vrot.slane %v3426, 1
        %v3429 = vsel %vm1460, %v3424, %v3428
        %v3430 = vshrl.u32 %v3417, 16
        %v3432 = vor.u32 %v3430, %v3428
        %v3436 = vunpack.c.l.b16 %v3326
        %v3437 = vpack.c.b16 %v3408, %v3436
        %v3438 = vrot.slane %v3437, 1
        %v3439 = vrot.slane %v3417, 1
        %v3440 = vsel %vm1571, %v3438, %v3439
        %v3443 = vld [vmem:[%s5] sm:$0xf]
        %v3444 = vld [vmem:[%s5 + $0x4] sm:$0xf]
        %v3445 = vld [vmem:[%s5 + $0x8] sm:$0xf]
        %v3446 = vld [vmem:[%s5 + $0xc] sm:$0xf]
        %v3447 = vld [vmem:[%s5 + $0x10] sm:$0xf]
        %v3448 = vld [vmem:[%s5 + $0x14] sm:$0xf]
        %v3449 = vld [vmem:[%s5 + $0x18] sm:$0xf]
        %v3450 = vld [vmem:[%s5 + $0x1c] sm:$0xf]
        %v3451 = vld [vmem:[%s5 + $0x20] sm:$0xf]
        %v3452 = vld [vmem:[%s5 + $0x24] sm:$0xf]
        %v3453 = vld [vmem:[%s5 + $0x28] sm:$0xf]
        %v3454 = vld [vmem:[%s5 + $0x2c] sm:$0xf]
        %v3455 = vld [vmem:[%s5 + $0x30] sm:$0xf]
        %v3456 = vld [vmem:[%s5 + $0x34] sm:$0xf]
        %v3457 = vld [vmem:[%s5 + $0x38] sm:$0xf]
        %v3458 = vld [vmem:[%s5 + $0x3c] sm:$0xf]
        %v3459 = vld [vmem:[%s5 + $0x40] sm:$0xf]
        %v3460 = vld [vmem:[%s5 + $0x44] sm:$0xf]
        %v3461 = vld [vmem:[%s5 + $0x48] sm:$0xf]
        %v3462 = vld [vmem:[%s5 + $0x4c] sm:$0xf]
        %v3463 = vld [vmem:[%s5 + $0x50] sm:$0xf]
        %v3464 = vld [vmem:[%s5 + $0x54] sm:$0xf]
        %v3465 = vld [vmem:[%s5 + $0x58] sm:$0xf]
        %v3466 = vld [vmem:[%s5 + $0x5c] sm:$0xf]
        %v3467 = vld [vmem:[%s5 + $0x60] sm:$0xf]
        %v3468 = vld [vmem:[%s5 + $0x64] sm:$0xf]
        %v3469 = vld [vmem:[%s5 + $0x68] sm:$0xf]
        %v3470 = vld [vmem:[%s5 + $0x6c] sm:$0xf]
        %v3471 = vld [vmem:[%s5 + $0x70] sm:$0xf]
        %v3472 = vld [vmem:[%s5 + $0x74] sm:$0xf]
        %v3473 = vld [vmem:[%s5 + $0x78] sm:$0xf]
        %v3474 = vld [vmem:[%s5 + $0x7c] sm:$0xf]
        %v3475 = vld [vmem:[%s5 + $0x80] sm:$0xf]
        %v3476 = vld [vmem:[%s5 + $0x84] sm:$0xf]
        %v3477 = vld [vmem:[%s5 + $0x88] sm:$0xf]
        %v3478 = vld [vmem:[%s5 + $0x8c] sm:$0xf]
        %v3479 = vld [vmem:[%s5 + $0x90] sm:$0xf]
        %v3480 = vld [vmem:[%s5 + $0x94] sm:$0xf]
        %v3481 = vld [vmem:[%s5 + $0x98] sm:$0xf]
        %v3482 = vld [vmem:[%s5 + $0x9c] sm:$0xf]
        %v3483 = vld [vmem:[%s5 + $0xa0] sm:$0xf]
        %v3484 = vld [vmem:[%s5 + $0xa4] sm:$0xf]
        %v3485 = vld [vmem:[%s5 + $0xa8] sm:$0xf]
        %v3486 = vld [vmem:[%s5 + $0xac] sm:$0xf]
        %v3487 = vld [vmem:[%s5 + $0xb0] sm:$0xf]
        %v3488 = vld [vmem:[%s5 + $0xb4] sm:$0xf]
        %v3489 = vld [vmem:[%s5 + $0xb8] sm:$0xf]
        %v3490 = vld [vmem:[%s5 + $0xbc] sm:$0xf]
        %v3491 = vld [vmem:[%s5 + $0xc0] sm:$0xf]
        %v3492 = vld [vmem:[%s5 + $0xc4] sm:$0xf]
        %v3493 = vld [vmem:[%s5 + $0xc8] sm:$0xf]
        %v3494 = vld [vmem:[%s5 + $0xcc] sm:$0xf]
        %v3495 = vld [vmem:[%s5 + $0xd0] sm:$0xf]
        %v3496 = vld [vmem:[%s5 + $0xd4] sm:$0xf]
        %v3497 = vld [vmem:[%s5 + $0xd8] sm:$0xf]
        %v3498 = vld [vmem:[%s5 + $0xdc] sm:$0xf]
        %v3499 = vld [vmem:[%s5 + $0xe0] sm:$0xf]
        %v3500 = vld [vmem:[%s5 + $0xe4] sm:$0xf]
        %v3501 = vld [vmem:[%s5 + $0xe8] sm:$0xf]
        %v3502 = vld [vmem:[%s5 + $0xec] sm:$0xf]
        %v3503 = vld [vmem:[%s5 + $0xf0] sm:$0xf]
        %v3504 = vld [vmem:[%s5 + $0xf4] sm:$0xf]
        %v3505 = vld [vmem:[%s5 + $0xf8] sm:$0xf]
        %v3506 = vld [vmem:[%s5 + $0xfc] sm:$0xf]
        %v3507 = vld [vmem:[%s5 + $0x100] sm:$0xf]
        %v3508 = vld [vmem:[%s5 + $0x104] sm:$0xf]
        %v3509 = vld [vmem:[%s5 + $0x108] sm:$0xf]
        %v3510 = vld [vmem:[%s5 + $0x10c] sm:$0xf]
        %v3511 = vld [vmem:[%s5 + $0x110] sm:$0xf]
        %v3512 = vld [vmem:[%s5 + $0x114] sm:$0xf]
        %v3513 = vld [vmem:[%s5 + $0x118] sm:$0xf]
        %v3514 = vld [vmem:[%s5 + $0x11c] sm:$0xf]
        %v3515 = vld [vmem:[%s5 + $0x120] sm:$0xf]
        %v3516 = vld [vmem:[%s5 + $0x124] sm:$0xf]
        %v3517 = vld [vmem:[%s5 + $0x128] sm:$0xf]
        %v3518 = vld [vmem:[%s5 + $0x12c] sm:$0xf]
        %v3519 = vld [vmem:[%s5 + $0x130] sm:$0xf]
        %v3520 = vld [vmem:[%s5 + $0x134] sm:$0xf]
        %v3521 = vld [vmem:[%s5 + $0x138] sm:$0xf]
        %v3522 = vld [vmem:[%s5 + $0x13c] sm:$0xf]
        %v3523 = vld [vmem:[%s5 + $0x140] sm:$0xf]
        %v3524 = vld [vmem:[%s5 + $0x144] sm:$0xf]
        %v3525 = vld [vmem:[%s5 + $0x148] sm:$0xf]
        %v3526 = vld [vmem:[%s5 + $0x14c] sm:$0xf]
        %v3527 = vld [vmem:[%s5 + $0x150] sm:$0xf]
        %v3528 = vld [vmem:[%s5 + $0x154] sm:$0xf]
        %v3529 = vld [vmem:[%s5 + $0x158] sm:$0xf]
        %v3530 = vld [vmem:[%s5 + $0x15c] sm:$0xf]
        %v3531 = vld [vmem:[%s5 + $0x160] sm:$0xf]
        %v3532 = vld [vmem:[%s5 + $0x164] sm:$0xf]
        %v3533 = vld [vmem:[%s5 + $0x168] sm:$0xf]
        %v3534 = vld [vmem:[%s5 + $0x16c] sm:$0xf]
        %v3535 = vld [vmem:[%s5 + $0x170] sm:$0xf]
        %v3536 = vld [vmem:[%s5 + $0x174] sm:$0xf]
        %v3537 = vld [vmem:[%s5 + $0x178] sm:$0xf]
        %v3538 = vld [vmem:[%s5 + $0x17c] sm:$0xf]
        %v3539 = vld [vmem:[%s5 + $0x180] sm:$0xf]
        %v3540 = vld [vmem:[%s5 + $0x184] sm:$0xf]
        %v3541 = vld [vmem:[%s5 + $0x188] sm:$0xf]
        %v3542 = vld [vmem:[%s5 + $0x18c] sm:$0xf]
        %v3543 = vld [vmem:[%s5 + $0x190] sm:$0xf]
        %v3544 = vld [vmem:[%s5 + $0x194] sm:$0xf]
        %v3545 = vld [vmem:[%s5 + $0x198] sm:$0xf]
        %v3546 = vld [vmem:[%s5 + $0x19c] sm:$0xf]
        %v3547 = vld [vmem:[%s5 + $0x1a0] sm:$0xf]
        %v3548 = vld [vmem:[%s5 + $0x1a4] sm:$0xf]
        %v3549 = vld [vmem:[%s5 + $0x1a8] sm:$0xf]
        %v3550 = vld [vmem:[%s5 + $0x1ac] sm:$0xf]
        %v3551 = vld [vmem:[%s5 + $0x1b0] sm:$0xf]
        %v3552 = vld [vmem:[%s5 + $0x1b4] sm:$0xf]
        %v3553 = vld [vmem:[%s5 + $0x1b8] sm:$0xf]
        %v3554 = vld [vmem:[%s5 + $0x1bc] sm:$0xf]
        %v3555 = vld [vmem:[%s5 + $0x1c0] sm:$0xf]
        %v3556 = vld [vmem:[%s5 + $0x1c4] sm:$0xf]
        %v3557 = vld [vmem:[%s5 + $0x1c8] sm:$0xf]
        %v3558 = vld [vmem:[%s5 + $0x1cc] sm:$0xf]
        %v3559 = vld [vmem:[%s5 + $0x1d0] sm:$0xf]
        %v3560 = vld [vmem:[%s5 + $0x1d4] sm:$0xf]
        %v3561 = vld [vmem:[%s5 + $0x1d8] sm:$0xf]
        %v3562 = vld [vmem:[%s5 + $0x1dc] sm:$0xf]
        %v3563 = vld [vmem:[%s5 + $0x1e0] sm:$0xf]
        %v3564 = vld [vmem:[%s5 + $0x1e4] sm:$0xf]
        %v3565 = vld [vmem:[%s5 + $0x1e8] sm:$0xf]
        %v3566 = vld [vmem:[%s5 + $0x1ec] sm:$0xf]
        %v3567 = vld [vmem:[%s5 + $0x1f0] sm:$0xf]
        %v3568 = vld [vmem:[%s5 + $0x1f4] sm:$0xf]
        %v3569 = vld [vmem:[%s5 + $0x1f8] sm:$0xf]
        %v3570 = vld [vmem:[%s5 + $0x1fc] sm:$0xf]
        %v3571 = vld [vmem:[%s5 + $0x200] sm:$0xf]
        %v3572 = vld [vmem:[%s5 + $0x204] sm:$0xf]
        %v3573 = vld [vmem:[%s5 + $0x208] sm:$0xf]
        %v3574 = vld [vmem:[%s5 + $0x20c] sm:$0xf]
        %v3575 = vld [vmem:[%s5 + $0x210] sm:$0xf]
        %v3576 = vld [vmem:[%s5 + $0x214] sm:$0xf]
        %v3577 = vld [vmem:[%s5 + $0x218] sm:$0xf]
        %v3578 = vld [vmem:[%s5 + $0x21c] sm:$0xf]
        %v3579 = vld [vmem:[%s5 + $0x220] sm:$0xf]
        %v3580 = vld [vmem:[%s5 + $0x224] sm:$0xf]
        %v3581 = vld [vmem:[%s5 + $0x228] sm:$0xf]
        %v3582 = vld [vmem:[%s5 + $0x22c] sm:$0xf]
        %v3583 = vld [vmem:[%s5 + $0x230] sm:$0xf]
        %v3584 = vld [vmem:[%s5 + $0x234] sm:$0xf]
        %v3585 = vld [vmem:[%s5 + $0x238] sm:$0xf]
        %v3586 = vld [vmem:[%s5 + $0x23c] sm:$0xf]
        %v3587 = vld [vmem:[%s6] sm:$0x1]
        %v3589 = vperm.slane %v3587, 0
        %v3735 = vunpack.c.l.b16 %v3443
        %v3736 = vunpack.c.l.b16 %v3444
        %v3737 = vunpack.c.l.b16 %v3445
        %v3738 = vunpack.c.l.b16 %v3446
        %v3739 = vunpack.c.l.b16 %v3447
        %v3740 = vunpack.c.l.b16 %v3448
        %v3741 = vunpack.c.l.b16 %v3449
        %v3742 = vunpack.c.l.b16 %v3450
        %v3743 = vunpack.c.l.b16 %v3451
        %v3744 = vunpack.c.l.b16 %v3452
        %v3745 = vunpack.c.l.b16 %v3453
        %v3746 = vunpack.c.l.b16 %v3454
        %v3747 = vunpack.c.l.b16 %v3455
        %v3748 = vunpack.c.l.b16 %v3456
        %v3749 = vunpack.c.l.b16 %v3457
        %v3750 = vunpack.c.l.b16 %v3458
        %v3751 = vunpack.c.l.b16 %v3459
        %v3752 = vunpack.c.l.b16 %v3460
        %v3753 = vunpack.c.l.b16 %v3461
        %v3754 = vunpack.c.l.b16 %v3462
        %v3755 = vunpack.c.l.b16 %v3463
        %v3756 = vunpack.c.l.b16 %v3464
        %v3757 = vunpack.c.l.b16 %v3465
        %v3758 = vunpack.c.l.b16 %v3466
        %v3759 = vunpack.c.l.b16 %v3467
        %v3760 = vunpack.c.l.b16 %v3468
        %v3761 = vunpack.c.l.b16 %v3469
        %v3762 = vunpack.c.l.b16 %v3470
        %v3763 = vunpack.c.l.b16 %v3471
        %v3764 = vunpack.c.l.b16 %v3472
        %v3765 = vunpack.c.l.b16 %v3473
        %v3766 = vunpack.c.l.b16 %v3474
        %v3767 = vunpack.c.l.b16 %v3475
        %v3768 = vunpack.c.l.b16 %v3476
        %v3769 = vunpack.c.l.b16 %v3477
        %v3770 = vunpack.c.l.b16 %v3478
        %v3771 = vunpack.c.l.b16 %v3479
        %v3772 = vunpack.c.l.b16 %v3480
        %v3773 = vunpack.c.l.b16 %v3481
        %v3774 = vunpack.c.l.b16 %v3482
        %v3775 = vunpack.c.l.b16 %v3483
        %v3776 = vunpack.c.l.b16 %v3484
        %v3777 = vunpack.c.l.b16 %v3485
        %v3778 = vunpack.c.l.b16 %v3486
        %v3779 = vunpack.c.l.b16 %v3487
        %v3780 = vunpack.c.l.b16 %v3488
        %v3781 = vunpack.c.l.b16 %v3489
        %v3782 = vunpack.c.l.b16 %v3490
        %v3783 = vunpack.c.l.b16 %v3491
        %v3784 = vunpack.c.l.b16 %v3492
        %v3785 = vunpack.c.l.b16 %v3493
        %v3786 = vunpack.c.l.b16 %v3494
        %v3787 = vunpack.c.l.b16 %v3495
        %v3788 = vunpack.c.l.b16 %v3496
        %v3789 = vunpack.c.l.b16 %v3497
        %v3790 = vunpack.c.l.b16 %v3498
        %v3791 = vunpack.c.l.b16 %v3499
        %v3792 = vunpack.c.l.b16 %v3500
        %v3793 = vunpack.c.l.b16 %v3501
        %v3794 = vunpack.c.l.b16 %v3502
        %v3795 = vunpack.c.l.b16 %v3503
        %v3796 = vunpack.c.l.b16 %v3504
        %v3797 = vunpack.c.l.b16 %v3505
        %v3798 = vunpack.c.l.b16 %v3506
        %v3799 = vunpack.c.l.b16 %v3507
        %v3800 = vunpack.c.l.b16 %v3508
        %v3801 = vunpack.c.l.b16 %v3509
        %v3802 = vunpack.c.l.b16 %v3510
        %v3803 = vunpack.c.l.b16 %v3511
        %v3804 = vunpack.c.l.b16 %v3512
        %v3805 = vunpack.c.l.b16 %v3513
        %v3806 = vunpack.c.l.b16 %v3514
        %v3807 = vunpack.c.l.b16 %v3515
        %v3808 = vunpack.c.l.b16 %v3516
        %v3809 = vunpack.c.l.b16 %v3517
        %v3810 = vunpack.c.l.b16 %v3518
        %v3811 = vunpack.c.l.b16 %v3519
        %v3812 = vunpack.c.l.b16 %v3520
        %v3813 = vunpack.c.l.b16 %v3521
        %v3814 = vunpack.c.l.b16 %v3522
        %v3815 = vunpack.c.l.b16 %v3523
        %v3816 = vunpack.c.l.b16 %v3524
        %v3817 = vunpack.c.l.b16 %v3525
        %v3818 = vunpack.c.l.b16 %v3526
        %v3819 = vunpack.c.l.b16 %v3527
        %v3820 = vunpack.c.l.b16 %v3528
        %v3821 = vunpack.c.l.b16 %v3529
        %v3822 = vunpack.c.l.b16 %v3530
        %v3823 = vunpack.c.l.b16 %v3531
        %v3824 = vunpack.c.l.b16 %v3532
        %v3825 = vunpack.c.l.b16 %v3533
        %v3826 = vunpack.c.l.b16 %v3534
        %v3827 = vunpack.c.l.b16 %v3535
        %v3828 = vunpack.c.l.b16 %v3536
        %v3829 = vunpack.c.l.b16 %v3537
        %v3830 = vunpack.c.l.b16 %v3538
        %v3831 = vunpack.c.l.b16 %v3539
        %v3832 = vunpack.c.l.b16 %v3540
        %v3833 = vunpack.c.l.b16 %v3541
        %v3834 = vunpack.c.l.b16 %v3542
        %v3835 = vunpack.c.l.b16 %v3543
        %v3836 = vunpack.c.l.b16 %v3544
        %v3837 = vunpack.c.l.b16 %v3545
        %v3838 = vunpack.c.l.b16 %v3546
        %v3839 = vunpack.c.l.b16 %v3547
        %v3840 = vunpack.c.l.b16 %v3548
        %v3841 = vunpack.c.l.b16 %v3549
        %v3842 = vunpack.c.l.b16 %v3550
        %v3843 = vunpack.c.l.b16 %v3551
        %v3844 = vunpack.c.l.b16 %v3552
        %v3845 = vunpack.c.l.b16 %v3553
        %v3846 = vunpack.c.l.b16 %v3554
        %v3847 = vunpack.c.l.b16 %v3555
        %v3848 = vunpack.c.l.b16 %v3556
        %v3849 = vunpack.c.l.b16 %v3557
        %v3850 = vunpack.c.l.b16 %v3558
        %v3851 = vunpack.c.l.b16 %v3559
        %v3852 = vunpack.c.l.b16 %v3560
        %v3853 = vunpack.c.l.b16 %v3561
        %v3854 = vunpack.c.l.b16 %v3562
        %v3855 = vunpack.c.l.b16 %v3563
        %v3856 = vunpack.c.l.b16 %v3564
        %v3857 = vunpack.c.l.b16 %v3565
        %v3858 = vunpack.c.l.b16 %v3566
        %v3859 = vunpack.c.l.b16 %v3567
        %v3860 = vunpack.c.l.b16 %v3568
        %v3861 = vunpack.c.l.b16 %v3569
        %v3862 = vunpack.c.l.b16 %v3570
        %v3863 = vunpack.c.l.b16 %v3571
        %v3864 = vunpack.c.l.b16 %v3572
        %v3865 = vunpack.c.l.b16 %v3573
        %v3866 = vunpack.c.l.b16 %v3574
        %v3867 = vunpack.c.l.b16 %v3575
        %v3868 = vunpack.c.l.b16 %v3576
        %v3869 = vunpack.c.l.b16 %v3577
        %v3870 = vunpack.c.l.b16 %v3578
        %v3871 = vunpack.c.l.b16 %v3579
        %v3872 = vunpack.c.l.b16 %v3580
        %v3873 = vunpack.c.l.b16 %v3581
        %v3874 = vunpack.c.l.b16 %v3582
        %v3875 = vunpack.c.l.b16 %v3583
        %v3876 = vunpack.c.l.b16 %v3584
        %v3877 = vunpack.c.l.b16 %v3585
        %v3878 = vunpack.c.l.b16 %v3586
        %v3879 = vpack.c.b16 %v3736, %v3735
        %v3880 = vpack.c.b16 %v3738, %v3737
        %v3881 = vpack.c.b16 %v3740, %v3739
        %v3882 = vpack.c.b16 %v3742, %v3741
        %v3883 = vpack.c.b16 %v3744, %v3743
        %v3884 = vpack.c.b16 %v3746, %v3745
        %v3885 = vpack.c.b16 %v3748, %v3747
        %v3886 = vpack.c.b16 %v3750, %v3749
        %v3887 = vpack.c.b16 %v3752, %v3751
        %v3888 = vpack.c.b16 %v3754, %v3753
        %v3889 = vpack.c.b16 %v3756, %v3755
        %v3890 = vpack.c.b16 %v3758, %v3757
        %v3891 = vpack.c.b16 %v3760, %v3759
        %v3892 = vpack.c.b16 %v3762, %v3761
        %v3893 = vpack.c.b16 %v3764, %v3763
        %v3894 = vpack.c.b16 %v3766, %v3765
        %v3895 = vpack.c.b16 %v3768, %v3767
        %v3896 = vpack.c.b16 %v3770, %v3769
        %v3897 = vpack.c.b16 %v3772, %v3771
        %v3898 = vpack.c.b16 %v3774, %v3773
        %v3899 = vpack.c.b16 %v3776, %v3775
        %v3900 = vpack.c.b16 %v3778, %v3777
        %v3901 = vpack.c.b16 %v3780, %v3779
        %v3902 = vpack.c.b16 %v3782, %v3781
        %v3903 = vpack.c.b16 %v3784, %v3783
        %v3904 = vpack.c.b16 %v3786, %v3785
        %v3905 = vpack.c.b16 %v3788, %v3787
        %v3906 = vpack.c.b16 %v3790, %v3789
        %v3907 = vpack.c.b16 %v3792, %v3791
        %v3908 = vpack.c.b16 %v3794, %v3793
        %v3909 = vpack.c.b16 %v3796, %v3795
        %v3910 = vpack.c.b16 %v3798, %v3797
        %v3911 = vpack.c.b16 %v3800, %v3799
        %v3912 = vpack.c.b16 %v3802, %v3801
        %v3913 = vpack.c.b16 %v3804, %v3803
        %v3914 = vpack.c.b16 %v3806, %v3805
        %v3915 = vpack.c.b16 %v3808, %v3807
        %v3916 = vpack.c.b16 %v3810, %v3809
        %v3917 = vpack.c.b16 %v3812, %v3811
        %v3918 = vpack.c.b16 %v3814, %v3813
        %v3919 = vpack.c.b16 %v3816, %v3815
        %v3920 = vpack.c.b16 %v3818, %v3817
        %v3921 = vpack.c.b16 %v3820, %v3819
        %v3922 = vpack.c.b16 %v3822, %v3821
        %v3923 = vpack.c.b16 %v3824, %v3823
        %v3924 = vpack.c.b16 %v3826, %v3825
        %v3925 = vpack.c.b16 %v3828, %v3827
        %v3926 = vpack.c.b16 %v3830, %v3829
        %v3927 = vpack.c.b16 %v3832, %v3831
        %v3928 = vpack.c.b16 %v3834, %v3833
        %v3929 = vpack.c.b16 %v3836, %v3835
        %v3930 = vpack.c.b16 %v3838, %v3837
        %v3931 = vpack.c.b16 %v3840, %v3839
        %v3932 = vpack.c.b16 %v3842, %v3841
        %v3933 = vpack.c.b16 %v3844, %v3843
        %v3934 = vpack.c.b16 %v3846, %v3845
        %v3935 = vpack.c.b16 %v3848, %v3847
        %v3936 = vpack.c.b16 %v3850, %v3849
        %v3937 = vpack.c.b16 %v3852, %v3851
        %v3938 = vpack.c.b16 %v3854, %v3853
        %v3939 = vpack.c.b16 %v3856, %v3855
        %v3940 = vpack.c.b16 %v3858, %v3857
        %v3941 = vpack.c.b16 %v3860, %v3859
        %v3942 = vpack.c.b16 %v3862, %v3861
        %v3943 = vpack.c.b16 %v3864, %v3863
        %v3944 = vpack.c.b16 %v3866, %v3865
        %v3945 = vpack.c.b16 %v3868, %v3867
        %v3946 = vpack.c.b16 %v3870, %v3869
        %v3947 = vpack.c.b16 %v3872, %v3871
        %v3948 = vpack.c.b16 %v3874, %v3873
        %v3949 = vpack.c.b16 %v3876, %v3875
        %v3950 = vpack.c.b16 %v3878, %v3877
        %4023 = vmatpush.bf16.msra.mxu0 %v3886
        %4024 = vmatpush.bf16.msra.mxu0 %v3885
        %4025 = vmatpush.bf16.msra.mxu0 %v3884
        %4026 = vmatpush.bf16.msra.mxu0 %v3883
        %4027 = vmatpush.bf16.msra.mxu0 %v3882
        %4028 = vmatpush.bf16.msra.mxu0 %v3881
        %4029 = vmatpush.bf16.msra.mxu0 %v3880
        %4030 = vmatpush.bf16.msra.mxu0 %v3879
        %4031 = vmatmul.bf16.gmra.mxu0 %v3335
        %v4032 = vpop.f32.mrf.mxu0
        %v4033 = vadd.f32 %v3589, %v4032
        %v4034 = vpop.f32.mrf.mxu0
        %v4035 = vadd.f32 %v3589, %v4034
        %4036 = vmatmul.bf16.gmra.mxu0 %v3336
        %v4037 = vpop.f32.mrf.mxu0
        %v4038 = vadd.f32 %v3589, %v4037
        %v4039 = vpop.f32.mrf.mxu0
        %v4040 = vadd.f32 %v3589, %v4039
        %4041 = vdwg.mxu0
        %4042 = vmatpush.bf16.msra.mxu0 %v3894
        %4043 = vmatpush.bf16.msra.mxu0 %v3893
        %4044 = vmatpush.bf16.msra.mxu0 %v3892
        %4045 = vmatpush.bf16.msra.mxu0 %v3891
        %4046 = vmatpush.bf16.msra.mxu0 %v3890
        %4047 = vmatpush.bf16.msra.mxu0 %v3889
        %4048 = vmatpush.bf16.msra.mxu0 %v3888
        %4049 = vmatpush.bf16.msra.mxu0 %v3887
        %4050 = vmatmul.bf16.gmra.mxu0 %v3353
        %v4051 = vpop.f32.mrf.mxu0
        %v4052 = vadd.f32 %v4033, %v4051
        %v4053 = vpop.f32.mrf.mxu0
        %v4054 = vadd.f32 %v4035, %v4053
        %4055 = vmatmul.bf16.gmra.mxu0 %v3356
        %v4056 = vpop.f32.mrf.mxu0
        %v4057 = vadd.f32 %v4038, %v4056
        %v4058 = vpop.f32.mrf.mxu0
        %v4059 = vadd.f32 %v4040, %v4058
        %4060 = vdwg.mxu0
        %4061 = vmatpush.bf16.msra.mxu0 %v3902
        %4062 = vmatpush.bf16.msra.mxu0 %v3901
        %4063 = vmatpush.bf16.msra.mxu0 %v3900
        %4064 = vmatpush.bf16.msra.mxu0 %v3899
        %4065 = vmatpush.bf16.msra.mxu0 %v3898
        %4066 = vmatpush.bf16.msra.mxu0 %v3897
        %4067 = vmatpush.bf16.msra.mxu0 %v3896
        %4068 = vmatpush.bf16.msra.mxu0 %v3895
        %4069 = vmatmul.bf16.gmra.mxu0 %v3364
        %v4070 = vpop.f32.mrf.mxu0
        %v4071 = vadd.f32 %v4052, %v4070
        %v4072 = vpop.f32.mrf.mxu0
        %v4073 = vadd.f32 %v4054, %v4072
        %4074 = vmatmul.bf16.gmra.mxu0 %v3363
        %v4075 = vpop.f32.mrf.mxu0
        %v4076 = vadd.f32 %v4057, %v4075
        %v4077 = vpop.f32.mrf.mxu0
        %v4078 = vadd.f32 %v4059, %v4077
        %4079 = vdwg.mxu0
        %4080 = vmatpush.bf16.msra.mxu0 %v3910
        %4081 = vmatpush.bf16.msra.mxu0 %v3909
        %4082 = vmatpush.bf16.msra.mxu0 %v3908
        %4083 = vmatpush.bf16.msra.mxu0 %v3907
        %4084 = vmatpush.bf16.msra.mxu0 %v3906
        %4085 = vmatpush.bf16.msra.mxu0 %v3905
        %4086 = vmatpush.bf16.msra.mxu0 %v3904
        %4087 = vmatpush.bf16.msra.mxu0 %v3903
        %4088 = vmatmul.bf16.gmra.mxu0 %v3371
        %v4089 = vpop.f32.mrf.mxu0
        %v4090 = vadd.f32 %v4071, %v4089
        %v4091 = vpop.f32.mrf.mxu0
        %v4092 = vadd.f32 %v4073, %v4091
        %4093 = vmatmul.bf16.gmra.mxu0 %v3372
        %v4094 = vpop.f32.mrf.mxu0
        %v4095 = vadd.f32 %v4076, %v4094
        %v4096 = vpop.f32.mrf.mxu0
        %v4097 = vadd.f32 %v4078, %v4096
        %4098 = vdwg.mxu0
        %4099 = vmatpush.bf16.msra.mxu0 %v3918
        %4100 = vmatpush.bf16.msra.mxu0 %v3917
        %4101 = vmatpush.bf16.msra.mxu0 %v3916
        %4102 = vmatpush.bf16.msra.mxu0 %v3915
        %4103 = vmatpush.bf16.msra.mxu0 %v3914
        %4104 = vmatpush.bf16.msra.mxu0 %v3913
        %4105 = vmatpush.bf16.msra.mxu0 %v3912
        %4106 = vmatpush.bf16.msra.mxu0 %v3911
        %4107 = vmatmul.bf16.gmra.mxu0 %v3389
        %v4108 = vpop.f32.mrf.mxu0
        %v4109 = vadd.f32 %v4090, %v4108
        %v4110 = vpop.f32.mrf.mxu0
        %v4111 = vadd.f32 %v4092, %v4110
        %4112 = vmatmul.bf16.gmra.mxu0 %v3392
        %v4113 = vpop.f32.mrf.mxu0
        %v4114 = vadd.f32 %v4095, %v4113
        %v4115 = vpop.f32.mrf.mxu0
        %v4116 = vadd.f32 %v4097, %v4115
        %4117 = vdwg.mxu0
        %4118 = vmatpush.bf16.msra.mxu0 %v3926
        %4119 = vmatpush.bf16.msra.mxu0 %v3925
        %4120 = vmatpush.bf16.msra.mxu0 %v3924
        %4121 = vmatpush.bf16.msra.mxu0 %v3923
        %4122 = vmatpush.bf16.msra.mxu0 %v3922
        %4123 = vmatpush.bf16.msra.mxu0 %v3921
        %4124 = vmatpush.bf16.msra.mxu0 %v3920
        %4125 = vmatpush.bf16.msra.mxu0 %v3919
        %4126 = vmatmul.bf16.gmra.mxu0 %v3400
        %v4127 = vpop.f32.mrf.mxu0
        %v4128 = vadd.f32 %v4109, %v4127
        %v4129 = vpop.f32.mrf.mxu0
        %v4130 = vadd.f32 %v4111, %v4129
        %4131 = vmatmul.bf16.gmra.mxu0 %v3399
        %v4132 = vpop.f32.mrf.mxu0
        %v4133 = vadd.f32 %v4114, %v4132
        %v4134 = vpop.f32.mrf.mxu0
        %v4135 = vadd.f32 %v4116, %v4134
        %4136 = vdwg.mxu0
        %4137 = vmatpush.bf16.msra.mxu0 %v3934
        %4138 = vmatpush.bf16.msra.mxu0 %v3933
        %4139 = vmatpush.bf16.msra.mxu0 %v3932
        %4140 = vmatpush.bf16.msra.mxu0 %v3931
        %4141 = vmatpush.bf16.msra.mxu0 %v3930
        %4142 = vmatpush.bf16.msra.mxu0 %v3929
        %4143 = vmatpush.bf16.msra.mxu0 %v3928
        %4144 = vmatpush.bf16.msra.mxu0 %v3927
        %4145 = vmatmul.bf16.gmra.mxu0 %v3411
        %v4146 = vpop.f32.mrf.mxu0
        %v4147 = vadd.f32 %v4128, %v4146
        %v4148 = vpop.f32.mrf.mxu0
        %v4149 = vadd.f32 %v4130, %v4148
        %4150 = vmatmul.bf16.gmra.mxu0 %v3412
        %v4151 = vpop.f32.mrf.mxu0
        %v4152 = vadd.f32 %v4133, %v4151
        %v4153 = vpop.f32.mrf.mxu0
        %v4154 = vadd.f32 %v4135, %v4153
        %4155 = vdwg.mxu0
        %4156 = vmatpush.bf16.msra.mxu0 %v3942
        %4157 = vmatpush.bf16.msra.mxu0 %v3941
        %4158 = vmatpush.bf16.msra.mxu0 %v3940
        %4159 = vmatpush.bf16.msra.mxu0 %v3939
        %4160 = vmatpush.bf16.msra.mxu0 %v3938
        %4161 = vmatpush.bf16.msra.mxu0 %v3937
        %4162 = vmatpush.bf16.msra.mxu0 %v3936
        %4163 = vmatpush.bf16.msra.mxu0 %v3935
        %4164 = vmatmul.bf16.gmra.mxu0 %v3429
        %v4165 = vpop.f32.mrf.mxu0
        %v4166 = vadd.f32 %v4147, %v4165
        %v4167 = vpop.f32.mrf.mxu0
        %v4168 = vadd.f32 %v4149, %v4167
        %4169 = vmatmul.bf16.gmra.mxu0 %v3432
        %v4170 = vpop.f32.mrf.mxu0
        %v4171 = vadd.f32 %v4152, %v4170
        %v4172 = vpop.f32.mrf.mxu0
        %v4173 = vadd.f32 %v4154, %v4172
        %4174 = vdwg.mxu0
        %4175 = vmatpush.bf16.msra.mxu0 %v3950
        %4176 = vmatpush.bf16.msra.mxu0 %v3949
        %4177 = vmatpush.bf16.msra.mxu0 %v3948
        %4178 = vmatpush.bf16.msra.mxu0 %v3947
        %4179 = vmatpush.bf16.msra.mxu0 %v3946
        %4180 = vmatpush.bf16.msra.mxu0 %v3945
        %4181 = vmatpush.bf16.msra.mxu0 %v3944
        %4182 = vmatpush.bf16.msra.mxu0 %v3943
        %4183 = vmatmul.bf16.gmra.mxu0 %v3440
        %v4184 = vpop.f32.mrf.mxu0
        %v4185 = vadd.f32 %v4166, %v4184
        %v4186 = vpop.f32.mrf.mxu0
        %v4187 = vadd.f32 %v4168, %v4186
        %4188 = vmatmul.bf16.gmra.mxu0 %v3439
        %v4189 = vpop.f32.mrf.mxu0
        %v4190 = vadd.f32 %v4171, %v4189
        %v4191 = vpop.f32.mrf.mxu0
        %v4192 = vadd.f32 %v4173, %v4191
        %4193 = vdwg.mxu0
        %4194 = vst [vmem:[#allocation6] sm:$0xff] %v4185
        %4195 = vst [vmem:[#allocation6 + $0x8] sm:$0xff] %v4187
        %4196 = vst [vmem:[#allocation6 + $0x10] sm:$0xff] %v4190
        %4197 = vst [vmem:[#allocation6 + $0x18] sm:$0xf] %v4192
        %v4198 = vld [vmem:[#allocation6] sm:$0x1]
        %v4199 = vld [vmem:[#allocation6 + $0x1] sm:$0x1]
        %v4200 = vmax.f32 %v4198, %v4199
        %v4201 = vld [vmem:[#allocation6 + $0x8] sm:$0x1]
        %v4202 = vld [vmem:[#allocation6 + $0x9] sm:$0x1]
        %v4203 = vmax.f32 %v4201, %v4202
        %v4204 = vmax.f32 %v4200, %v4203
        %v4205 = vmax.f32 %v4204, 0.0
        %v4206 = vld [vmem:[#allocation6 + $0x2] sm:$0x1]
        %v4207 = vld [vmem:[#allocation6 + $0x3] sm:$0x1]
        %v4208 = vmax.f32 %v4206, %v4207
        %v4209 = vld [vmem:[#allocation6 + $0xa] sm:$0x1]
        %v4210 = vld [vmem:[#allocation6 + $0xb] sm:$0x1]
        %v4211 = vmax.f32 %v4209, %v4210
        %v4212 = vmax.f32 %v4208, %v4211
        %v4213 = vmax.f32 %v4212, 0.0
        %v4214 = vadd.f32 %v4205, %v4213
        %v4215 = vld [vmem:[#allocation6 + $0x10] sm:$0x1]
        %v4216 = vld [vmem:[#allocation6 + $0x11] sm:$0x1]
        %v4217 = vmax.f32 %v4215, %v4216
        %v4218 = vld [vmem:[#allocation6 + $0x18] sm:$0x1]
        %v4219 = vld [vmem:[#allocation6 + $0x19] sm:$0x1]
        %v4220 = vmax.f32 %v4218, %v4219
        %v4221 = vmax.f32 %v4217, %v4220
        %v4222 = vmax.f32 %v4221, 0.0
        %v4223 = vadd.f32 %v4214, %v4222
        %v4224 = vld [vmem:[#allocation6 + $0x12] sm:$0x1]
        %v4225 = vld [vmem:[#allocation6 + $0x13] sm:$0x1]
        %v4226 = vmax.f32 %v4224, %v4225
        %v4227 = vld [vmem:[#allocation6 + $0x1a] sm:$0x1]
        %v4228 = vld [vmem:[#allocation6 + $0x1b] sm:$0x1]
        %v4229 = vmax.f32 %v4227, %v4228
        %v4230 = vmax.f32 %v4226, %v4229
        %v4231 = vmax.f32 %v4230, 0.0
        %v4232 = vadd.f32 %v4223, %v4231
        %v4233 = vmul.f32 %v4232, 0.25
        %v4234 = vpack.c.bf16 %v4233, %v4233
        %v4235 = vld [vmem:[%s7] sm:$0xf]
        %v4236 = vld [vmem:[%s7 + $0x4] sm:$0xf]
        %v4237 = vld [vmem:[%s7 + $0x8] sm:$0xf]
        %v4238 = vld [vmem:[%s7 + $0xc] sm:$0xf]
        %v4239 = vld [vmem:[%s7 + $0x10] sm:$0xf]
        %v4240 = vld [vmem:[%s7 + $0x14] sm:$0xf]
        %v4241 = vld [vmem:[%s7 + $0x18] sm:$0xf]
        %v4242 = vld [vmem:[%s7 + $0x1c] sm:$0xf]
        %v4243 = vld [vmem:[%s7 + $0x20] sm:$0xf]
        %v4244 = vld [vmem:[%s7 + $0x24] sm:$0xf]
        %v4245 = vld [vmem:[%s7 + $0x28] sm:$0xf]
        %v4246 = vld [vmem:[%s7 + $0x2c] sm:$0xf]
        %v4247 = vld [vmem:[%s7 + $0x30] sm:$0xf]
        %v4248 = vld [vmem:[%s7 + $0x34] sm:$0xf]
        %v4249 = vld [vmem:[%s7 + $0x38] sm:$0xf]
        %v4250 = vld [vmem:[%s7 + $0x3c] sm:$0xf]
        %v4251 = vld [vmem:[%s8] sm:$0x1]
        %v4268 = vunpack.c.l.b16 %v4235
        %v4269 = vunpack.c.l.b16 %v4236
        %v4270 = vunpack.c.l.b16 %v4237
        %v4271 = vunpack.c.l.b16 %v4238
        %v4272 = vunpack.c.l.b16 %v4239
        %v4273 = vunpack.c.l.b16 %v4240
        %v4274 = vunpack.c.l.b16 %v4241
        %v4275 = vunpack.c.l.b16 %v4242
        %v4276 = vunpack.c.l.b16 %v4243
        %v4277 = vunpack.c.l.b16 %v4244
        %v4278 = vunpack.c.l.b16 %v4245
        %v4279 = vunpack.c.l.b16 %v4246
        %v4280 = vunpack.c.l.b16 %v4247
        %v4281 = vunpack.c.l.b16 %v4248
        %v4282 = vunpack.c.l.b16 %v4249
        %v4283 = vunpack.c.l.b16 %v4250
        %v4284 = vpack.c.b16 %v4269, %v4268
        %v4285 = vpack.c.b16 %v4271, %v4270
        %v4286 = vpack.c.b16 %v4273, %v4272
        %v4287 = vpack.c.b16 %v4275, %v4274
        %v4288 = vpack.c.b16 %v4277, %v4276
        %v4289 = vpack.c.b16 %v4279, %v4278
        %v4290 = vpack.c.b16 %v4281, %v4280
        %v4291 = vpack.c.b16 %v4283, %v4282
        %4300 = vmatpush.bf16.msra.mxu0 %v4291
        %4301 = vmatpush.bf16.msra.mxu0 %v4290
        %4302 = vmatpush.bf16.msra.mxu0 %v4289
        %4303 = vmatpush.bf16.msra.mxu0 %v4288
        %4304 = vmatpush.bf16.msra.mxu0 %v4287
        %4305 = vmatpush.bf16.msra.mxu0 %v4286
        %4306 = vmatpush.bf16.msra.mxu0 %v4285
        %4307 = vmatpush.bf16.msra.mxu0 %v4284
        %4308 = vmatmul.bf16.gmra.mxu0 %v4234
        %v4309 = vpop.f32.mrf.mxu0
        %v4310 = vadd.f32 %v4251, %v4309
        %v4311 = vpop.f32.mrf.mxu0
        %4312 = vdwg.mxu0
        %vm4313 = vcmask 73728
        %4314 = vst.msk [vmem:[%s324] sm:$0x1] %vm4313, %v4310
        %s4315 = sand.u32 %s225, 1
        %s4316 = scalar_lea.sflag [#allocation8], %s4315
        %s4317 = sand.u32 %s225, 1
        %s4318 = scalar_lea.vmem [#allocation7], %s4317
        // Predicated region
        $region57: #{net_forward.1} parent=55 // pred_check
          %p4319 = pneg %p235
        $region58: #{net_forward.1} parent=55 // pred_check_branch
          %4321 = sbr.rel (%p4319) target = $region60
        $region59: #{net_forward.1} parent=55 // pred_region
          %4323 = vsyncadd %s4316, 0
          %s4324 = scalar_lea.hbm %s9, %s23
          %s4326 = sshll.u32 %s4318, 4
          %s4327 = int_to_ptr.vmem [resolvable:$true] %s4326
          %s4328 = sshll.u32 %s4324, 4
          %s4329 = int_to_ptr.hbm [resolvable:$true] %s4328
          %4331 = dma.vmem_to_hbm [thread:$0]  %s4327, 16, %s4329, %s4316
        $region60: #{net_forward.1} parent=55 // pred_fallthru
          _
      $region56: #{net_forward.1} parent=5 // pred_fallthru
        _
      %p4332 = scmp.le.s32.totalorder 2, %s18
      // Predicated region
      $region61: #{net_forward.1} parent=5 // pred_check
        %p4333 = pneg %p4332
      $region62: #{net_forward.1} parent=5 // pred_check_branch
        %4335 = sbr.rel (%p4333) target = $region64
      $region63: #{net_forward.1} parent=5 // pred_region
        %s4336 = ssub.s32 %s18, 2
        // Predicated region
        $region65: #{net_forward.1} parent=63 // pred_check
          %p4337 = pneg %p241
        $region66: #{net_forward.1} parent=63 // pred_check_branch
          %4339 = sbr.rel (%p4337) target = $region68
        $region67: #{net_forward.1} parent=63 // pred_region
          %s4340 = sand.u32 %s226, 1
          %s4341 = scalar_lea.sflag [#allocation8], %s4340
          %s4342 = sand.u32 %s226, 1
          %s4343 = scalar_lea.vmem [#allocation7], %s4342
          %4345 = dma.done %s4341, 16
        $region68: #{net_forward.1} parent=63 // pred_fallthru
          _
      $region64: #{net_forward.1} parent=5 // pred_fallthru
        _
    $region6: #{net_forward.1} parent=1 // loop_footer
      %s22 = sadd.s32 1, %s18
    $region7: #{net_forward.1} parent=1 // loop_footer_branch
      %17 = sbr.rel target = $region3
    $region8: #{net_forward.1} parent=1 // loop_exit
      _
    %4346 = vsyncpa [#allocation8], 1
    %s4347 = scalar_lea.sflag [#allocation8], 1
    %4348 = vsyncpa %s4347, 1

</llo_original>
